<compile_context>
chip_gen: v6e
topology: v6e:2x2x1
jax: 0.10.0
libtpu: 0.0.40
codegen_flags: <defaults>
</compile_context>

<pallas_src>
import math
import functools

import jax
import jax.numpy as jnp
from jax import lax
from jax.experimental import pallas as pl
from jax.experimental.pallas import tpu as pltpu


def _round_up(x, m):
    return ((x + m - 1) // m) * m


def _gru_disc_kernel(T, B, Hp, L, unroll, len_ref, gi0_ref, h0_ref, *rest):
    """Single-invocation (grid=()) stacked-GRU discriminator forward.

    Refs:
      len_ref : (B, 1) int32 VMEM     -- sequence lengths
      gi0_ref : (T, B, 3Hp) f32 VMEM  -- layer-0 input projections (precomputed)
      h0_ref  : (L, B, Hp) f32 VMEM   -- initial hidden, zero-padded to Hp lanes
      rest    : per layer [w_hh^T (Hp,3Hp), b_hn (1,Hp)] and, for layers >= 1,
                [w_ih^T (Hp,3Hp), gi_bias (1,3Hp)]; then w1^T (Hp,30), b1,
                w2^T (30,out), b2; then out_ref (B,out); then VMEM scratch
                seq (T,B,Hp) and gi (T,B,3Hp).
    """
    n_gru = 2 + 4 * (L - 1)
    gru_refs = rest[:n_gru]
    w1t_ref, b1_ref, w2t_ref, b2_ref = rest[n_gru:n_gru + 4]
    out_ref = rest[n_gru + 4]
    seq_ref = rest[n_gru + 5]
    gi_ref = rest[n_gru + 6]

    len_m1 = len_ref[...] - 1                      # (B, 1) int32

    pos = 0
    final_h = None
    for layer in range(L):
        w_hh_t = gru_refs[pos][...]                # (Hp, 3Hp)
        b_hn = gru_refs[pos + 1][...]              # (1, Hp)
        pos += 2

        if layer == 0:
            gi_src = gi0_ref                       # projections already in VMEM
        else:
            w_ih_t = gru_refs[pos][...]            # (Hp, 3Hp)
            gi_b = gru_refs[pos + 1][...]          # (1, 3Hp), folded r/z biases
            pos += 2

            # Input projections for all timesteps: T independent matmuls, off
            # the recurrent critical path (unrolled so the MXU pipelines them).
            def proj(t, carry, _w=w_ih_t, _b=gi_b):
                gi_ref[t] = jnp.dot(seq_ref[t], _w,
                                    preferred_element_type=jnp.float32) + _b
                return carry

            lax.fori_loop(0, T, proj, 0, unroll=unroll)
            gi_src = gi_ref

        def gru_step(h, gi_t, _w_hh=w_hh_t, _b_hn=b_hn):
            # PyTorch gate order (r, z, n); gi_t already holds b_ih (+ b_hh for
            # r, z).  n-gate: n = tanh(gi_n + r * (W_hn h + b_hn)).
            gh = jnp.dot(h, _w_hh, preferred_element_type=jnp.float32)
            r = jax.nn.sigmoid(gi_t[:, :Hp] + gh[:, :Hp])
            z = jax.nn.sigmoid(gi_t[:, Hp:2 * Hp] + gh[:, Hp:2 * Hp])
            n = jnp.tanh(gi_t[:, 2 * Hp:] + r * (gh[:, 2 * Hp:] + _b_hn))
            return (1.0 - z) * n + z * h

        h_init = h0_ref[layer]                     # (B, Hp)
        if layer == L - 1:
            # Last layer: masked accumulator replaces the length gather; its
            # per-timestep outputs are never stored to VMEM.
            def body(t, carry, _src=gi_src, _step=gru_step):
                h, fin = carry
                h_new = _step(h, _src[t])
                fin = jnp.where(t == len_m1, h_new, fin)
                return (h_new, fin)

            _, final_h = lax.fori_loop(
                0, T, body, (h_init, jnp.zeros((B, Hp), jnp.float32)),
                unroll=unroll)
        else:
            def body(t, h, _src=gi_src, _step=gru_step):
                h_new = _step(h, _src[t])
                seq_ref[t] = h_new                 # needed as next layer's input
                return h_new

            lax.fori_loop(0, T, body, h_init, unroll=unroll)

    lin1 = jnp.tanh(jnp.dot(final_h, w1t_ref[...],
                            preferred_element_type=jnp.float32) + b1_ref[...])
    out_ref[...] = jnp.dot(lin1, w2t_ref[...],
                           preferred_element_type=jnp.float32) + b2_ref[...]


def motion_discriminator_forward(motion_sequence, lengths, h0, params,
                                 output_size=12):
    """motion_sequence: (bs, njoints, nfeats, num_frames) like the module."""
    bs, nj, nf, T = motion_sequence.shape
    I = nj * nf
    L, _, H = h0.shape
    Hp = _round_up(H, 128)                 # lane-aligned gate blocks
    f32 = jnp.float32

    # time-major input: exactly reshape(bs, nj*nf, T).permute(2, 0, 1).float()
    x = motion_sequence.reshape(bs, I, T).transpose(2, 0, 1).astype(f32)  # (T,B,I)

    def pad_gate_rows(w):                  # (3H, C) -> (3Hp, C), per-gate pad
        out = jnp.zeros((3 * Hp, w.shape[1]), f32)
        for g in range(3):
            out = out.at[g * Hp:g * Hp + H].set(w[g * H:(g + 1) * H].astype(f32))
        return out

    def pad_gate_vec(v):                   # (3H,) -> (1, 3Hp), per-gate pad
        out = jnp.zeros((3 * Hp,), f32)
        for g in range(3):
            out = out.at[g * Hp:g * Hp + H].set(v[g * H:(g + 1) * H].astype(f32))
        return out.reshape(1, 3 * Hp)

    def pad_cols(w):                       # (R, H) -> (R, Hp)
        return jnp.zeros((w.shape[0], Hp), f32).at[:, :H].set(w)

    gru_args = []
    gi0 = None
    for l, (w_ih, w_hh, b_ih, b_hh) in enumerate(params["gru"]):
        # Fold b_ih + b_hh for reset/update gates; the 'new' gate must keep
        # b_hh separate (it is scaled by r inside the cell).
        b_fold = jnp.concatenate([b_ih[:2 * H] + b_hh[:2 * H], b_ih[2 * H:]])
        gi_bias = pad_gate_vec(b_fold)                          # (1, 3Hp)
        b_hn = jnp.zeros((1, Hp), f32).at[0, :H].set(b_hh[2 * H:].astype(f32))
        w_hh_t = pad_cols(pad_gate_rows(w_hh)).T                # (Hp, 3Hp)
        gru_args += [w_hh_t, b_hn]
        if l == 0:
            # Hoist layer-0 input projection (tiny K = nj*nf) into plain XLA:
            # one (T*B, I) @ (I, 3Hp) matmul, biases folded in.
            w_ih0_p = pad_gate_rows(w_ih)                       # (3Hp, I)
            gi0 = (x.reshape(T * bs, I) @ w_ih0_p.T
                   + gi_bias).reshape(T, bs, 3 * Hp)            # (T, B, 3Hp)
        else:
            w_ih_t = pad_cols(pad_gate_rows(w_ih)).T            # (Hp, 3Hp)
            gru_args += [w_ih_t, gi_bias]

    w1, b1 = params["linear1"]
    w2, b2 = params["linear2"]
    w1t = jnp.zeros((Hp, w1.shape[0]), f32).at[:H, :].set(w1.T.astype(f32))
    lin_args = [w1t, b1.reshape(1, -1).astype(f32),
                w2.T.astype(f32), b2.reshape(1, -1).astype(f32)]

    h0_p = jnp.zeros((L, bs, Hp), f32).at[:, :, :H].set(h0.astype(f32))
    # lengths as a (B,1) VMEM vector for the masked select; length==0 now
    # safely yields a zero hidden row instead of an out-of-bounds gather.
    len2d = lengths.reshape(bs, 1).astype(jnp.int32)

    args = [len2d, gi0, h0_p] + gru_args + lin_args

    vmem_spec = pl.BlockSpec(memory_space=pltpu.MemorySpace.VMEM)
    in_specs = [vmem_spec] * len(args)

    # Explicit VMEM budget: defaults are only 16 MiB (v5e) / 32 MiB (v6e);
    # cap at 64 MiB so the limit stays valid on v7x.
    est = sum(int(a.size) * a.dtype.itemsize for a in args)
    est += 4 * (T * bs * Hp + T * bs * 3 * Hp + bs * output_size)
    vmem_limit = int(min(max(2 * est, 32 * 1024 * 1024), 64 * 1024 * 1024))

    unroll = True if T <= 32 else 8
    kernel = functools.partial(_gru_disc_kernel, T, bs, Hp, L, unroll)

    # TODO(synk): for very large T, move to a time-chunked grid so BlockSpec
    # double-buffers gi0 chunks (DMA/compute overlap) instead of staging the
    # whole sequence in VMEM at once.
    return pl.pallas_call(
        kernel,
        out_shape=jax.ShapeDtypeStruct((bs, output_size), jnp.float32),
        in_specs=in_specs,
        out_specs=vmem_spec,
        scratch_shapes=[pltpu.VMEM((T, bs, Hp), jnp.float32),
                        pltpu.VMEM((T, bs, 3 * Hp), jnp.float32)],
        compiler_params=pltpu.CompilerParams(vmem_limit_bytes=vmem_limit),
    )(*args)


def init_params(key, input_size, hidden_size, hidden_layer, output_size=12):
    """Deterministic synthetic init matching nn.GRU / nn.Linear shapes."""
    ks = jax.random.split(key, 4 * hidden_layer + 4)
    stdv = 1.0 / math.sqrt(hidden_size)
    gru = []
    idx = 0
    for l in range(hidden_layer):
        in_dim = input_size if l == 0 else hidden_size
        w_ih = jax.random.uniform(ks[idx], (3 * hidden_size, in_dim),
                                  jnp.float32, -stdv, stdv); idx += 1
        w_hh = jax.random.uniform(ks[idx], (3 * hidden_size, hidden_size),
                                  jnp.float32, -stdv, stdv); idx += 1
        b_ih = jax.random.uniform(ks[idx], (3 * hidden_size,),
                                  jnp.float32, -stdv, stdv); idx += 1
        b_hh = jax.random.uniform(ks[idx], (3 * hidden_size,),
                                  jnp.float32, -stdv, stdv); idx += 1
        gru.append((w_ih, w_hh, b_ih, b_hh))
    s1 = 1.0 / math.sqrt(hidden_size)
    w1 = jax.random.uniform(ks[idx], (30, hidden_size), jnp.float32, -s1, s1); idx += 1
    b1 = jax.random.uniform(ks[idx], (30,), jnp.float32, -s1, s1); idx += 1
    s2 = 1.0 / math.sqrt(30)
    w2 = jax.random.uniform(ks[idx], (output_size, 30), jnp.float32, -s2, s2); idx += 1
    b2 = jax.random.uniform(ks[idx], (output_size,), jnp.float32, -s2, s2); idx += 1
    return {"gru": gru, "linear1": (w1, b1), "linear2": (w2, b2)}


def reference_forward(motion_sequence, lengths, h0, params, output_size=12):
    """Pure-JAX reference mirroring the PyTorch forward, for validation."""
    bs, nj, nf, T = motion_sequence.shape
    I = nj * nf
    H = h0.shape[-1]
    seq = motion_sequence.reshape(bs, I, T).transpose(2, 0, 1).astype(jnp.float32)
    for l, (w_ih, w_hh, b_ih, b_hh) in enumerate(params["gru"]):
        def step(h, x_t, w_ih=w_ih, w_hh=w_hh, b_ih=b_ih, b_hh=b_hh):
            gi = x_t @ w_ih.T + b_ih
            gh = h @ w_hh.T + b_hh
            r = jax.nn.sigmoid(gi[:, :H] + gh[:, :H])
            z = jax.nn.sigmoid(gi[:, H:2 * H] + gh[:, H:2 * H])
            n = jnp.tanh(gi[:, 2 * H:] + r * gh[:, 2 * H:])
            hn = (1.0 - z) * n + z * h
            return hn, hn
        _, seq = lax.scan(step, h0[l], seq)
    out = seq[lengths - 1, jnp.arange(bs)]
    w1, b1 = params["linear1"]
    w2, b2 = params["linear2"]
    lin1 = jnp.tanh(out @ w1.T + b1)
    return lin1 @ w2.T + b2


if __name__ == "__main__":
    key = jax.random.PRNGKey(0)
    bs, njoints, nfeats, num_frames = 2, 4, 3, 8
    input_size = njoints * nfeats          # GRU input_size
    hidden_size = 32
    hidden_layer = 2
    output_size = 12

    k_x, k_h, k_p = jax.random.split(key, 3)
    motion = jax.random.normal(k_x, (bs, njoints, nfeats, num_frames), jnp.float32)
    lengths = jnp.array([num_frames, 5], dtype=jnp.int32)
    # forward() draws hidden_unit = randn(layer, bs, hidden) when None;
    # we generate it deterministically here and pass it in.
    h0 = jax.random.normal(k_h, (hidden_layer, bs, hidden_size), jnp.float32)

    params = init_params(k_p, input_size, hidden_size, hidden_layer, output_size)

    out = motion_discriminator_forward(motion, lengths, h0, params, output_size)
    out = jax.block_until_ready(out)

    ref = reference_forward(motion, lengths, h0, params, output_size)
    assert out.shape == (bs, output_size), out.shape
    assert jnp.allclose(out, ref, rtol=1e-3, atol=1e-3), (out, ref)
    print("KERNEL_OK")
</pallas_src>

<mosaic_0001>
module attributes {stable_mosaic.version = 11 : i64} {
  func.func @_gru_disc_kernel(%arg0: memref<2x1xi32, #tpu.memory_space<vmem>>, %arg1: memref<8x2x384xf32, #tpu.memory_space<vmem>>, %arg2: memref<2x2x128xf32, #tpu.memory_space<vmem>>, %arg3: memref<128x384xf32, #tpu.memory_space<vmem>>, %arg4: memref<1x128xf32, #tpu.memory_space<vmem>>, %arg5: memref<128x384xf32, #tpu.memory_space<vmem>>, %arg6: memref<1x128xf32, #tpu.memory_space<vmem>>, %arg7: memref<128x384xf32, #tpu.memory_space<vmem>>, %arg8: memref<1x384xf32, #tpu.memory_space<vmem>>, %arg9: memref<128x30xf32, #tpu.memory_space<vmem>>, %arg10: memref<1x30xf32, #tpu.memory_space<vmem>>, %arg11: memref<30x12xf32, #tpu.memory_space<vmem>>, %arg12: memref<1x12xf32, #tpu.memory_space<vmem>>, %arg13: memref<2x12xf32, #tpu.memory_space<vmem>>, %arg14: memref<8x2x128xf32, #tpu.memory_space<vmem>>, %arg15: memref<8x2x384xf32, #tpu.memory_space<vmem>>) attributes {dimension_semantics = [], scalar_prefetch = 0 : i64, scratch_operands = 2 : i64, tpu.core_type = #tpu.core_type<tc>} {
    %c0 = arith.constant 0 : index
    %c0_0 = arith.constant 0 : index
    %0 = vector.load %arg0[%c0, %c0_0] : memref<2x1xi32, #tpu.memory_space<vmem>>, vector<2x1xi32>
    %c1_i32 = arith.constant 1 : i32
    %1 = vector.broadcast %c1_i32 : i32 to vector<2x1xi32>
    %2 = arith.subi %0, %1 : vector<2x1xi32>
    %c0_1 = arith.constant 0 : index
    %c0_2 = arith.constant 0 : index
    %3 = vector.load %arg3[%c0_1, %c0_2] : memref<128x384xf32, #tpu.memory_space<vmem>>, vector<128x384xf32>
    %c0_3 = arith.constant 0 : index
    %c0_4 = arith.constant 0 : index
    %4 = vector.load %arg4[%c0_3, %c0_4] : memref<1x128xf32, #tpu.memory_space<vmem>>, vector<1x128xf32>
    %c0_5 = arith.constant 0 : index
    %c0_6 = arith.constant 0 : index
    %c0_7 = arith.constant 0 : index
    %5 = vector.load %arg2[%c0_5, %c0_6, %c0_7] : memref<2x2x128xf32, #tpu.memory_space<vmem>>, vector<1x2x128xf32>
    %6 = vector.shape_cast %5 : vector<1x2x128xf32> to vector<2x128xf32>
    %c0_i32 = arith.constant 0 : i32
    %7 = arith.index_cast %c0_i32 : i32 to index
    %c0_8 = arith.constant 0 : index
    %c0_9 = arith.constant 0 : index
    %8 = vector.load %arg1[%7, %c0_8, %c0_9] : memref<8x2x384xf32, #tpu.memory_space<vmem>>, vector<1x2x384xf32>
    %9 = vector.shape_cast %8 : vector<1x2x384xf32> to vector<2x384xf32>
    %cst = arith.constant dense<0.000000e+00> : vector<2x384xf32>
    %10 = tpu.matmul %6, %3, %cst {dimension_numbers = #tpu.dot_dimension_numbers<[1], [0], [0], [1], [0, 0, 1, 1], [], []>} : vector<2x128xf32>, vector<128x384xf32>, vector<2x384xf32> -> vector<2x384xf32>
    %11 = vector.extract_strided_slice %9 {offsets = [0, 0], sizes = [2, 128], strides = [1, 1]} : vector<2x384xf32> to vector<2x128xf32>
    %12 = vector.extract_strided_slice %10 {offsets = [0, 0], sizes = [2, 128], strides = [1, 1]} : vector<2x384xf32> to vector<2x128xf32>
    %13 = arith.addf %11, %12 : vector<2x128xf32>
    %14 = arith.negf %13 : vector<2x128xf32>
    %15 = math.exp %14 : vector<2x128xf32>
    %cst_10 = arith.constant 1.000000e+00 : f32
    %16 = vector.broadcast %cst_10 : f32 to vector<2x128xf32>
    %17 = arith.addf %16, %15 : vector<2x128xf32>
    %18 = arith.divf %16, %17 : vector<2x128xf32>
    %19 = vector.extract_strided_slice %9 {offsets = [0, 128], sizes = [2, 128], strides = [1, 1]} : vector<2x384xf32> to vector<2x128xf32>
    %20 = vector.extract_strided_slice %10 {offsets = [0, 128], sizes = [2, 128], strides = [1, 1]} : vector<2x384xf32> to vector<2x128xf32>
    %21 = arith.addf %19, %20 : vector<2x128xf32>
    %22 = arith.negf %21 : vector<2x128xf32>
    %23 = math.exp %22 : vector<2x128xf32>
    %cst_11 = arith.constant 1.000000e+00 : f32
    %24 = vector.broadcast %cst_11 : f32 to vector<2x128xf32>
    %25 = arith.addf %24, %23 : vector<2x128xf32>
    %26 = arith.divf %24, %25 : vector<2x128xf32>
    %27 = vector.extract_strided_slice %9 {offsets = [0, 256], sizes = [2, 128], strides = [1, 1]} : vector<2x384xf32> to vector<2x128xf32>
    %28 = vector.extract_strided_slice %10 {offsets = [0, 256], sizes = [2, 128], strides = [1, 1]} : vector<2x384xf32> to vector<2x128xf32>
    %29 = vector.broadcast %4 : vector<1x128xf32> to vector<2x128xf32>
    %30 = arith.addf %28, %29 : vector<2x128xf32>
    %31 = arith.mulf %18, %30 : vector<2x128xf32>
    %32 = arith.addf %27, %31 : vector<2x128xf32>
    %33 = math.tanh %32 : vector<2x128xf32>
    %cst_12 = arith.constant 1.000000e+00 : f32
    %34 = vector.broadcast %cst_12 : f32 to vector<2x128xf32>
    %35 = arith.subf %34, %26 : vector<2x128xf32>
    %36 = arith.mulf %35, %33 : vector<2x128xf32>
    %37 = arith.mulf %26, %6 : vector<2x128xf32>
    %38 = arith.addf %36, %37 : vector<2x128xf32>
    %39 = arith.index_cast %c0_i32 : i32 to index
    %c0_13 = arith.constant 0 : index
    %c0_14 = arith.constant 0 : index
    %40 = vector.load %arg14[%39, %c0_13, %c0_14] : memref<8x2x128xf32, #tpu.memory_space<vmem>>, vector<1x2x128xf32>
    %41 = vector.shape_cast %40 : vector<1x2x128xf32> to vector<2x128xf32>
    %42 = vector.shape_cast %38 : vector<2x128xf32> to vector<1x2x128xf32>
    tpu.vector_store %arg14[%39, %c0_13, %c0_14], %42 {strides = array<i32>} : memref<8x2x128xf32, #tpu.memory_space<vmem>>, vector<1x2x128xf32>,
    %c1_i32_15 = arith.constant 1 : i32
    %43 = arith.index_cast %c1_i32_15 : i32 to index
    %c0_16 = arith.constant 0 : index
    %c0_17 = arith.constant 0 : index
    %44 = vector.load %arg1[%43, %c0_16, %c0_17] : memref<8x2x384xf32, #tpu.memory_space<vmem>>, vector<1x2x384xf32>
    %45 = vector.shape_cast %44 : vector<1x2x384xf32> to vector<2x384xf32>
    %cst_18 = arith.constant dense<0.000000e+00> : vector<2x384xf32>
    %46 = tpu.matmul %38, %3, %cst_18 {dimension_numbers = #tpu.dot_dimension_numbers<[1], [0], [0], [1], [0, 0, 1, 1], [], []>} : vector<2x128xf32>, vector<128x384xf32>, vector<2x384xf32> -> vector<2x384xf32>
    %47 = vector.extract_strided_slice %45 {offsets = [0, 0], sizes = [2, 128], strides = [1, 1]} : vector<2x384xf32> to vector<2x128xf32>
    %48 = vector.extract_strided_slice %46 {offsets = [0, 0], sizes = [2, 128], strides = [1, 1]} : vector<2x384xf32> to vector<2x128xf32>
    %49 = arith.addf %47, %48 : vector<2x128xf32>
    %50 = arith.negf %49 : vector<2x128xf32>
    %51 = math.exp %50 : vector<2x128xf32>
    %cst_19 = arith.constant 1.000000e+00 : f32
    %52 = vector.broadcast %cst_19 : f32 to vector<2x128xf32>
    %53 = arith.addf %52, %51 : vector<2x128xf32>
    %54 = arith.divf %52, %53 : vector<2x128xf32>
    %55 = vector.extract_strided_slice %45 {offsets = [0, 128], sizes = [2, 128], strides = [1, 1]} : vector<2x384xf32> to vector<2x128xf32>
    %56 = vector.extract_strided_slice %46 {offsets = [0, 128], sizes = [2, 128], strides = [1, 1]} : vector<2x384xf32> to vector<2x128xf32>
    %57 = arith.addf %55, %56 : vector<2x128xf32>
    %58 = arith.negf %57 : vector<2x128xf32>
    %59 = math.exp %58 : vector<2x128xf32>
    %cst_20 = arith.constant 1.000000e+00 : f32
    %60 = vector.broadcast %cst_20 : f32 to vector<2x128xf32>
    %61 = arith.addf %60, %59 : vector<2x128xf32>
    %62 = arith.divf %60, %61 : vector<2x128xf32>
    %63 = vector.extract_strided_slice %45 {offsets = [0, 256], sizes = [2, 128], strides = [1, 1]} : vector<2x384xf32> to vector<2x128xf32>
    %64 = vector.extract_strided_slice %46 {offsets = [0, 256], sizes = [2, 128], strides = [1, 1]} : vector<2x384xf32> to vector<2x128xf32>
    %65 = vector.broadcast %4 : vector<1x128xf32> to vector<2x128xf32>
    %66 = arith.addf %64, %65 : vector<2x128xf32>
    %67 = arith.mulf %54, %66 : vector<2x128xf32>
    %68 = arith.addf %63, %67 : vector<2x128xf32>
    %69 = math.tanh %68 : vector<2x128xf32>
    %cst_21 = arith.constant 1.000000e+00 : f32
    %70 = vector.broadcast %cst_21 : f32 to vector<2x128xf32>
    %71 = arith.subf %70, %62 : vector<2x128xf32>
    %72 = arith.mulf %71, %69 : vector<2x128xf32>
    %73 = arith.mulf %62, %38 : vector<2x128xf32>
    %74 = arith.addf %72, %73 : vector<2x128xf32>
    %75 = arith.index_cast %c1_i32_15 : i32 to index
    %c0_22 = arith.constant 0 : index
    %c0_23 = arith.constant 0 : index
    %76 = vector.load %arg14[%75, %c0_22, %c0_23] : memref<8x2x128xf32, #tpu.memory_space<vmem>>, vector<1x2x128xf32>
    %77 = vector.shape_cast %76 : vector<1x2x128xf32> to vector<2x128xf32>
    %78 = vector.shape_cast %74 : vector<2x128xf32> to vector<1x2x128xf32>
    tpu.vector_store %arg14[%75, %c0_22, %c0_23], %78 {strides = array<i32>} : memref<8x2x128xf32, #tpu.memory_space<vmem>>, vector<1x2x128xf32>,
    %c2_i32 = arith.constant 2 : i32
    %79 = arith.index_cast %c2_i32 : i32 to index
    %c0_24 = arith.constant 0 : index
    %c0_25 = arith.constant 0 : index
    %80 = vector.load %arg1[%79, %c0_24, %c0_25] : memref<8x2x384xf32, #tpu.memory_space<vmem>>, vector<1x2x384xf32>
    %81 = vector.shape_cast %80 : vector<1x2x384xf32> to vector<2x384xf32>
    %cst_26 = arith.constant dense<0.000000e+00> : vector<2x384xf32>
    %82 = tpu.matmul %74, %3, %cst_26 {dimension_numbers = #tpu.dot_dimension_numbers<[1], [0], [0], [1], [0, 0, 1, 1], [], []>} : vector<2x128xf32>, vector<128x384xf32>, vector<2x384xf32> -> vector<2x384xf32>
    %83 = vector.extract_strided_slice %81 {offsets = [0, 0], sizes = [2, 128], strides = [1, 1]} : vector<2x384xf32> to vector<2x128xf32>
    %84 = vector.extract_strided_slice %82 {offsets = [0, 0], sizes = [2, 128], strides = [1, 1]} : vector<2x384xf32> to vector<2x128xf32>
    %85 = arith.addf %83, %84 : vector<2x128xf32>
    %86 = arith.negf %85 : vector<2x128xf32>
    %87 = math.exp %86 : vector<2x128xf32>
    %cst_27 = arith.constant 1.000000e+00 : f32
    %88 = vector.broadcast %cst_27 : f32 to vector<2x128xf32>
    %89 = arith.addf %88, %87 : vector<2x128xf32>
    %90 = arith.divf %88, %89 : vector<2x128xf32>
    %91 = vector.extract_strided_slice %81 {offsets = [0, 128], sizes = [2, 128], strides = [1, 1]} : vector<2x384xf32> to vector<2x128xf32>
    %92 = vector.extract_strided_slice %82 {offsets = [0, 128], sizes = [2, 128], strides = [1, 1]} : vector<2x384xf32> to vector<2x128xf32>
    %93 = arith.addf %91, %92 : vector<2x128xf32>
    %94 = arith.negf %93 : vector<2x128xf32>
    %95 = math.exp %94 : vector<2x128xf32>
    %cst_28 = arith.constant 1.000000e+00 : f32
    %96 = vector.broadcast %cst_28 : f32 to vector<2x128xf32>
    %97 = arith.addf %96, %95 : vector<2x128xf32>
    %98 = arith.divf %96, %97 : vector<2x128xf32>
    %99 = vector.extract_strided_slice %81 {offsets = [0, 256], sizes = [2, 128], strides = [1, 1]} : vector<2x384xf32> to vector<2x128xf32>
    %100 = vector.extract_strided_slice %82 {offsets = [0, 256], sizes = [2, 128], strides = [1, 1]} : vector<2x384xf32> to vector<2x128xf32>
    %101 = vector.broadcast %4 : vector<1x128xf32> to vector<2x128xf32>
    %102 = arith.addf %100, %101 : vector<2x128xf32>
    %103 = arith.mulf %90, %102 : vector<2x128xf32>
    %104 = arith.addf %99, %103 : vector<2x128xf32>
    %105 = math.tanh %104 : vector<2x128xf32>
    %cst_29 = arith.constant 1.000000e+00 : f32
    %106 = vector.broadcast %cst_29 : f32 to vector<2x128xf32>
    %107 = arith.subf %106, %98 : vector<2x128xf32>
    %108 = arith.mulf %107, %105 : vector<2x128xf32>
    %109 = arith.mulf %98, %74 : vector<2x128xf32>
    %110 = arith.addf %108, %109 : vector<2x128xf32>
    %111 = arith.index_cast %c2_i32 : i32 to index
    %c0_30 = arith.constant 0 : index
    %c0_31 = arith.constant 0 : index
    %112 = vector.load %arg14[%111, %c0_30, %c0_31] : memref<8x2x128xf32, #tpu.memory_space<vmem>>, vector<1x2x128xf32>
    %113 = vector.shape_cast %112 : vector<1x2x128xf32> to vector<2x128xf32>
    %114 = vector.shape_cast %110 : vector<2x128xf32> to vector<1x2x128xf32>
    tpu.vector_store %arg14[%111, %c0_30, %c0_31], %114 {strides = array<i32>} : memref<8x2x128xf32, #tpu.memory_space<vmem>>, vector<1x2x128xf32>,
    %c3_i32 = arith.constant 3 : i32
    %115 = arith.index_cast %c3_i32 : i32 to index
    %c0_32 = arith.constant 0 : index
    %c0_33 = arith.constant 0 : index
    %116 = vector.load %arg1[%115, %c0_32, %c0_33] : memref<8x2x384xf32, #tpu.memory_space<vmem>>, vector<1x2x384xf32>
    %117 = vector.shape_cast %116 : vector<1x2x384xf32> to vector<2x384xf32>
    %cst_34 = arith.constant dense<0.000000e+00> : vector<2x384xf32>
    %118 = tpu.matmul %110, %3, %cst_34 {dimension_numbers = #tpu.dot_dimension_numbers<[1], [0], [0], [1], [0, 0, 1, 1], [], []>} : vector<2x128xf32>, vector<128x384xf32>, vector<2x384xf32> -> vector<2x384xf32>
    %119 = vector.extract_strided_slice %117 {offsets = [0, 0], sizes = [2, 128], strides = [1, 1]} : vector<2x384xf32> to vector<2x128xf32>
    %120 = vector.extract_strided_slice %118 {offsets = [0, 0], sizes = [2, 128], strides = [1, 1]} : vector<2x384xf32> to vector<2x128xf32>
    %121 = arith.addf %119, %120 : vector<2x128xf32>
    %122 = arith.negf %121 : vector<2x128xf32>
    %123 = math.exp %122 : vector<2x128xf32>
    %cst_35 = arith.constant 1.000000e+00 : f32
    %124 = vector.broadcast %cst_35 : f32 to vector<2x128xf32>
    %125 = arith.addf %124, %123 : vector<2x128xf32>
    %126 = arith.divf %124, %125 : vector<2x128xf32>
    %127 = vector.extract_strided_slice %117 {offsets = [0, 128], sizes = [2, 128], strides = [1, 1]} : vector<2x384xf32> to vector<2x128xf32>
    %128 = vector.extract_strided_slice %118 {offsets = [0, 128], sizes = [2, 128], strides = [1, 1]} : vector<2x384xf32> to vector<2x128xf32>
    %129 = arith.addf %127, %128 : vector<2x128xf32>
    %130 = arith.negf %129 : vector<2x128xf32>
    %131 = math.exp %130 : vector<2x128xf32>
    %cst_36 = arith.constant 1.000000e+00 : f32
    %132 = vector.broadcast %cst_36 : f32 to vector<2x128xf32>
    %133 = arith.addf %132, %131 : vector<2x128xf32>
    %134 = arith.divf %132, %133 : vector<2x128xf32>
    %135 = vector.extract_strided_slice %117 {offsets = [0, 256], sizes = [2, 128], strides = [1, 1]} : vector<2x384xf32> to vector<2x128xf32>
    %136 = vector.extract_strided_slice %118 {offsets = [0, 256], sizes = [2, 128], strides = [1, 1]} : vector<2x384xf32> to vector<2x128xf32>
    %137 = vector.broadcast %4 : vector<1x128xf32> to vector<2x128xf32>
    %138 = arith.addf %136, %137 : vector<2x128xf32>
    %139 = arith.mulf %126, %138 : vector<2x128xf32>
    %140 = arith.addf %135, %139 : vector<2x128xf32>
    %141 = math.tanh %140 : vector<2x128xf32>
    %cst_37 = arith.constant 1.000000e+00 : f32
    %142 = vector.broadcast %cst_37 : f32 to vector<2x128xf32>
    %143 = arith.subf %142, %134 : vector<2x128xf32>
    %144 = arith.mulf %143, %141 : vector<2x128xf32>
    %145 = arith.mulf %134, %110 : vector<2x128xf32>
    %146 = arith.addf %144, %145 : vector<2x128xf32>
    %147 = arith.index_cast %c3_i32 : i32 to index
    %c0_38 = arith.constant 0 : index
    %c0_39 = arith.constant 0 : index
    %148 = vector.load %arg14[%147, %c0_38, %c0_39] : memref<8x2x128xf32, #tpu.memory_space<vmem>>, vector<1x2x128xf32>
    %149 = vector.shape_cast %148 : vector<1x2x128xf32> to vector<2x128xf32>
    %150 = vector.shape_cast %146 : vector<2x128xf32> to vector<1x2x128xf32>
    tpu.vector_store %arg14[%147, %c0_38, %c0_39], %150 {strides = array<i32>} : memref<8x2x128xf32, #tpu.memory_space<vmem>>, vector<1x2x128xf32>,
    %c4_i32 = arith.constant 4 : i32
    %151 = arith.index_cast %c4_i32 : i32 to index
    %c0_40 = arith.constant 0 : index
    %c0_41 = arith.constant 0 : index
    %152 = vector.load %arg1[%151, %c0_40, %c0_41] : memref<8x2x384xf32, #tpu.memory_space<vmem>>, vector<1x2x384xf32>
    %153 = vector.shape_cast %152 : vector<1x2x384xf32> to vector<2x384xf32>
    %cst_42 = arith.constant dense<0.000000e+00> : vector<2x384xf32>
    %154 = tpu.matmul %146, %3, %cst_42 {dimension_numbers = #tpu.dot_dimension_numbers<[1], [0], [0], [1], [0, 0, 1, 1], [], []>} : vector<2x128xf32>, vector<128x384xf32>, vector<2x384xf32> -> vector<2x384xf32>
    %155 = vector.extract_strided_slice %153 {offsets = [0, 0], sizes = [2, 128], strides = [1, 1]} : vector<2x384xf32> to vector<2x128xf32>
    %156 = vector.extract_strided_slice %154 {offsets = [0, 0], sizes = [2, 128], strides = [1, 1]} : vector<2x384xf32> to vector<2x128xf32>
    %157 = arith.addf %155, %156 : vector<2x128xf32>
    %158 = arith.negf %157 : vector<2x128xf32>
    %159 = math.exp %158 : vector<2x128xf32>
    %cst_43 = arith.constant 1.000000e+00 : f32
    %160 = vector.broadcast %cst_43 : f32 to vector<2x128xf32>
    %161 = arith.addf %160, %159 : vector<2x128xf32>
    %162 = arith.divf %160, %161 : vector<2x128xf32>
    %163 = vector.extract_strided_slice %153 {offsets = [0, 128], sizes = [2, 128], strides = [1, 1]} : vector<2x384xf32> to vector<2x128xf32>
    %164 = vector.extract_strided_slice %154 {offsets = [0, 128], sizes = [2, 128], strides = [1, 1]} : vector<2x384xf32> to vector<2x128xf32>
    %165 = arith.addf %163, %164 : vector<2x128xf32>
    %166 = arith.negf %165 : vector<2x128xf32>
    %167 = math.exp %166 : vector<2x128xf32>
    %cst_44 = arith.constant 1.000000e+00 : f32
    %168 = vector.broadcast %cst_44 : f32 to vector<2x128xf32>
    %169 = arith.addf %168, %167 : vector<2x128xf32>
    %170 = arith.divf %168, %169 : vector<2x128xf32>
    %171 = vector.extract_strided_slice %153 {offsets = [0, 256], sizes = [2, 128], strides = [1, 1]} : vector<2x384xf32> to vector<2x128xf32>
    %172 = vector.extract_strided_slice %154 {offsets = [0, 256], sizes = [2, 128], strides = [1, 1]} : vector<2x384xf32> to vector<2x128xf32>
    %173 = vector.broadcast %4 : vector<1x128xf32> to vector<2x128xf32>
    %174 = arith.addf %172, %173 : vector<2x128xf32>
    %175 = arith.mulf %162, %174 : vector<2x128xf32>
    %176 = arith.addf %171, %175 : vector<2x128xf32>
    %177 = math.tanh %176 : vector<2x128xf32>
    %cst_45 = arith.constant 1.000000e+00 : f32
    %178 = vector.broadcast %cst_45 : f32 to vector<2x128xf32>
    %179 = arith.subf %178, %170 : vector<2x128xf32>
    %180 = arith.mulf %179, %177 : vector<2x128xf32>
    %181 = arith.mulf %170, %146 : vector<2x128xf32>
    %182 = arith.addf %180, %181 : vector<2x128xf32>
    %183 = arith.index_cast %c4_i32 : i32 to index
    %c0_46 = arith.constant 0 : index
    %c0_47 = arith.constant 0 : index
    %184 = vector.load %arg14[%183, %c0_46, %c0_47] : memref<8x2x128xf32, #tpu.memory_space<vmem>>, vector<1x2x128xf32>
    %185 = vector.shape_cast %184 : vector<1x2x128xf32> to vector<2x128xf32>
    %186 = vector.shape_cast %182 : vector<2x128xf32> to vector<1x2x128xf32>
    tpu.vector_store %arg14[%183, %c0_46, %c0_47], %186 {strides = array<i32>} : memref<8x2x128xf32, #tpu.memory_space<vmem>>, vector<1x2x128xf32>,
    %c5_i32 = arith.constant 5 : i32
    %187 = arith.index_cast %c5_i32 : i32 to index
    %c0_48 = arith.constant 0 : index
    %c0_49 = arith.constant 0 : index
    %188 = vector.load %arg1[%187, %c0_48, %c0_49] : memref<8x2x384xf32, #tpu.memory_space<vmem>>, vector<1x2x384xf32>
    %189 = vector.shape_cast %188 : vector<1x2x384xf32> to vector<2x384xf32>
    %cst_50 = arith.constant dense<0.000000e+00> : vector<2x384xf32>
    %190 = tpu.matmul %182, %3, %cst_50 {dimension_numbers = #tpu.dot_dimension_numbers<[1], [0], [0], [1], [0, 0, 1, 1], [], []>} : vector<2x128xf32>, vector<128x384xf32>, vector<2x384xf32> -> vector<2x384xf32>
    %191 = vector.extract_strided_slice %189 {offsets = [0, 0], sizes = [2, 128], strides = [1, 1]} : vector<2x384xf32> to vector<2x128xf32>
    %192 = vector.extract_strided_slice %190 {offsets = [0, 0], sizes = [2, 128], strides = [1, 1]} : vector<2x384xf32> to vector<2x128xf32>
    %193 = arith.addf %191, %192 : vector<2x128xf32>
    %194 = arith.negf %193 : vector<2x128xf32>
    %195 = math.exp %194 : vector<2x128xf32>
    %cst_51 = arith.constant 1.000000e+00 : f32
    %196 = vector.broadcast %cst_51 : f32 to vector<2x128xf32>
    %197 = arith.addf %196, %195 : vector<2x128xf32>
    %198 = arith.divf %196, %197 : vector<2x128xf32>
    %199 = vector.extract_strided_slice %189 {offsets = [0, 128], sizes = [2, 128], strides = [1, 1]} : vector<2x384xf32> to vector<2x128xf32>
    %200 = vector.extract_strided_slice %190 {offsets = [0, 128], sizes = [2, 128], strides = [1, 1]} : vector<2x384xf32> to vector<2x128xf32>
    %201 = arith.addf %199, %200 : vector<2x128xf32>
    %202 = arith.negf %201 : vector<2x128xf32>
    %203 = math.exp %202 : vector<2x128xf32>
    %cst_52 = arith.constant 1.000000e+00 : f32
    %204 = vector.broadcast %cst_52 : f32 to vector<2x128xf32>
    %205 = arith.addf %204, %203 : vector<2x128xf32>
    %206 = arith.divf %204, %205 : vector<2x128xf32>
    %207 = vector.extract_strided_slice %189 {offsets = [0, 256], sizes = [2, 128], strides = [1, 1]} : vector<2x384xf32> to vector<2x128xf32>
    %208 = vector.extract_strided_slice %190 {offsets = [0, 256], sizes = [2, 128], strides = [1, 1]} : vector<2x384xf32> to vector<2x128xf32>
    %209 = vector.broadcast %4 : vector<1x128xf32> to vector<2x128xf32>
    %210 = arith.addf %208, %209 : vector<2x128xf32>
    %211 = arith.mulf %198, %210 : vector<2x128xf32>
    %212 = arith.addf %207, %211 : vector<2x128xf32>
    %213 = math.tanh %212 : vector<2x128xf32>
    %cst_53 = arith.constant 1.000000e+00 : f32
    %214 = vector.broadcast %cst_53 : f32 to vector<2x128xf32>
    %215 = arith.subf %214, %206 : vector<2x128xf32>
    %216 = arith.mulf %215, %213 : vector<2x128xf32>
    %217 = arith.mulf %206, %182 : vector<2x128xf32>
    %218 = arith.addf %216, %217 : vector<2x128xf32>
    %219 = arith.index_cast %c5_i32 : i32 to index
    %c0_54 = arith.constant 0 : index
    %c0_55 = arith.constant 0 : index
    %220 = vector.load %arg14[%219, %c0_54, %c0_55] : memref<8x2x128xf32, #tpu.memory_space<vmem>>, vector<1x2x128xf32>
    %221 = vector.shape_cast %220 : vector<1x2x128xf32> to vector<2x128xf32>
    %222 = vector.shape_cast %218 : vector<2x128xf32> to vector<1x2x128xf32>
    tpu.vector_store %arg14[%219, %c0_54, %c0_55], %222 {strides = array<i32>} : memref<8x2x128xf32, #tpu.memory_space<vmem>>, vector<1x2x128xf32>,
    %c6_i32 = arith.constant 6 : i32
    %223 = arith.index_cast %c6_i32 : i32 to index
    %c0_56 = arith.constant 0 : index
    %c0_57 = arith.constant 0 : index
    %224 = vector.load %arg1[%223, %c0_56, %c0_57] : memref<8x2x384xf32, #tpu.memory_space<vmem>>, vector<1x2x384xf32>
    %225 = vector.shape_cast %224 : vector<1x2x384xf32> to vector<2x384xf32>
    %cst_58 = arith.constant dense<0.000000e+00> : vector<2x384xf32>
    %226 = tpu.matmul %218, %3, %cst_58 {dimension_numbers = #tpu.dot_dimension_numbers<[1], [0], [0], [1], [0, 0, 1, 1], [], []>} : vector<2x128xf32>, vector<128x384xf32>, vector<2x384xf32> -> vector<2x384xf32>
    %227 = vector.extract_strided_slice %225 {offsets = [0, 0], sizes = [2, 128], strides = [1, 1]} : vector<2x384xf32> to vector<2x128xf32>
    %228 = vector.extract_strided_slice %226 {offsets = [0, 0], sizes = [2, 128], strides = [1, 1]} : vector<2x384xf32> to vector<2x128xf32>
    %229 = arith.addf %227, %228 : vector<2x128xf32>
    %230 = arith.negf %229 : vector<2x128xf32>
    %231 = math.exp %230 : vector<2x128xf32>
    %cst_59 = arith.constant 1.000000e+00 : f32
    %232 = vector.broadcast %cst_59 : f32 to vector<2x128xf32>
    %233 = arith.addf %232, %231 : vector<2x128xf32>
    %234 = arith.divf %232, %233 : vector<2x128xf32>
    %235 = vector.extract_strided_slice %225 {offsets = [0, 128], sizes = [2, 128], strides = [1, 1]} : vector<2x384xf32> to vector<2x128xf32>
    %236 = vector.extract_strided_slice %226 {offsets = [0, 128], sizes = [2, 128], strides = [1, 1]} : vector<2x384xf32> to vector<2x128xf32>
    %237 = arith.addf %235, %236 : vector<2x128xf32>
    %238 = arith.negf %237 : vector<2x128xf32>
    %239 = math.exp %238 : vector<2x128xf32>
    %cst_60 = arith.constant 1.000000e+00 : f32
    %240 = vector.broadcast %cst_60 : f32 to vector<2x128xf32>
    %241 = arith.addf %240, %239 : vector<2x128xf32>
    %242 = arith.divf %240, %241 : vector<2x128xf32>
    %243 = vector.extract_strided_slice %225 {offsets = [0, 256], sizes = [2, 128], strides = [1, 1]} : vector<2x384xf32> to vector<2x128xf32>
    %244 = vector.extract_strided_slice %226 {offsets = [0, 256], sizes = [2, 128], strides = [1, 1]} : vector<2x384xf32> to vector<2x128xf32>
    %245 = vector.broadcast %4 : vector<1x128xf32> to vector<2x128xf32>
    %246 = arith.addf %244, %245 : vector<2x128xf32>
    %247 = arith.mulf %234, %246 : vector<2x128xf32>
    %248 = arith.addf %243, %247 : vector<2x128xf32>
    %249 = math.tanh %248 : vector<2x128xf32>
    %cst_61 = arith.constant 1.000000e+00 : f32
    %250 = vector.broadcast %cst_61 : f32 to vector<2x128xf32>
    %251 = arith.subf %250, %242 : vector<2x128xf32>
    %252 = arith.mulf %251, %249 : vector<2x128xf32>
    %253 = arith.mulf %242, %218 : vector<2x128xf32>
    %254 = arith.addf %252, %253 : vector<2x128xf32>
    %255 = arith.index_cast %c6_i32 : i32 to index
    %c0_62 = arith.constant 0 : index
    %c0_63 = arith.constant 0 : index
    %256 = vector.load %arg14[%255, %c0_62, %c0_63] : memref<8x2x128xf32, #tpu.memory_space<vmem>>, vector<1x2x128xf32>
    %257 = vector.shape_cast %256 : vector<1x2x128xf32> to vector<2x128xf32>
    %258 = vector.shape_cast %254 : vector<2x128xf32> to vector<1x2x128xf32>
    tpu.vector_store %arg14[%255, %c0_62, %c0_63], %258 {strides = array<i32>} : memref<8x2x128xf32, #tpu.memory_space<vmem>>, vector<1x2x128xf32>,
    %c7_i32 = arith.constant 7 : i32
    %259 = arith.index_cast %c7_i32 : i32 to index
    %c0_64 = arith.constant 0 : index
    %c0_65 = arith.constant 0 : index
    %260 = vector.load %arg1[%259, %c0_64, %c0_65] : memref<8x2x384xf32, #tpu.memory_space<vmem>>, vector<1x2x384xf32>
    %261 = vector.shape_cast %260 : vector<1x2x384xf32> to vector<2x384xf32>
    %cst_66 = arith.constant dense<0.000000e+00> : vector<2x384xf32>
    %262 = tpu.matmul %254, %3, %cst_66 {dimension_numbers = #tpu.dot_dimension_numbers<[1], [0], [0], [1], [0, 0, 1, 1], [], []>} : vector<2x128xf32>, vector<128x384xf32>, vector<2x384xf32> -> vector<2x384xf32>
    %263 = vector.extract_strided_slice %261 {offsets = [0, 0], sizes = [2, 128], strides = [1, 1]} : vector<2x384xf32> to vector<2x128xf32>
    %264 = vector.extract_strided_slice %262 {offsets = [0, 0], sizes = [2, 128], strides = [1, 1]} : vector<2x384xf32> to vector<2x128xf32>
    %265 = arith.addf %263, %264 : vector<2x128xf32>
    %266 = arith.negf %265 : vector<2x128xf32>
    %267 = math.exp %266 : vector<2x128xf32>
    %cst_67 = arith.constant 1.000000e+00 : f32
    %268 = vector.broadcast %cst_67 : f32 to vector<2x128xf32>
    %269 = arith.addf %268, %267 : vector<2x128xf32>
    %270 = arith.divf %268, %269 : vector<2x128xf32>
    %271 = vector.extract_strided_slice %261 {offsets = [0, 128], sizes = [2, 128], strides = [1, 1]} : vector<2x384xf32> to vector<2x128xf32>
    %272 = vector.extract_strided_slice %262 {offsets = [0, 128], sizes = [2, 128], strides = [1, 1]} : vector<2x384xf32> to vector<2x128xf32>
    %273 = arith.addf %271, %272 : vector<2x128xf32>
    %274 = arith.negf %273 : vector<2x128xf32>
    %275 = math.exp %274 : vector<2x128xf32>
    %cst_68 = arith.constant 1.000000e+00 : f32
    %276 = vector.broadcast %cst_68 : f32 to vector<2x128xf32>
    %277 = arith.addf %276, %275 : vector<2x128xf32>
    %278 = arith.divf %276, %277 : vector<2x128xf32>
    %279 = vector.extract_strided_slice %261 {offsets = [0, 256], sizes = [2, 128], strides = [1, 1]} : vector<2x384xf32> to vector<2x128xf32>
    %280 = vector.extract_strided_slice %262 {offsets = [0, 256], sizes = [2, 128], strides = [1, 1]} : vector<2x384xf32> to vector<2x128xf32>
    %281 = vector.broadcast %4 : vector<1x128xf32> to vector<2x128xf32>
    %282 = arith.addf %280, %281 : vector<2x128xf32>
    %283 = arith.mulf %270, %282 : vector<2x128xf32>
    %284 = arith.addf %279, %283 : vector<2x128xf32>
    %285 = math.tanh %284 : vector<2x128xf32>
    %cst_69 = arith.constant 1.000000e+00 : f32
    %286 = vector.broadcast %cst_69 : f32 to vector<2x128xf32>
    %287 = arith.subf %286, %278 : vector<2x128xf32>
    %288 = arith.mulf %287, %285 : vector<2x128xf32>
    %289 = arith.mulf %278, %254 : vector<2x128xf32>
    %290 = arith.addf %288, %289 : vector<2x128xf32>
    %291 = arith.index_cast %c7_i32 : i32 to index
    %c0_70 = arith.constant 0 : index
    %c0_71 = arith.constant 0 : index
    %292 = vector.load %arg14[%291, %c0_70, %c0_71] : memref<8x2x128xf32, #tpu.memory_space<vmem>>, vector<1x2x128xf32>
    %293 = vector.shape_cast %292 : vector<1x2x128xf32> to vector<2x128xf32>
    %294 = vector.shape_cast %290 : vector<2x128xf32> to vector<1x2x128xf32>
    tpu.vector_store %arg14[%291, %c0_70, %c0_71], %294 {strides = array<i32>} : memref<8x2x128xf32, #tpu.memory_space<vmem>>, vector<1x2x128xf32>,
    %c8_i32 = arith.constant 8 : i32
    %c0_72 = arith.constant 0 : index
    %c0_73 = arith.constant 0 : index
    %295 = vector.load %arg5[%c0_72, %c0_73] : memref<128x384xf32, #tpu.memory_space<vmem>>, vector<128x384xf32>
    %c0_74 = arith.constant 0 : index
    %c0_75 = arith.constant 0 : index
    %296 = vector.load %arg6[%c0_74, %c0_75] : memref<1x128xf32, #tpu.memory_space<vmem>>, vector<1x128xf32>
    %c0_76 = arith.constant 0 : index
    %c0_77 = arith.constant 0 : index
    %297 = vector.load %arg7[%c0_76, %c0_77] : memref<128x384xf32, #tpu.memory_space<vmem>>, vector<128x384xf32>
    %c0_78 = arith.constant 0 : index
    %c0_79 = arith.constant 0 : index
    %298 = vector.load %arg8[%c0_78, %c0_79] : memref<1x384xf32, #tpu.memory_space<vmem>>, vector<1x384xf32>
    %c0_i32_80 = arith.constant 0 : i32
    %299 = arith.index_cast %c0_i32_80 : i32 to index
    %c0_81 = arith.constant 0 : index
    %c0_82 = arith.constant 0 : index
    %300 = vector.load %arg14[%299, %c0_81, %c0_82] : memref<8x2x128xf32, #tpu.memory_space<vmem>>, vector<1x2x128xf32>
    %301 = vector.shape_cast %300 : vector<1x2x128xf32> to vector<2x128xf32>
    %cst_83 = arith.constant dense<0.000000e+00> : vector<2x384xf32>
    %302 = tpu.matmul %301, %297, %cst_83 {dimension_numbers = #tpu.dot_dimension_numbers<[1], [0], [0], [1], [0, 0, 1, 1], [], []>} : vector<2x128xf32>, vector<128x384xf32>, vector<2x384xf32> -> vector<2x384xf32>
    %303 = vector.broadcast %298 : vector<1x384xf32> to vector<2x384xf32>
    %304 = arith.addf %302, %303 : vector<2x384xf32>
    %305 = arith.index_cast %c0_i32_80 : i32 to index
    %c0_84 = arith.constant 0 : index
    %c0_85 = arith.constant 0 : index
    %306 = vector.load %arg15[%305, %c0_84, %c0_85] : memref<8x2x384xf32, #tpu.memory_space<vmem>>, vector<1x2x384xf32>
    %307 = vector.shape_cast %306 : vector<1x2x384xf32> to vector<2x384xf32>
    %308 = vector.shape_cast %304 : vector<2x384xf32> to vector<1x2x384xf32>
    tpu.vector_store %arg15[%305, %c0_84, %c0_85], %308 {strides = array<i32>} : memref<8x2x384xf32, #tpu.memory_space<vmem>>, vector<1x2x384xf32>,
    %c1_i32_86 = arith.constant 1 : i32
    %309 = arith.index_cast %c1_i32_86 : i32 to index
    %c0_87 = arith.constant 0 : index
    %c0_88 = arith.constant 0 : index
    %310 = vector.load %arg14[%309, %c0_87, %c0_88] : memref<8x2x128xf32, #tpu.memory_space<vmem>>, vector<1x2x128xf32>
    %311 = vector.shape_cast %310 : vector<1x2x128xf32> to vector<2x128xf32>
    %cst_89 = arith.constant dense<0.000000e+00> : vector<2x384xf32>
    %312 = tpu.matmul %311, %297, %cst_89 {dimension_numbers = #tpu.dot_dimension_numbers<[1], [0], [0], [1], [0, 0, 1, 1], [], []>} : vector<2x128xf32>, vector<128x384xf32>, vector<2x384xf32> -> vector<2x384xf32>
    %313 = vector.broadcast %298 : vector<1x384xf32> to vector<2x384xf32>
    %314 = arith.addf %312, %313 : vector<2x384xf32>
    %315 = arith.index_cast %c1_i32_86 : i32 to index
    %c0_90 = arith.constant 0 : index
    %c0_91 = arith.constant 0 : index
    %316 = vector.load %arg15[%315, %c0_90, %c0_91] : memref<8x2x384xf32, #tpu.memory_space<vmem>>, vector<1x2x384xf32>
    %317 = vector.shape_cast %316 : vector<1x2x384xf32> to vector<2x384xf32>
    %318 = vector.shape_cast %314 : vector<2x384xf32> to vector<1x2x384xf32>
    tpu.vector_store %arg15[%315, %c0_90, %c0_91], %318 {strides = array<i32>} : memref<8x2x384xf32, #tpu.memory_space<vmem>>, vector<1x2x384xf32>,
    %c2_i32_92 = arith.constant 2 : i32
    %319 = arith.index_cast %c2_i32_92 : i32 to index
    %c0_93 = arith.constant 0 : index
    %c0_94 = arith.constant 0 : index
    %320 = vector.load %arg14[%319, %c0_93, %c0_94] : memref<8x2x128xf32, #tpu.memory_space<vmem>>, vector<1x2x128xf32>
    %321 = vector.shape_cast %320 : vector<1x2x128xf32> to vector<2x128xf32>
    %cst_95 = arith.constant dense<0.000000e+00> : vector<2x384xf32>
    %322 = tpu.matmul %321, %297, %cst_95 {dimension_numbers = #tpu.dot_dimension_numbers<[1], [0], [0], [1], [0, 0, 1, 1], [], []>} : vector<2x128xf32>, vector<128x384xf32>, vector<2x384xf32> -> vector<2x384xf32>
    %323 = vector.broadcast %298 : vector<1x384xf32> to vector<2x384xf32>
    %324 = arith.addf %322, %323 : vector<2x384xf32>
    %325 = arith.index_cast %c2_i32_92 : i32 to index
    %c0_96 = arith.constant 0 : index
    %c0_97 = arith.constant 0 : index
    %326 = vector.load %arg15[%325, %c0_96, %c0_97] : memref<8x2x384xf32, #tpu.memory_space<vmem>>, vector<1x2x384xf32>
    %327 = vector.shape_cast %326 : vector<1x2x384xf32> to vector<2x384xf32>
    %328 = vector.shape_cast %324 : vector<2x384xf32> to vector<1x2x384xf32>
    tpu.vector_store %arg15[%325, %c0_96, %c0_97], %328 {strides = array<i32>} : memref<8x2x384xf32, #tpu.memory_space<vmem>>, vector<1x2x384xf32>,
    %c3_i32_98 = arith.constant 3 : i32
    %329 = arith.index_cast %c3_i32_98 : i32 to index
    %c0_99 = arith.constant 0 : index
    %c0_100 = arith.constant 0 : index
    %330 = vector.load %arg14[%329, %c0_99, %c0_100] : memref<8x2x128xf32, #tpu.memory_space<vmem>>, vector<1x2x128xf32>
    %331 = vector.shape_cast %330 : vector<1x2x128xf32> to vector<2x128xf32>
    %cst_101 = arith.constant dense<0.000000e+00> : vector<2x384xf32>
    %332 = tpu.matmul %331, %297, %cst_101 {dimension_numbers = #tpu.dot_dimension_numbers<[1], [0], [0], [1], [0, 0, 1, 1], [], []>} : vector<2x128xf32>, vector<128x384xf32>, vector<2x384xf32> -> vector<2x384xf32>
    %333 = vector.broadcast %298 : vector<1x384xf32> to vector<2x384xf32>
    %334 = arith.addf %332, %333 : vector<2x384xf32>
    %335 = arith.index_cast %c3_i32_98 : i32 to index
    %c0_102 = arith.constant 0 : index
    %c0_103 = arith.constant 0 : index
    %336 = vector.load %arg15[%335, %c0_102, %c0_103] : memref<8x2x384xf32, #tpu.memory_space<vmem>>, vector<1x2x384xf32>
    %337 = vector.shape_cast %336 : vector<1x2x384xf32> to vector<2x384xf32>
    %338 = vector.shape_cast %334 : vector<2x384xf32> to vector<1x2x384xf32>
    tpu.vector_store %arg15[%335, %c0_102, %c0_103], %338 {strides = array<i32>} : memref<8x2x384xf32, #tpu.memory_space<vmem>>, vector<1x2x384xf32>,
    %c4_i32_104 = arith.constant 4 : i32
    %339 = arith.index_cast %c4_i32_104 : i32 to index
    %c0_105 = arith.constant 0 : index
    %c0_106 = arith.constant 0 : index
    %340 = vector.load %arg14[%339, %c0_105, %c0_106] : memref<8x2x128xf32, #tpu.memory_space<vmem>>, vector<1x2x128xf32>
    %341 = vector.shape_cast %340 : vector<1x2x128xf32> to vector<2x128xf32>
    %cst_107 = arith.constant dense<0.000000e+00> : vector<2x384xf32>
    %342 = tpu.matmul %341, %297, %cst_107 {dimension_numbers = #tpu.dot_dimension_numbers<[1], [0], [0], [1], [0, 0, 1, 1], [], []>} : vector<2x128xf32>, vector<128x384xf32>, vector<2x384xf32> -> vector<2x384xf32>
    %343 = vector.broadcast %298 : vector<1x384xf32> to vector<2x384xf32>
    %344 = arith.addf %342, %343 : vector<2x384xf32>
    %345 = arith.index_cast %c4_i32_104 : i32 to index
    %c0_108 = arith.constant 0 : index
    %c0_109 = arith.constant 0 : index
    %346 = vector.load %arg15[%345, %c0_108, %c0_109] : memref<8x2x384xf32, #tpu.memory_space<vmem>>, vector<1x2x384xf32>
    %347 = vector.shape_cast %346 : vector<1x2x384xf32> to vector<2x384xf32>
    %348 = vector.shape_cast %344 : vector<2x384xf32> to vector<1x2x384xf32>
    tpu.vector_store %arg15[%345, %c0_108, %c0_109], %348 {strides = array<i32>} : memref<8x2x384xf32, #tpu.memory_space<vmem>>, vector<1x2x384xf32>,
    %c5_i32_110 = arith.constant 5 : i32
    %349 = arith.index_cast %c5_i32_110 : i32 to index
    %c0_111 = arith.constant 0 : index
    %c0_112 = arith.constant 0 : index
    %350 = vector.load %arg14[%349, %c0_111, %c0_112] : memref<8x2x128xf32, #tpu.memory_space<vmem>>, vector<1x2x128xf32>
    %351 = vector.shape_cast %350 : vector<1x2x128xf32> to vector<2x128xf32>
    %cst_113 = arith.constant dense<0.000000e+00> : vector<2x384xf32>
    %352 = tpu.matmul %351, %297, %cst_113 {dimension_numbers = #tpu.dot_dimension_numbers<[1], [0], [0], [1], [0, 0, 1, 1], [], []>} : vector<2x128xf32>, vector<128x384xf32>, vector<2x384xf32> -> vector<2x384xf32>
    %353 = vector.broadcast %298 : vector<1x384xf32> to vector<2x384xf32>
    %354 = arith.addf %352, %353 : vector<2x384xf32>
    %355 = arith.index_cast %c5_i32_110 : i32 to index
    %c0_114 = arith.constant 0 : index
    %c0_115 = arith.constant 0 : index
    %356 = vector.load %arg15[%355, %c0_114, %c0_115] : memref<8x2x384xf32, #tpu.memory_space<vmem>>, vector<1x2x384xf32>
    %357 = vector.shape_cast %356 : vector<1x2x384xf32> to vector<2x384xf32>
    %358 = vector.shape_cast %354 : vector<2x384xf32> to vector<1x2x384xf32>
    tpu.vector_store %arg15[%355, %c0_114, %c0_115], %358 {strides = array<i32>} : memref<8x2x384xf32, #tpu.memory_space<vmem>>, vector<1x2x384xf32>,
    %c6_i32_116 = arith.constant 6 : i32
    %359 = arith.index_cast %c6_i32_116 : i32 to index
    %c0_117 = arith.constant 0 : index
    %c0_118 = arith.constant 0 : index
    %360 = vector.load %arg14[%359, %c0_117, %c0_118] : memref<8x2x128xf32, #tpu.memory_space<vmem>>, vector<1x2x128xf32>
    %361 = vector.shape_cast %360 : vector<1x2x128xf32> to vector<2x128xf32>
    %cst_119 = arith.constant dense<0.000000e+00> : vector<2x384xf32>
    %362 = tpu.matmul %361, %297, %cst_119 {dimension_numbers = #tpu.dot_dimension_numbers<[1], [0], [0], [1], [0, 0, 1, 1], [], []>} : vector<2x128xf32>, vector<128x384xf32>, vector<2x384xf32> -> vector<2x384xf32>
    %363 = vector.broadcast %298 : vector<1x384xf32> to vector<2x384xf32>
    %364 = arith.addf %362, %363 : vector<2x384xf32>
    %365 = arith.index_cast %c6_i32_116 : i32 to index
    %c0_120 = arith.constant 0 : index
    %c0_121 = arith.constant 0 : index
    %366 = vector.load %arg15[%365, %c0_120, %c0_121] : memref<8x2x384xf32, #tpu.memory_space<vmem>>, vector<1x2x384xf32>
    %367 = vector.shape_cast %366 : vector<1x2x384xf32> to vector<2x384xf32>
    %368 = vector.shape_cast %364 : vector<2x384xf32> to vector<1x2x384xf32>
    tpu.vector_store %arg15[%365, %c0_120, %c0_121], %368 {strides = array<i32>} : memref<8x2x384xf32, #tpu.memory_space<vmem>>, vector<1x2x384xf32>,
    %c7_i32_122 = arith.constant 7 : i32
    %369 = arith.index_cast %c7_i32_122 : i32 to index
    %c0_123 = arith.constant 0 : index
    %c0_124 = arith.constant 0 : index
    %370 = vector.load %arg14[%369, %c0_123, %c0_124] : memref<8x2x128xf32, #tpu.memory_space<vmem>>, vector<1x2x128xf32>
    %371 = vector.shape_cast %370 : vector<1x2x128xf32> to vector<2x128xf32>
    %cst_125 = arith.constant dense<0.000000e+00> : vector<2x384xf32>
    %372 = tpu.matmul %371, %297, %cst_125 {dimension_numbers = #tpu.dot_dimension_numbers<[1], [0], [0], [1], [0, 0, 1, 1], [], []>} : vector<2x128xf32>, vector<128x384xf32>, vector<2x384xf32> -> vector<2x384xf32>
    %373 = vector.broadcast %298 : vector<1x384xf32> to vector<2x384xf32>
    %374 = arith.addf %372, %373 : vector<2x384xf32>
    %375 = arith.index_cast %c7_i32_122 : i32 to index
    %c0_126 = arith.constant 0 : index
    %c0_127 = arith.constant 0 : index
    %376 = vector.load %arg15[%375, %c0_126, %c0_127] : memref<8x2x384xf32, #tpu.memory_space<vmem>>, vector<1x2x384xf32>
    %377 = vector.shape_cast %376 : vector<1x2x384xf32> to vector<2x384xf32>
    %378 = vector.shape_cast %374 : vector<2x384xf32> to vector<1x2x384xf32>
    tpu.vector_store %arg15[%375, %c0_126, %c0_127], %378 {strides = array<i32>} : memref<8x2x384xf32, #tpu.memory_space<vmem>>, vector<1x2x384xf32>,
    %c8_i32_128 = arith.constant 8 : i32
    %c1 = arith.constant 1 : index
    %c0_129 = arith.constant 0 : index
    %c0_130 = arith.constant 0 : index
    %379 = vector.load %arg2[%c1, %c0_129, %c0_130] : memref<2x2x128xf32, #tpu.memory_space<vmem>>, vector<1x2x128xf32>
    %380 = vector.shape_cast %379 : vector<1x2x128xf32> to vector<2x128xf32>
    %cst_131 = arith.constant 0.000000e+00 : f32
    %381 = vector.broadcast %cst_131 : f32 to vector<2x128xf32>
    %c0_i32_132 = arith.constant 0 : i32
    %382 = arith.index_cast %c0_i32_132 : i32 to index
    %c0_133 = arith.constant 0 : index
    %c0_134 = arith.constant 0 : index
    %383 = vector.load %arg15[%382, %c0_133, %c0_134] : memref<8x2x384xf32, #tpu.memory_space<vmem>>, vector<1x2x384xf32>
    %384 = vector.shape_cast %383 : vector<1x2x384xf32> to vector<2x384xf32>
    %cst_135 = arith.constant dense<0.000000e+00> : vector<2x384xf32>
    %385 = tpu.matmul %380, %295, %cst_135 {dimension_numbers = #tpu.dot_dimension_numbers<[1], [0], [0], [1], [0, 0, 1, 1], [], []>} : vector<2x128xf32>, vector<128x384xf32>, vector<2x384xf32> -> vector<2x384xf32>
    %386 = vector.extract_strided_slice %384 {offsets = [0, 0], sizes = [2, 128], strides = [1, 1]} : vector<2x384xf32> to vector<2x128xf32>
    %387 = vector.extract_strided_slice %385 {offsets = [0, 0], sizes = [2, 128], strides = [1, 1]} : vector<2x384xf32> to vector<2x128xf32>
    %388 = arith.addf %386, %387 : vector<2x128xf32>
    %389 = arith.negf %388 : vector<2x128xf32>
    %390 = math.exp %389 : vector<2x128xf32>
    %cst_136 = arith.constant 1.000000e+00 : f32
    %391 = vector.broadcast %cst_136 : f32 to vector<2x128xf32>
    %392 = arith.addf %391, %390 : vector<2x128xf32>
    %393 = arith.divf %391, %392 : vector<2x128xf32>
    %394 = vector.extract_strided_slice %384 {offsets = [0, 128], sizes = [2, 128], strides = [1, 1]} : vector<2x384xf32> to vector<2x128xf32>
    %395 = vector.extract_strided_slice %385 {offsets = [0, 128], sizes = [2, 128], strides = [1, 1]} : vector<2x384xf32> to vector<2x128xf32>
    %396 = arith.addf %394, %395 : vector<2x128xf32>
    %397 = arith.negf %396 : vector<2x128xf32>
    %398 = math.exp %397 : vector<2x128xf32>
    %cst_137 = arith.constant 1.000000e+00 : f32
    %399 = vector.broadcast %cst_137 : f32 to vector<2x128xf32>
    %400 = arith.addf %399, %398 : vector<2x128xf32>
    %401 = arith.divf %399, %400 : vector<2x128xf32>
    %402 = vector.extract_strided_slice %384 {offsets = [0, 256], sizes = [2, 128], strides = [1, 1]} : vector<2x384xf32> to vector<2x128xf32>
    %403 = vector.extract_strided_slice %385 {offsets = [0, 256], sizes = [2, 128], strides = [1, 1]} : vector<2x384xf32> to vector<2x128xf32>
    %404 = vector.broadcast %296 : vector<1x128xf32> to vector<2x128xf32>
    %405 = arith.addf %403, %404 : vector<2x128xf32>
    %406 = arith.mulf %393, %405 : vector<2x128xf32>
    %407 = arith.addf %402, %406 : vector<2x128xf32>
    %408 = math.tanh %407 : vector<2x128xf32>
    %cst_138 = arith.constant 1.000000e+00 : f32
    %409 = vector.broadcast %cst_138 : f32 to vector<2x128xf32>
    %410 = arith.subf %409, %401 : vector<2x128xf32>
    %411 = arith.mulf %410, %408 : vector<2x128xf32>
    %412 = arith.mulf %401, %380 : vector<2x128xf32>
    %413 = arith.addf %411, %412 : vector<2x128xf32>
    %414 = vector.broadcast %c0_i32_132 : i32 to vector<2x1xi32>
    %415 = arith.cmpi eq, %414, %2 : vector<2x1xi32>
    %416 = vector.shape_cast %415 : vector<2x1xi1> to vector<2x1xi1>
    %417 = vector.broadcast %416 : vector<2x1xi1> to vector<2x128xi1>
    %418 = arith.select %417, %413, %381 : vector<2x128xi1>, vector<2x128xf32>
    %c1_i32_139 = arith.constant 1 : i32
    %419 = arith.index_cast %c1_i32_139 : i32 to index
    %c0_140 = arith.constant 0 : index
    %c0_141 = arith.constant 0 : index
    %420 = vector.load %arg15[%419, %c0_140, %c0_141] : memref<8x2x384xf32, #tpu.memory_space<vmem>>, vector<1x2x384xf32>
    %421 = vector.shape_cast %420 : vector<1x2x384xf32> to vector<2x384xf32>
    %cst_142 = arith.constant dense<0.000000e+00> : vector<2x384xf32>
    %422 = tpu.matmul %413, %295, %cst_142 {dimension_numbers = #tpu.dot_dimension_numbers<[1], [0], [0], [1], [0, 0, 1, 1], [], []>} : vector<2x128xf32>, vector<128x384xf32>, vector<2x384xf32> -> vector<2x384xf32>
    %423 = vector.extract_strided_slice %421 {offsets = [0, 0], sizes = [2, 128], strides = [1, 1]} : vector<2x384xf32> to vector<2x128xf32>
    %424 = vector.extract_strided_slice %422 {offsets = [0, 0], sizes = [2, 128], strides = [1, 1]} : vector<2x384xf32> to vector<2x128xf32>
    %425 = arith.addf %423, %424 : vector<2x128xf32>
    %426 = arith.negf %425 : vector<2x128xf32>
    %427 = math.exp %426 : vector<2x128xf32>
    %cst_143 = arith.constant 1.000000e+00 : f32
    %428 = vector.broadcast %cst_143 : f32 to vector<2x128xf32>
    %429 = arith.addf %428, %427 : vector<2x128xf32>
    %430 = arith.divf %428, %429 : vector<2x128xf32>
    %431 = vector.extract_strided_slice %421 {offsets = [0, 128], sizes = [2, 128], strides = [1, 1]} : vector<2x384xf32> to vector<2x128xf32>
    %432 = vector.extract_strided_slice %422 {offsets = [0, 128], sizes = [2, 128], strides = [1, 1]} : vector<2x384xf32> to vector<2x128xf32>
    %433 = arith.addf %431, %432 : vector<2x128xf32>
    %434 = arith.negf %433 : vector<2x128xf32>
    %435 = math.exp %434 : vector<2x128xf32>
    %cst_144 = arith.constant 1.000000e+00 : f32
    %436 = vector.broadcast %cst_144 : f32 to vector<2x128xf32>
    %437 = arith.addf %436, %435 : vector<2x128xf32>
    %438 = arith.divf %436, %437 : vector<2x128xf32>
    %439 = vector.extract_strided_slice %421 {offsets = [0, 256], sizes = [2, 128], strides = [1, 1]} : vector<2x384xf32> to vector<2x128xf32>
    %440 = vector.extract_strided_slice %422 {offsets = [0, 256], sizes = [2, 128], strides = [1, 1]} : vector<2x384xf32> to vector<2x128xf32>
    %441 = vector.broadcast %296 : vector<1x128xf32> to vector<2x128xf32>
    %442 = arith.addf %440, %441 : vector<2x128xf32>
    %443 = arith.mulf %430, %442 : vector<2x128xf32>
    %444 = arith.addf %439, %443 : vector<2x128xf32>
    %445 = math.tanh %444 : vector<2x128xf32>
    %cst_145 = arith.constant 1.000000e+00 : f32
    %446 = vector.broadcast %cst_145 : f32 to vector<2x128xf32>
    %447 = arith.subf %446, %438 : vector<2x128xf32>
    %448 = arith.mulf %447, %445 : vector<2x128xf32>
    %449 = arith.mulf %438, %413 : vector<2x128xf32>
    %450 = arith.addf %448, %449 : vector<2x128xf32>
    %451 = vector.broadcast %c1_i32_139 : i32 to vector<2x1xi32>
    %452 = arith.cmpi eq, %451, %2 : vector<2x1xi32>
    %453 = vector.shape_cast %452 : vector<2x1xi1> to vector<2x1xi1>
    %454 = vector.broadcast %453 : vector<2x1xi1> to vector<2x128xi1>
    %455 = arith.select %454, %450, %418 : vector<2x128xi1>, vector<2x128xf32>
    %c2_i32_146 = arith.constant 2 : i32
    %456 = arith.index_cast %c2_i32_146 : i32 to index
    %c0_147 = arith.constant 0 : index
    %c0_148 = arith.constant 0 : index
    %457 = vector.load %arg15[%456, %c0_147, %c0_148] : memref<8x2x384xf32, #tpu.memory_space<vmem>>, vector<1x2x384xf32>
    %458 = vector.shape_cast %457 : vector<1x2x384xf32> to vector<2x384xf32>
    %cst_149 = arith.constant dense<0.000000e+00> : vector<2x384xf32>
    %459 = tpu.matmul %450, %295, %cst_149 {dimension_numbers = #tpu.dot_dimension_numbers<[1], [0], [0], [1], [0, 0, 1, 1], [], []>} : vector<2x128xf32>, vector<128x384xf32>, vector<2x384xf32> -> vector<2x384xf32>
    %460 = vector.extract_strided_slice %458 {offsets = [0, 0], sizes = [2, 128], strides = [1, 1]} : vector<2x384xf32> to vector<2x128xf32>
    %461 = vector.extract_strided_slice %459 {offsets = [0, 0], sizes = [2, 128], strides = [1, 1]} : vector<2x384xf32> to vector<2x128xf32>
    %462 = arith.addf %460, %461 : vector<2x128xf32>
    %463 = arith.negf %462 : vector<2x128xf32>
    %464 = math.exp %463 : vector<2x128xf32>
    %cst_150 = arith.constant 1.000000e+00 : f32
    %465 = vector.broadcast %cst_150 : f32 to vector<2x128xf32>
    %466 = arith.addf %465, %464 : vector<2x128xf32>
    %467 = arith.divf %465, %466 : vector<2x128xf32>
    %468 = vector.extract_strided_slice %458 {offsets = [0, 128], sizes = [2, 128], strides = [1, 1]} : vector<2x384xf32> to vector<2x128xf32>
    %469 = vector.extract_strided_slice %459 {offsets = [0, 128], sizes = [2, 128], strides = [1, 1]} : vector<2x384xf32> to vector<2x128xf32>
    %470 = arith.addf %468, %469 : vector<2x128xf32>
    %471 = arith.negf %470 : vector<2x128xf32>
    %472 = math.exp %471 : vector<2x128xf32>
    %cst_151 = arith.constant 1.000000e+00 : f32
    %473 = vector.broadcast %cst_151 : f32 to vector<2x128xf32>
    %474 = arith.addf %473, %472 : vector<2x128xf32>
    %475 = arith.divf %473, %474 : vector<2x128xf32>
    %476 = vector.extract_strided_slice %458 {offsets = [0, 256], sizes = [2, 128], strides = [1, 1]} : vector<2x384xf32> to vector<2x128xf32>
    %477 = vector.extract_strided_slice %459 {offsets = [0, 256], sizes = [2, 128], strides = [1, 1]} : vector<2x384xf32> to vector<2x128xf32>
    %478 = vector.broadcast %296 : vector<1x128xf32> to vector<2x128xf32>
    %479 = arith.addf %477, %478 : vector<2x128xf32>
    %480 = arith.mulf %467, %479 : vector<2x128xf32>
    %481 = arith.addf %476, %480 : vector<2x128xf32>
    %482 = math.tanh %481 : vector<2x128xf32>
    %cst_152 = arith.constant 1.000000e+00 : f32
    %483 = vector.broadcast %cst_152 : f32 to vector<2x128xf32>
    %484 = arith.subf %483, %475 : vector<2x128xf32>
    %485 = arith.mulf %484, %482 : vector<2x128xf32>
    %486 = arith.mulf %475, %450 : vector<2x128xf32>
    %487 = arith.addf %485, %486 : vector<2x128xf32>
    %488 = vector.broadcast %c2_i32_146 : i32 to vector<2x1xi32>
    %489 = arith.cmpi eq, %488, %2 : vector<2x1xi32>
    %490 = vector.shape_cast %489 : vector<2x1xi1> to vector<2x1xi1>
    %491 = vector.broadcast %490 : vector<2x1xi1> to vector<2x128xi1>
    %492 = arith.select %491, %487, %455 : vector<2x128xi1>, vector<2x128xf32>
    %c3_i32_153 = arith.constant 3 : i32
    %493 = arith.index_cast %c3_i32_153 : i32 to index
    %c0_154 = arith.constant 0 : index
    %c0_155 = arith.constant 0 : index
    %494 = vector.load %arg15[%493, %c0_154, %c0_155] : memref<8x2x384xf32, #tpu.memory_space<vmem>>, vector<1x2x384xf32>
    %495 = vector.shape_cast %494 : vector<1x2x384xf32> to vector<2x384xf32>
    %cst_156 = arith.constant dense<0.000000e+00> : vector<2x384xf32>
    %496 = tpu.matmul %487, %295, %cst_156 {dimension_numbers = #tpu.dot_dimension_numbers<[1], [0], [0], [1], [0, 0, 1, 1], [], []>} : vector<2x128xf32>, vector<128x384xf32>, vector<2x384xf32> -> vector<2x384xf32>
    %497 = vector.extract_strided_slice %495 {offsets = [0, 0], sizes = [2, 128], strides = [1, 1]} : vector<2x384xf32> to vector<2x128xf32>
    %498 = vector.extract_strided_slice %496 {offsets = [0, 0], sizes = [2, 128], strides = [1, 1]} : vector<2x384xf32> to vector<2x128xf32>
    %499 = arith.addf %497, %498 : vector<2x128xf32>
    %500 = arith.negf %499 : vector<2x128xf32>
    %501 = math.exp %500 : vector<2x128xf32>
    %cst_157 = arith.constant 1.000000e+00 : f32
    %502 = vector.broadcast %cst_157 : f32 to vector<2x128xf32>
    %503 = arith.addf %502, %501 : vector<2x128xf32>
    %504 = arith.divf %502, %503 : vector<2x128xf32>
    %505 = vector.extract_strided_slice %495 {offsets = [0, 128], sizes = [2, 128], strides = [1, 1]} : vector<2x384xf32> to vector<2x128xf32>
    %506 = vector.extract_strided_slice %496 {offsets = [0, 128], sizes = [2, 128], strides = [1, 1]} : vector<2x384xf32> to vector<2x128xf32>
    %507 = arith.addf %505, %506 : vector<2x128xf32>
    %508 = arith.negf %507 : vector<2x128xf32>
    %509 = math.exp %508 : vector<2x128xf32>
    %cst_158 = arith.constant 1.000000e+00 : f32
    %510 = vector.broadcast %cst_158 : f32 to vector<2x128xf32>
    %511 = arith.addf %510, %509 : vector<2x128xf32>
    %512 = arith.divf %510, %511 : vector<2x128xf32>
    %513 = vector.extract_strided_slice %495 {offsets = [0, 256], sizes = [2, 128], strides = [1, 1]} : vector<2x384xf32> to vector<2x128xf32>
    %514 = vector.extract_strided_slice %496 {offsets = [0, 256], sizes = [2, 128], strides = [1, 1]} : vector<2x384xf32> to vector<2x128xf32>
    %515 = vector.broadcast %296 : vector<1x128xf32> to vector<2x128xf32>
    %516 = arith.addf %514, %515 : vector<2x128xf32>
    %517 = arith.mulf %504, %516 : vector<2x128xf32>
    %518 = arith.addf %513, %517 : vector<2x128xf32>
    %519 = math.tanh %518 : vector<2x128xf32>
    %cst_159 = arith.constant 1.000000e+00 : f32
    %520 = vector.broadcast %cst_159 : f32 to vector<2x128xf32>
    %521 = arith.subf %520, %512 : vector<2x128xf32>
    %522 = arith.mulf %521, %519 : vector<2x128xf32>
    %523 = arith.mulf %512, %487 : vector<2x128xf32>
    %524 = arith.addf %522, %523 : vector<2x128xf32>
    %525 = vector.broadcast %c3_i32_153 : i32 to vector<2x1xi32>
    %526 = arith.cmpi eq, %525, %2 : vector<2x1xi32>
    %527 = vector.shape_cast %526 : vector<2x1xi1> to vector<2x1xi1>
    %528 = vector.broadcast %527 : vector<2x1xi1> to vector<2x128xi1>
    %529 = arith.select %528, %524, %492 : vector<2x128xi1>, vector<2x128xf32>
    %c4_i32_160 = arith.constant 4 : i32
    %530 = arith.index_cast %c4_i32_160 : i32 to index
    %c0_161 = arith.constant 0 : index
    %c0_162 = arith.constant 0 : index
    %531 = vector.load %arg15[%530, %c0_161, %c0_162] : memref<8x2x384xf32, #tpu.memory_space<vmem>>, vector<1x2x384xf32>
    %532 = vector.shape_cast %531 : vector<1x2x384xf32> to vector<2x384xf32>
    %cst_163 = arith.constant dense<0.000000e+00> : vector<2x384xf32>
    %533 = tpu.matmul %524, %295, %cst_163 {dimension_numbers = #tpu.dot_dimension_numbers<[1], [0], [0], [1], [0, 0, 1, 1], [], []>} : vector<2x128xf32>, vector<128x384xf32>, vector<2x384xf32> -> vector<2x384xf32>
    %534 = vector.extract_strided_slice %532 {offsets = [0, 0], sizes = [2, 128], strides = [1, 1]} : vector<2x384xf32> to vector<2x128xf32>
    %535 = vector.extract_strided_slice %533 {offsets = [0, 0], sizes = [2, 128], strides = [1, 1]} : vector<2x384xf32> to vector<2x128xf32>
    %536 = arith.addf %534, %535 : vector<2x128xf32>
    %537 = arith.negf %536 : vector<2x128xf32>
    %538 = math.exp %537 : vector<2x128xf32>
    %cst_164 = arith.constant 1.000000e+00 : f32
    %539 = vector.broadcast %cst_164 : f32 to vector<2x128xf32>
    %540 = arith.addf %539, %538 : vector<2x128xf32>
    %541 = arith.divf %539, %540 : vector<2x128xf32>
    %542 = vector.extract_strided_slice %532 {offsets = [0, 128], sizes = [2, 128], strides = [1, 1]} : vector<2x384xf32> to vector<2x128xf32>
    %543 = vector.extract_strided_slice %533 {offsets = [0, 128], sizes = [2, 128], strides = [1, 1]} : vector<2x384xf32> to vector<2x128xf32>
    %544 = arith.addf %542, %543 : vector<2x128xf32>
    %545 = arith.negf %544 : vector<2x128xf32>
    %546 = math.exp %545 : vector<2x128xf32>
    %cst_165 = arith.constant 1.000000e+00 : f32
    %547 = vector.broadcast %cst_165 : f32 to vector<2x128xf32>
    %548 = arith.addf %547, %546 : vector<2x128xf32>
    %549 = arith.divf %547, %548 : vector<2x128xf32>
    %550 = vector.extract_strided_slice %532 {offsets = [0, 256], sizes = [2, 128], strides = [1, 1]} : vector<2x384xf32> to vector<2x128xf32>
    %551 = vector.extract_strided_slice %533 {offsets = [0, 256], sizes = [2, 128], strides = [1, 1]} : vector<2x384xf32> to vector<2x128xf32>
    %552 = vector.broadcast %296 : vector<1x128xf32> to vector<2x128xf32>
    %553 = arith.addf %551, %552 : vector<2x128xf32>
    %554 = arith.mulf %541, %553 : vector<2x128xf32>
    %555 = arith.addf %550, %554 : vector<2x128xf32>
    %556 = math.tanh %555 : vector<2x128xf32>
    %cst_166 = arith.constant 1.000000e+00 : f32
    %557 = vector.broadcast %cst_166 : f32 to vector<2x128xf32>
    %558 = arith.subf %557, %549 : vector<2x128xf32>
    %559 = arith.mulf %558, %556 : vector<2x128xf32>
    %560 = arith.mulf %549, %524 : vector<2x128xf32>
    %561 = arith.addf %559, %560 : vector<2x128xf32>
    %562 = vector.broadcast %c4_i32_160 : i32 to vector<2x1xi32>
    %563 = arith.cmpi eq, %562, %2 : vector<2x1xi32>
    %564 = vector.shape_cast %563 : vector<2x1xi1> to vector<2x1xi1>
    %565 = vector.broadcast %564 : vector<2x1xi1> to vector<2x128xi1>
    %566 = arith.select %565, %561, %529 : vector<2x128xi1>, vector<2x128xf32>
    %c5_i32_167 = arith.constant 5 : i32
    %567 = arith.index_cast %c5_i32_167 : i32 to index
    %c0_168 = arith.constant 0 : index
    %c0_169 = arith.constant 0 : index
    %568 = vector.load %arg15[%567, %c0_168, %c0_169] : memref<8x2x384xf32, #tpu.memory_space<vmem>>, vector<1x2x384xf32>
    %569 = vector.shape_cast %568 : vector<1x2x384xf32> to vector<2x384xf32>
    %cst_170 = arith.constant dense<0.000000e+00> : vector<2x384xf32>
    %570 = tpu.matmul %561, %295, %cst_170 {dimension_numbers = #tpu.dot_dimension_numbers<[1], [0], [0], [1], [0, 0, 1, 1], [], []>} : vector<2x128xf32>, vector<128x384xf32>, vector<2x384xf32> -> vector<2x384xf32>
    %571 = vector.extract_strided_slice %569 {offsets = [0, 0], sizes = [2, 128], strides = [1, 1]} : vector<2x384xf32> to vector<2x128xf32>
    %572 = vector.extract_strided_slice %570 {offsets = [0, 0], sizes = [2, 128], strides = [1, 1]} : vector<2x384xf32> to vector<2x128xf32>
    %573 = arith.addf %571, %572 : vector<2x128xf32>
    %574 = arith.negf %573 : vector<2x128xf32>
    %575 = math.exp %574 : vector<2x128xf32>
    %cst_171 = arith.constant 1.000000e+00 : f32
    %576 = vector.broadcast %cst_171 : f32 to vector<2x128xf32>
    %577 = arith.addf %576, %575 : vector<2x128xf32>
    %578 = arith.divf %576, %577 : vector<2x128xf32>
    %579 = vector.extract_strided_slice %569 {offsets = [0, 128], sizes = [2, 128], strides = [1, 1]} : vector<2x384xf32> to vector<2x128xf32>
    %580 = vector.extract_strided_slice %570 {offsets = [0, 128], sizes = [2, 128], strides = [1, 1]} : vector<2x384xf32> to vector<2x128xf32>
    %581 = arith.addf %579, %580 : vector<2x128xf32>
    %582 = arith.negf %581 : vector<2x128xf32>
    %583 = math.exp %582 : vector<2x128xf32>
    %cst_172 = arith.constant 1.000000e+00 : f32
    %584 = vector.broadcast %cst_172 : f32 to vector<2x128xf32>
    %585 = arith.addf %584, %583 : vector<2x128xf32>
    %586 = arith.divf %584, %585 : vector<2x128xf32>
    %587 = vector.extract_strided_slice %569 {offsets = [0, 256], sizes = [2, 128], strides = [1, 1]} : vector<2x384xf32> to vector<2x128xf32>
    %588 = vector.extract_strided_slice %570 {offsets = [0, 256], sizes = [2, 128], strides = [1, 1]} : vector<2x384xf32> to vector<2x128xf32>
    %589 = vector.broadcast %296 : vector<1x128xf32> to vector<2x128xf32>
    %590 = arith.addf %588, %589 : vector<2x128xf32>
    %591 = arith.mulf %578, %590 : vector<2x128xf32>
    %592 = arith.addf %587, %591 : vector<2x128xf32>
    %593 = math.tanh %592 : vector<2x128xf32>
    %cst_173 = arith.constant 1.000000e+00 : f32
    %594 = vector.broadcast %cst_173 : f32 to vector<2x128xf32>
    %595 = arith.subf %594, %586 : vector<2x128xf32>
    %596 = arith.mulf %595, %593 : vector<2x128xf32>
    %597 = arith.mulf %586, %561 : vector<2x128xf32>
    %598 = arith.addf %596, %597 : vector<2x128xf32>
    %599 = vector.broadcast %c5_i32_167 : i32 to vector<2x1xi32>
    %600 = arith.cmpi eq, %599, %2 : vector<2x1xi32>
    %601 = vector.shape_cast %600 : vector<2x1xi1> to vector<2x1xi1>
    %602 = vector.broadcast %601 : vector<2x1xi1> to vector<2x128xi1>
    %603 = arith.select %602, %598, %566 : vector<2x128xi1>, vector<2x128xf32>
    %c6_i32_174 = arith.constant 6 : i32
    %604 = arith.index_cast %c6_i32_174 : i32 to index
    %c0_175 = arith.constant 0 : index
    %c0_176 = arith.constant 0 : index
    %605 = vector.load %arg15[%604, %c0_175, %c0_176] : memref<8x2x384xf32, #tpu.memory_space<vmem>>, vector<1x2x384xf32>
    %606 = vector.shape_cast %605 : vector<1x2x384xf32> to vector<2x384xf32>
    %cst_177 = arith.constant dense<0.000000e+00> : vector<2x384xf32>
    %607 = tpu.matmul %598, %295, %cst_177 {dimension_numbers = #tpu.dot_dimension_numbers<[1], [0], [0], [1], [0, 0, 1, 1], [], []>} : vector<2x128xf32>, vector<128x384xf32>, vector<2x384xf32> -> vector<2x384xf32>
    %608 = vector.extract_strided_slice %606 {offsets = [0, 0], sizes = [2, 128], strides = [1, 1]} : vector<2x384xf32> to vector<2x128xf32>
    %609 = vector.extract_strided_slice %607 {offsets = [0, 0], sizes = [2, 128], strides = [1, 1]} : vector<2x384xf32> to vector<2x128xf32>
    %610 = arith.addf %608, %609 : vector<2x128xf32>
    %611 = arith.negf %610 : vector<2x128xf32>
    %612 = math.exp %611 : vector<2x128xf32>
    %cst_178 = arith.constant 1.000000e+00 : f32
    %613 = vector.broadcast %cst_178 : f32 to vector<2x128xf32>
    %614 = arith.addf %613, %612 : vector<2x128xf32>
    %615 = arith.divf %613, %614 : vector<2x128xf32>
    %616 = vector.extract_strided_slice %606 {offsets = [0, 128], sizes = [2, 128], strides = [1, 1]} : vector<2x384xf32> to vector<2x128xf32>
    %617 = vector.extract_strided_slice %607 {offsets = [0, 128], sizes = [2, 128], strides = [1, 1]} : vector<2x384xf32> to vector<2x128xf32>
    %618 = arith.addf %616, %617 : vector<2x128xf32>
    %619 = arith.negf %618 : vector<2x128xf32>
    %620 = math.exp %619 : vector<2x128xf32>
    %cst_179 = arith.constant 1.000000e+00 : f32
    %621 = vector.broadcast %cst_179 : f32 to vector<2x128xf32>
    %622 = arith.addf %621, %620 : vector<2x128xf32>
    %623 = arith.divf %621, %622 : vector<2x128xf32>
    %624 = vector.extract_strided_slice %606 {offsets = [0, 256], sizes = [2, 128], strides = [1, 1]} : vector<2x384xf32> to vector<2x128xf32>
    %625 = vector.extract_strided_slice %607 {offsets = [0, 256], sizes = [2, 128], strides = [1, 1]} : vector<2x384xf32> to vector<2x128xf32>
    %626 = vector.broadcast %296 : vector<1x128xf32> to vector<2x128xf32>
    %627 = arith.addf %625, %626 : vector<2x128xf32>
    %628 = arith.mulf %615, %627 : vector<2x128xf32>
    %629 = arith.addf %624, %628 : vector<2x128xf32>
    %630 = math.tanh %629 : vector<2x128xf32>
    %cst_180 = arith.constant 1.000000e+00 : f32
    %631 = vector.broadcast %cst_180 : f32 to vector<2x128xf32>
    %632 = arith.subf %631, %623 : vector<2x128xf32>
    %633 = arith.mulf %632, %630 : vector<2x128xf32>
    %634 = arith.mulf %623, %598 : vector<2x128xf32>
    %635 = arith.addf %633, %634 : vector<2x128xf32>
    %636 = vector.broadcast %c6_i32_174 : i32 to vector<2x1xi32>
    %637 = arith.cmpi eq, %636, %2 : vector<2x1xi32>
    %638 = vector.shape_cast %637 : vector<2x1xi1> to vector<2x1xi1>
    %639 = vector.broadcast %638 : vector<2x1xi1> to vector<2x128xi1>
    %640 = arith.select %639, %635, %603 : vector<2x128xi1>, vector<2x128xf32>
    %c7_i32_181 = arith.constant 7 : i32
    %641 = arith.index_cast %c7_i32_181 : i32 to index
    %c0_182 = arith.constant 0 : index
    %c0_183 = arith.constant 0 : index
    %642 = vector.load %arg15[%641, %c0_182, %c0_183] : memref<8x2x384xf32, #tpu.memory_space<vmem>>, vector<1x2x384xf32>
    %643 = vector.shape_cast %642 : vector<1x2x384xf32> to vector<2x384xf32>
    %cst_184 = arith.constant dense<0.000000e+00> : vector<2x384xf32>
    %644 = tpu.matmul %635, %295, %cst_184 {dimension_numbers = #tpu.dot_dimension_numbers<[1], [0], [0], [1], [0, 0, 1, 1], [], []>} : vector<2x128xf32>, vector<128x384xf32>, vector<2x384xf32> -> vector<2x384xf32>
    %645 = vector.extract_strided_slice %643 {offsets = [0, 0], sizes = [2, 128], strides = [1, 1]} : vector<2x384xf32> to vector<2x128xf32>
    %646 = vector.extract_strided_slice %644 {offsets = [0, 0], sizes = [2, 128], strides = [1, 1]} : vector<2x384xf32> to vector<2x128xf32>
    %647 = arith.addf %645, %646 : vector<2x128xf32>
    %648 = arith.negf %647 : vector<2x128xf32>
    %649 = math.exp %648 : vector<2x128xf32>
    %cst_185 = arith.constant 1.000000e+00 : f32
    %650 = vector.broadcast %cst_185 : f32 to vector<2x128xf32>
    %651 = arith.addf %650, %649 : vector<2x128xf32>
    %652 = arith.divf %650, %651 : vector<2x128xf32>
    %653 = vector.extract_strided_slice %643 {offsets = [0, 128], sizes = [2, 128], strides = [1, 1]} : vector<2x384xf32> to vector<2x128xf32>
    %654 = vector.extract_strided_slice %644 {offsets = [0, 128], sizes = [2, 128], strides = [1, 1]} : vector<2x384xf32> to vector<2x128xf32>
    %655 = arith.addf %653, %654 : vector<2x128xf32>
    %656 = arith.negf %655 : vector<2x128xf32>
    %657 = math.exp %656 : vector<2x128xf32>
    %cst_186 = arith.constant 1.000000e+00 : f32
    %658 = vector.broadcast %cst_186 : f32 to vector<2x128xf32>
    %659 = arith.addf %658, %657 : vector<2x128xf32>
    %660 = arith.divf %658, %659 : vector<2x128xf32>
    %661 = vector.extract_strided_slice %643 {offsets = [0, 256], sizes = [2, 128], strides = [1, 1]} : vector<2x384xf32> to vector<2x128xf32>
    %662 = vector.extract_strided_slice %644 {offsets = [0, 256], sizes = [2, 128], strides = [1, 1]} : vector<2x384xf32> to vector<2x128xf32>
    %663 = vector.broadcast %296 : vector<1x128xf32> to vector<2x128xf32>
    %664 = arith.addf %662, %663 : vector<2x128xf32>
    %665 = arith.mulf %652, %664 : vector<2x128xf32>
    %666 = arith.addf %661, %665 : vector<2x128xf32>
    %667 = math.tanh %666 : vector<2x128xf32>
    %cst_187 = arith.constant 1.000000e+00 : f32
    %668 = vector.broadcast %cst_187 : f32 to vector<2x128xf32>
    %669 = arith.subf %668, %660 : vector<2x128xf32>
    %670 = arith.mulf %669, %667 : vector<2x128xf32>
    %671 = arith.mulf %660, %635 : vector<2x128xf32>
    %672 = arith.addf %670, %671 : vector<2x128xf32>
    %673 = vector.broadcast %c7_i32_181 : i32 to vector<2x1xi32>
    %674 = arith.cmpi eq, %673, %2 : vector<2x1xi32>
    %675 = vector.shape_cast %674 : vector<2x1xi1> to vector<2x1xi1>
    %676 = vector.broadcast %675 : vector<2x1xi1> to vector<2x128xi1>
    %677 = arith.select %676, %672, %640 : vector<2x128xi1>, vector<2x128xf32>
    %c8_i32_188 = arith.constant 8 : i32
    %c0_189 = arith.constant 0 : index
    %c0_190 = arith.constant 0 : index
    %678 = vector.load %arg9[%c0_189, %c0_190] : memref<128x30xf32, #tpu.memory_space<vmem>>, vector<128x30xf32>
    %cst_191 = arith.constant dense<0.000000e+00> : vector<2x30xf32>
    %679 = tpu.matmul %677, %678, %cst_191 {dimension_numbers = #tpu.dot_dimension_numbers<[1], [0], [0], [1], [0, 0, 1, 1], [], []>} : vector<2x128xf32>, vector<128x30xf32>, vector<2x30xf32> -> vector<2x30xf32>
    %c0_192 = arith.constant 0 : index
    %c0_193 = arith.constant 0 : index
    %680 = vector.load %arg10[%c0_192, %c0_193] : memref<1x30xf32, #tpu.memory_space<vmem>>, vector<1x30xf32>
    %681 = vector.broadcast %680 : vector<1x30xf32> to vector<2x30xf32>
    %682 = arith.addf %679, %681 : vector<2x30xf32>
    %683 = math.tanh %682 : vector<2x30xf32>
    %c0_194 = arith.constant 0 : index
    %c0_195 = arith.constant 0 : index
    %684 = vector.load %arg11[%c0_194, %c0_195] : memref<30x12xf32, #tpu.memory_space<vmem>>, vector<30x12xf32>
    %cst_196 = arith.constant dense<0.000000e+00> : vector<2x12xf32>
    %685 = tpu.matmul %683, %684, %cst_196 {dimension_numbers = #tpu.dot_dimension_numbers<[1], [0], [0], [1], [0, 0, 1, 1], [], []>} : vector<2x30xf32>, vector<30x12xf32>, vector<2x12xf32> -> vector<2x12xf32>
    %c0_197 = arith.constant 0 : index
    %c0_198 = arith.constant 0 : index
    %686 = vector.load %arg12[%c0_197, %c0_198] : memref<1x12xf32, #tpu.memory_space<vmem>>, vector<1x12xf32>
    %687 = vector.broadcast %686 : vector<1x12xf32> to vector<2x12xf32>
    %688 = arith.addf %685, %687 : vector<2x12xf32>
    %c0_199 = arith.constant 0 : index
    %c0_200 = arith.constant 0 : index
    %689 = vector.load %arg13[%c0_199, %c0_200] : memref<2x12xf32, #tpu.memory_space<vmem>>, vector<2x12xf32>
    tpu.vector_store %arg13[%c0_199, %c0_200], %688 {strides = array<i32>} : memref<2x12xf32, #tpu.memory_space<vmem>>, vector<2x12xf32>,
    return
  }
}

</mosaic_0001>

<llo_original>
// kernel: tpu_custom_call.1
$region0: #{tpu_custom_call.1}
  #allocation0 [shape = 'u32[]', space=smem, size = 0x4, offset = 0x4, fixed_abs, tag = 'smem constant byte address 0x4 - core index']
  #allocation1 [shape = 'u32[144,128]{1,0:T(1,128)}', space=vmem, size = 0x12000, scoped, tag = 'internal scratch']
  #allocation2 [shape = 'f32[8,2,128]{2,1,0:T(2,128)}', space=vmem, size = 0x2000, scoped, tag = 'scratch operand']
  #allocation3 [shape = 'f32[8,2,384]{2,1,0:T(2,128)}', space=vmem, size = 0x6000, scoped, tag = 'scratch operand']
  %s0 = inlined_call_operand.vmem [shape: s32[2,1], index: 0, kind: input, shape index: {}]
  %s1 = inlined_call_operand.vmem [shape: f32[8,2,384], index: 1, kind: input, shape index: {}]
  %s2 = inlined_call_operand.vmem [shape: f32[2,2,128], index: 2, kind: input, shape index: {}]
  %s3 = inlined_call_operand.hbm [shape: f32[128,384], index: 3, kind: input, shape index: {}]
  %s4 = inlined_call_operand.vmem [shape: f32[1,128], index: 4, kind: input, shape index: {}]
  %s5 = inlined_call_operand.hbm [shape: f32[128,384], index: 5, kind: input, shape index: {}]
  %s6 = inlined_call_operand.vmem [shape: f32[1,128], index: 6, kind: input, shape index: {}]
  %s7 = inlined_call_operand.hbm [shape: f32[128,384], index: 7, kind: input, shape index: {}]
  %s8 = inlined_call_operand.vmem [shape: f32[1,384], index: 8, kind: input, shape index: {}]
  %s9 = inlined_call_operand.vmem [shape: f32[128,30], index: 9, kind: input, shape index: {}]
  %s10 = inlined_call_operand.vmem [shape: f32[1,30], index: 10, kind: input, shape index: {}]
  %s11 = inlined_call_operand.vmem [shape: f32[30,12], index: 11, kind: input, shape index: {}]
  %s12 = inlined_call_operand.vmem [shape: f32[1,12], index: 12, kind: input, shape index: {}]
  %s13 = inlined_call_operand.hbm [shape: f32[2,12], index: 13, kind: output, shape index: {}]
  %s14 = sld [smem:[#allocation0]]
  $region74: #{tpu_custom_call.1} parent=0
    _
  %s16 = ssub.s32 1, %s14
  %s17 = scalar_select 0, %s16, %s14
  $region1: #{tpu_custom_call.1} parent=0
    #allocation4 [shape = 'u8[196608]{0}', space=vmem, size = 0x30000, scoped, tag = 'input window, operand 3, single buffered']
    #allocation5 [shape = 's32[1]{0}', space=sflag, size = 0x4, scoped, tag = 'scoped memory for tpu_custom_call.1']
    #allocation6 [shape = 's32[1]{0}', space=sflag, size = 0x4, scoped, tag = 'scoped memory for tpu_custom_call.1']
    #allocation7 [shape = 'u8[196608]{0}', space=vmem, size = 0x30000, scoped, tag = 'input window, operand 5, single buffered']
    #allocation8 [shape = 's32[1]{0}', space=sflag, size = 0x4, scoped, tag = 'scoped memory for tpu_custom_call.1']
    #allocation9 [shape = 'u8[196608]{0}', space=vmem, size = 0x30000, scoped, tag = 'input window, operand 7, single buffered']
    #allocation10 [shape = 'u8[1024]{0}', space=vmem, size = 0x400, scoped, tag = 'output window, operand 0, single buffered']
    %18 = vsyncpa [#allocation5], 0
    %19 = vsyncpa [#allocation8], 0
    %20 = vsyncpa [#allocation6], 0
    // Predicated region
    $region2: #{tpu_custom_call.1} parent=1 // pred_check
      _
    $region3: #{tpu_custom_call.1} parent=1 // pred_check_branch
      %22 = sbr.rel (0) target = $region5
    $region4: #{tpu_custom_call.1} parent=1 // pred_region
      _
    $region5: #{tpu_custom_call.1} parent=1 // pred_fallthru
      _
    // Predicated region
    $region6: #{tpu_custom_call.1} parent=1 // pred_check
      _
    $region7: #{tpu_custom_call.1} parent=1 // pred_check_branch
      %24 = sbr.rel (0) target = $region9
    $region8: #{tpu_custom_call.1} parent=1 // pred_region
      _
    $region9: #{tpu_custom_call.1} parent=1 // pred_fallthru
      _
    // Predicated region
    $region10: #{tpu_custom_call.1} parent=1 // pred_check
      _
    $region11: #{tpu_custom_call.1} parent=1 // pred_check_branch
      %26 = sbr.rel (0) target = $region13
    $region12: #{tpu_custom_call.1} parent=1 // pred_region
      _
    $region13: #{tpu_custom_call.1} parent=1 // pred_fallthru
      _
    // Predicated region
    $region14: #{tpu_custom_call.1} parent=1 // pred_check
      _
    $region15: #{tpu_custom_call.1} parent=1 // pred_check_branch
      %28 = sbr.rel (0) target = $region17
    $region16: #{tpu_custom_call.1} parent=1 // pred_region
      %s30 = ssub.s32 6144, 6144
      %31 = vsyncadd [#allocation5], %s30
      %s32 = sshll.u32 [#allocation4], 4
      %s33 = int_to_ptr.vmem [resolvable:$true] %s32
      %38 = dma.hbm_to_vmem [thread:$0]  %s3, 6144, %s33, [#allocation5], 384, 384, 24
    $region17: #{tpu_custom_call.1} parent=1 // pred_fallthru
      _
    // Predicated region
    $region18: #{tpu_custom_call.1} parent=1 // pred_check
      _
    $region19: #{tpu_custom_call.1} parent=1 // pred_check_branch
      %40 = sbr.rel (0) target = $region21
    $region20: #{tpu_custom_call.1} parent=1 // pred_region
      _
    $region21: #{tpu_custom_call.1} parent=1 // pred_fallthru
      _
    // Predicated region
    $region22: #{tpu_custom_call.1} parent=1 // pred_check
      _
    $region23: #{tpu_custom_call.1} parent=1 // pred_check_branch
      %42 = sbr.rel (0) target = $region25
    $region24: #{tpu_custom_call.1} parent=1 // pred_region
      %s44 = ssub.s32 6144, 6144
      %45 = vsyncadd [#allocation8], %s44
      %s46 = sshll.u32 [#allocation7], 4
      %s47 = int_to_ptr.vmem [resolvable:$true] %s46
      %52 = dma.hbm_to_vmem [thread:$0]  %s5, 6144, %s47, [#allocation8], 384, 384, 24
    $region25: #{tpu_custom_call.1} parent=1 // pred_fallthru
      _
    // Predicated region
    $region26: #{tpu_custom_call.1} parent=1 // pred_check
      _
    $region27: #{tpu_custom_call.1} parent=1 // pred_check_branch
      %54 = sbr.rel (0) target = $region29
    $region28: #{tpu_custom_call.1} parent=1 // pred_region
      _
    $region29: #{tpu_custom_call.1} parent=1 // pred_fallthru
      _
    // Predicated region
    $region30: #{tpu_custom_call.1} parent=1 // pred_check
      _
    $region31: #{tpu_custom_call.1} parent=1 // pred_check_branch
      %56 = sbr.rel (0) target = $region33
    $region32: #{tpu_custom_call.1} parent=1 // pred_region
      %s58 = ssub.s32 6144, 6144
      %59 = vsyncadd [#allocation8], %s58
      %s60 = sshll.u32 [#allocation9], 4
      %s61 = int_to_ptr.vmem [resolvable:$true] %s60
      %66 = dma.hbm_to_vmem [thread:$0]  %s7, 6144, %s61, [#allocation8], 384, 384, 24
    $region33: #{tpu_custom_call.1} parent=1 // pred_fallthru
      _
    // Predicated region
    $region34: #{tpu_custom_call.1} parent=1 // pred_check
      _
    $region35: #{tpu_custom_call.1} parent=1 // pred_check_branch
      %68 = sbr.rel (0) target = $region37
    $region36: #{tpu_custom_call.1} parent=1 // pred_region
      _
    $region37: #{tpu_custom_call.1} parent=1 // pred_fallthru
      _
    // Predicated region
    $region38: #{tpu_custom_call.1} parent=1 // pred_check
      _
    $region39: #{tpu_custom_call.1} parent=1 // pred_check_branch
      %70 = sbr.rel (0) target = $region41
    $region40: #{tpu_custom_call.1} parent=1 // pred_region
      _
    $region41: #{tpu_custom_call.1} parent=1 // pred_fallthru
      _
    // Predicated region
    $region42: #{tpu_custom_call.1} parent=1 // pred_check
      _
    $region43: #{tpu_custom_call.1} parent=1 // pred_check_branch
      %72 = sbr.rel (0) target = $region45
    $region44: #{tpu_custom_call.1} parent=1 // pred_region
      _
    $region45: #{tpu_custom_call.1} parent=1 // pred_fallthru
      _
    // Predicated region
    $region46: #{tpu_custom_call.1} parent=1 // pred_check
      _
    $region47: #{tpu_custom_call.1} parent=1 // pred_check_branch
      %74 = sbr.rel (0) target = $region49
    $region48: #{tpu_custom_call.1} parent=1 // pred_region
      _
    $region49: #{tpu_custom_call.1} parent=1 // pred_fallthru
      _
    // Predicated region
    $region50: #{tpu_custom_call.1} parent=1 // pred_check
      _
    $region51: #{tpu_custom_call.1} parent=1 // pred_check_branch
      %76 = sbr.rel (0) target = $region53
    $region52: #{tpu_custom_call.1} parent=1 // pred_region
      _
    $region53: #{tpu_custom_call.1} parent=1 // pred_fallthru
      _
    // Predicated region
    $region54: #{tpu_custom_call.1} parent=1 // pred_check
      _
    $region55: #{tpu_custom_call.1} parent=1 // pred_check_branch
      %78 = sbr.rel (0) target = $region57
    $region56: #{tpu_custom_call.1} parent=1 // pred_region
      %79 = dma.done [#allocation5], 6144
    $region57: #{tpu_custom_call.1} parent=1 // pred_fallthru
      _
    // Predicated region
    $region58: #{tpu_custom_call.1} parent=1 // pred_check
      _
    $region59: #{tpu_custom_call.1} parent=1 // pred_check_branch
      %81 = sbr.rel (0) target = $region61
    $region60: #{tpu_custom_call.1} parent=1 // pred_region
      %82 = dma.done [#allocation8], 6144
    $region61: #{tpu_custom_call.1} parent=1 // pred_fallthru
      _
    // Predicated region
    $region62: #{tpu_custom_call.1} parent=1 // pred_check
      _
    $region63: #{tpu_custom_call.1} parent=1 // pred_check_branch
      %84 = sbr.rel (0) target = $region65
    $region64: #{tpu_custom_call.1} parent=1 // pred_region
      %85 = dma.done [#allocation8], 6144
    $region65: #{tpu_custom_call.1} parent=1 // pred_fallthru
      _
    %v86 = vld [vmem:[%s0] sm:$0x3]
    %v87 = vsub.s32 %v86, 1
    %v88 = vld [vmem:[#allocation4] sm:$0xff]
    %v89 = vld [vmem:[#allocation4 + $0x8] sm:$0xff]
    %v90 = vld [vmem:[#allocation4 + $0x10] sm:$0xff]
    %v91 = vld [vmem:[#allocation4 + $0x18] sm:$0xff]
    %v92 = vld [vmem:[#allocation4 + $0x20] sm:$0xff]
    %v93 = vld [vmem:[#allocation4 + $0x28] sm:$0xff]
    %v94 = vld [vmem:[#allocation4 + $0x30] sm:$0xff]
    %v95 = vld [vmem:[#allocation4 + $0x38] sm:$0xff]
    %v96 = vld [vmem:[#allocation4 + $0x40] sm:$0xff]
    %v97 = vld [vmem:[#allocation4 + $0x48] sm:$0xff]
    %v98 = vld [vmem:[#allocation4 + $0x50] sm:$0xff]
    %v99 = vld [vmem:[#allocation4 + $0x58] sm:$0xff]
    %v100 = vld [vmem:[#allocation4 + $0x60] sm:$0xff]
    %v101 = vld [vmem:[#allocation4 + $0x68] sm:$0xff]
    %v102 = vld [vmem:[#allocation4 + $0x70] sm:$0xff]
    %v103 = vld [vmem:[#allocation4 + $0x78] sm:$0xff]
    %v104 = vld [vmem:[#allocation4 + $0x80] sm:$0xff]
    %v105 = vld [vmem:[#allocation4 + $0x88] sm:$0xff]
    %v106 = vld [vmem:[#allocation4 + $0x90] sm:$0xff]
    %v107 = vld [vmem:[#allocation4 + $0x98] sm:$0xff]
    %v108 = vld [vmem:[#allocation4 + $0xa0] sm:$0xff]
    %v109 = vld [vmem:[#allocation4 + $0xa8] sm:$0xff]
    %v110 = vld [vmem:[#allocation4 + $0xb0] sm:$0xff]
    %v111 = vld [vmem:[#allocation4 + $0xb8] sm:$0xff]
    %v112 = vld [vmem:[#allocation4 + $0xc0] sm:$0xff]
    %v113 = vld [vmem:[#allocation4 + $0xc8] sm:$0xff]
    %v114 = vld [vmem:[#allocation4 + $0xd0] sm:$0xff]
    %v115 = vld [vmem:[#allocation4 + $0xd8] sm:$0xff]
    %v116 = vld [vmem:[#allocation4 + $0xe0] sm:$0xff]
    %v117 = vld [vmem:[#allocation4 + $0xe8] sm:$0xff]
    %v118 = vld [vmem:[#allocation4 + $0xf0] sm:$0xff]
    %v119 = vld [vmem:[#allocation4 + $0xf8] sm:$0xff]
    %v120 = vld [vmem:[#allocation4 + $0x100] sm:$0xff]
    %v121 = vld [vmem:[#allocation4 + $0x108] sm:$0xff]
    %v122 = vld [vmem:[#allocation4 + $0x110] sm:$0xff]
    %v123 = vld [vmem:[#allocation4 + $0x118] sm:$0xff]
    %v124 = vld [vmem:[#allocation4 + $0x120] sm:$0xff]
    %v125 = vld [vmem:[#allocation4 + $0x128] sm:$0xff]
    %v126 = vld [vmem:[#allocation4 + $0x130] sm:$0xff]
    %v127 = vld [vmem:[#allocation4 + $0x138] sm:$0xff]
    %v128 = vld [vmem:[#allocation4 + $0x140] sm:$0xff]
    %v129 = vld [vmem:[#allocation4 + $0x148] sm:$0xff]
    %v130 = vld [vmem:[#allocation4 + $0x150] sm:$0xff]
    %v131 = vld [vmem:[#allocation4 + $0x158] sm:$0xff]
    %v132 = vld [vmem:[#allocation4 + $0x160] sm:$0xff]
    %v133 = vld [vmem:[#allocation4 + $0x168] sm:$0xff]
    %v134 = vld [vmem:[#allocation4 + $0x170] sm:$0xff]
    %v135 = vld [vmem:[#allocation4 + $0x178] sm:$0xff]
    %v136 = vld [vmem:[%s4] sm:$0x1]
    %v137 = vld [vmem:[%s2] sm:$0x3]
    %v138 = vld [vmem:[%s1] sm:$0x3f]
    %139 = vmatprep.subr.mxu0 %v134
    %140 = vmatpush1.msra.mxu0 %v133
    %141 = vmatprep.subr.mxu0 %v131
    %142 = vmatpush1.msra.mxu0 %v130
    %143 = vmatprep.subr.mxu0 %v128
    %144 = vmatpush1.msra.mxu0 %v127
    %145 = vmatprep.subr.mxu0 %v125
    %146 = vmatpush1.msra.mxu0 %v124
    %147 = vmatprep.subr.mxu0 %v122
    %148 = vmatpush1.msra.mxu0 %v121
    %149 = vmatprep.subr.mxu0 %v119
    %150 = vmatpush1.msra.mxu0 %v118
    %151 = vmatprep.subr.mxu0 %v116
    %152 = vmatpush1.msra.mxu0 %v115
    %153 = vmatprep.subr.mxu0 %v113
    %154 = vmatpush1.msra.mxu0 %v112
    %155 = vmatprep.subr.mxu0 %v110
    %156 = vmatpush1.msra.mxu0 %v109
    %157 = vmatprep.subr.mxu0 %v107
    %158 = vmatpush1.msra.mxu0 %v106
    %159 = vmatprep.subr.mxu0 %v104
    %160 = vmatpush1.msra.mxu0 %v103
    %161 = vmatprep.subr.mxu0 %v101
    %162 = vmatpush1.msra.mxu0 %v100
    %163 = vmatprep.subr.mxu0 %v98
    %164 = vmatpush1.msra.mxu0 %v97
    %165 = vmatprep.subr.mxu0 %v95
    %166 = vmatpush1.msra.mxu0 %v94
    %167 = vmatprep.subr.mxu0 %v92
    %168 = vmatpush1.msra.mxu0 %v91
    %169 = vmatprep.subr.mxu0 %v89
    %170 = vmatpush1.msra.mxu0 %v88
    %171 = vmatprep.subr.mxu0 0.0
    %172 = vmatpush2.msra.mxu0 0.0
    %173 = vmatprep.subr.mxu0 0.0
    %174 = vmatpush2.msra.mxu0 0.0
    %175 = vmatprep.subr.mxu0 0.0
    %176 = vmatpush2.msra.mxu0 0.0
    %177 = vmatprep.subr.mxu0 0.0
    %178 = vmatpush2.msra.mxu0 0.0
    %179 = vmatprep.subr.mxu0 0.0
    %180 = vmatpush2.msra.mxu0 0.0
    %181 = vmatprep.subr.mxu0 0.0
    %182 = vmatpush2.msra.mxu0 0.0
    %183 = vmatprep.subr.mxu0 0.0
    %184 = vmatpush2.msra.mxu0 0.0
    %185 = vmatprep.subr.mxu0 0.0
    %186 = vmatpush2.msra.mxu0 0.0
    %187 = vmatprep.subr.mxu0 0.0
    %188 = vmatpush2.msra.mxu0 0.0
    %189 = vmatprep.subr.mxu0 0.0
    %190 = vmatpush2.msra.mxu0 0.0
    %191 = vmatprep.subr.mxu0 0.0
    %192 = vmatpush2.msra.mxu0 0.0
    %193 = vmatprep.subr.mxu0 0.0
    %194 = vmatpush2.msra.mxu0 0.0
    %195 = vmatprep.subr.mxu0 0.0
    %196 = vmatpush2.msra.mxu0 0.0
    %197 = vmatprep.subr.mxu0 0.0
    %198 = vmatpush2.msra.mxu0 0.0
    %199 = vmatprep.subr.mxu0 0.0
    %200 = vmatpush2.msra.mxu0 0.0
    %201 = vmatprep.subr.mxu0 0.0
    %202 = vmatpush2.msra.mxu0 0.0
    %203 = vmatprep.mubr.f32.mxu0 0.0
    %204 = vmatmul.mubr.f32.gmra.mxu0 %v137
    %v205 = vpop.f32.mrf.mxu0
    %v206 = vadd.f32 0.0, %v205
    %v207 = vpop.f32.mrf.mxu0
    %v208 = vadd.f32 0.0, %v207
    %209 = vdwg.mxu0
    %210 = vmatprep.subr.mxu0 0.0
    %211 = vmatpush1.msra.mxu0 %v135
    %212 = vmatprep.subr.mxu0 0.0
    %213 = vmatpush1.msra.mxu0 %v132
    %214 = vmatprep.subr.mxu0 0.0
    %215 = vmatpush1.msra.mxu0 %v129
    %216 = vmatprep.subr.mxu0 0.0
    %217 = vmatpush1.msra.mxu0 %v126
    %218 = vmatprep.subr.mxu0 0.0
    %219 = vmatpush1.msra.mxu0 %v123
    %220 = vmatprep.subr.mxu0 0.0
    %221 = vmatpush1.msra.mxu0 %v120
    %222 = vmatprep.subr.mxu0 0.0
    %223 = vmatpush1.msra.mxu0 %v117
    %224 = vmatprep.subr.mxu0 0.0
    %225 = vmatpush1.msra.mxu0 %v114
    %226 = vmatprep.subr.mxu0 0.0
    %227 = vmatpush1.msra.mxu0 %v111
    %228 = vmatprep.subr.mxu0 0.0
    %229 = vmatpush1.msra.mxu0 %v108
    %230 = vmatprep.subr.mxu0 0.0
    %231 = vmatpush1.msra.mxu0 %v105
    %232 = vmatprep.subr.mxu0 0.0
    %233 = vmatpush1.msra.mxu0 %v102
    %234 = vmatprep.subr.mxu0 0.0
    %235 = vmatpush1.msra.mxu0 %v99
    %236 = vmatprep.subr.mxu0 0.0
    %237 = vmatpush1.msra.mxu0 %v96
    %238 = vmatprep.subr.mxu0 0.0
    %239 = vmatpush1.msra.mxu0 %v93
    %240 = vmatprep.subr.mxu0 0.0
    %241 = vmatpush1.msra.mxu0 %v90
    %242 = vmatprep.subr.mxu0 0.0
    %243 = vmatpush2.msra.mxu0 0.0
    %244 = vmatprep.subr.mxu0 0.0
    %245 = vmatpush2.msra.mxu0 0.0
    %246 = vmatprep.subr.mxu0 0.0
    %247 = vmatpush2.msra.mxu0 0.0
    %248 = vmatprep.subr.mxu0 0.0
    %249 = vmatpush2.msra.mxu0 0.0
    %250 = vmatprep.subr.mxu0 0.0
    %251 = vmatpush2.msra.mxu0 0.0
    %252 = vmatprep.subr.mxu0 0.0
    %253 = vmatpush2.msra.mxu0 0.0
    %254 = vmatprep.subr.mxu0 0.0
    %255 = vmatpush2.msra.mxu0 0.0
    %256 = vmatprep.subr.mxu0 0.0
    %257 = vmatpush2.msra.mxu0 0.0
    %258 = vmatprep.subr.mxu0 0.0
    %259 = vmatpush2.msra.mxu0 0.0
    %260 = vmatprep.subr.mxu0 0.0
    %261 = vmatpush2.msra.mxu0 0.0
    %262 = vmatprep.subr.mxu0 0.0
    %263 = vmatpush2.msra.mxu0 0.0
    %264 = vmatprep.subr.mxu0 0.0
    %265 = vmatpush2.msra.mxu0 0.0
    %266 = vmatprep.subr.mxu0 0.0
    %267 = vmatpush2.msra.mxu0 0.0
    %268 = vmatprep.subr.mxu0 0.0
    %269 = vmatpush2.msra.mxu0 0.0
    %270 = vmatprep.subr.mxu0 0.0
    %271 = vmatpush2.msra.mxu0 0.0
    %272 = vmatprep.subr.mxu0 0.0
    %273 = vmatpush2.msra.mxu0 0.0
    %274 = vmatprep.mubr.f32.mxu0 0.0
    %275 = vmatmul.mubr.f32.gmra.mxu0 %v137
    %v276 = vpop.f32.mrf.mxu0
    %v277 = vadd.f32 0.0, %v276
    %v278 = vpop.f32.mrf.mxu0
    %279 = vdwg.mxu0
    %v280 = vadd.f32 %v138, %v206
    %v281 = vxor.u32 %v280, 2147483648
    %v282 = vmul.f32 %v281, 1.442695
    %v283 = vpow.pop %v282
    %v284 = vadd.f32 %v283, 1.0
    %v285 = vrcp.pop %v284
    %v286 = vmul.f32 1.0, %v285
    %v288 = vrot.slane %v138, 2
    %v290 = vadd.f32 %v288, %v208
    %v291 = vxor.u32 %v290, 2147483648
    %v292 = vmul.f32 %v291, 1.442695
    %v293 = vpow.pop %v292
    %v294 = vadd.f32 %v293, 1.0
    %v295 = vrcp.pop %v294
    %v296 = vmul.f32 1.0, %v295
    %v298 = vlaneseq
    %v299 = vshrl.u32 %v298, 7
    %v300 = vsub.s32 0, %v299
    %v301 = vrot.slane %v136, %v300
    %v303 = vadd.f32 %v277, %v301
    %v304 = vmul.f32 %v286, %v303
    %v305 = vrot.slane %v138, 4
    %v307 = vadd.f32 %v305, %v304
    %v308 = vtanh.pop %v307
    %v309 = vsub.f32 1.0, %v296
    %v310 = vmul.f32 %v309, %v308
    %v311 = vmul.f32 %v296, %v137
    %v312 = vadd.f32 %v310, %v311
    %313 = vst [vmem:[#allocation2] sm:$0x3] %v312
    %s314 = scalar_lea.vmem %s1, 6
    %v315 = vld [vmem:[%s314] sm:$0x3f]
    %316 = vmatprep.subr.mxu0 %v134
    %317 = vmatpush1.msra.mxu0 %v133
    %318 = vmatprep.subr.mxu0 %v131
    %319 = vmatpush1.msra.mxu0 %v130
    %320 = vmatprep.subr.mxu0 %v128
    %321 = vmatpush1.msra.mxu0 %v127
    %322 = vmatprep.subr.mxu0 %v125
    %323 = vmatpush1.msra.mxu0 %v124
    %324 = vmatprep.subr.mxu0 %v122
    %325 = vmatpush1.msra.mxu0 %v121
    %326 = vmatprep.subr.mxu0 %v119
    %327 = vmatpush1.msra.mxu0 %v118
    %328 = vmatprep.subr.mxu0 %v116
    %329 = vmatpush1.msra.mxu0 %v115
    %330 = vmatprep.subr.mxu0 %v113
    %331 = vmatpush1.msra.mxu0 %v112
    %332 = vmatprep.subr.mxu0 %v110
    %333 = vmatpush1.msra.mxu0 %v109
    %334 = vmatprep.subr.mxu0 %v107
    %335 = vmatpush1.msra.mxu0 %v106
    %336 = vmatprep.subr.mxu0 %v104
    %337 = vmatpush1.msra.mxu0 %v103
    %338 = vmatprep.subr.mxu0 %v101
    %339 = vmatpush1.msra.mxu0 %v100
    %340 = vmatprep.subr.mxu0 %v98
    %341 = vmatpush1.msra.mxu0 %v97
    %342 = vmatprep.subr.mxu0 %v95
    %343 = vmatpush1.msra.mxu0 %v94
    %344 = vmatprep.subr.mxu0 %v92
    %345 = vmatpush1.msra.mxu0 %v91
    %346 = vmatprep.subr.mxu0 %v89
    %347 = vmatpush1.msra.mxu0 %v88
    %348 = vmatprep.subr.mxu0 0.0
    %349 = vmatpush2.msra.mxu0 0.0
    %350 = vmatprep.subr.mxu0 0.0
    %351 = vmatpush2.msra.mxu0 0.0
    %352 = vmatprep.subr.mxu0 0.0
    %353 = vmatpush2.msra.mxu0 0.0
    %354 = vmatprep.subr.mxu0 0.0
    %355 = vmatpush2.msra.mxu0 0.0
    %356 = vmatprep.subr.mxu0 0.0
    %357 = vmatpush2.msra.mxu0 0.0
    %358 = vmatprep.subr.mxu0 0.0
    %359 = vmatpush2.msra.mxu0 0.0
    %360 = vmatprep.subr.mxu0 0.0
    %361 = vmatpush2.msra.mxu0 0.0
    %362 = vmatprep.subr.mxu0 0.0
    %363 = vmatpush2.msra.mxu0 0.0
    %364 = vmatprep.subr.mxu0 0.0
    %365 = vmatpush2.msra.mxu0 0.0
    %366 = vmatprep.subr.mxu0 0.0
    %367 = vmatpush2.msra.mxu0 0.0
    %368 = vmatprep.subr.mxu0 0.0
    %369 = vmatpush2.msra.mxu0 0.0
    %370 = vmatprep.subr.mxu0 0.0
    %371 = vmatpush2.msra.mxu0 0.0
    %372 = vmatprep.subr.mxu0 0.0
    %373 = vmatpush2.msra.mxu0 0.0
    %374 = vmatprep.subr.mxu0 0.0
    %375 = vmatpush2.msra.mxu0 0.0
    %376 = vmatprep.subr.mxu0 0.0
    %377 = vmatpush2.msra.mxu0 0.0
    %378 = vmatprep.subr.mxu0 0.0
    %379 = vmatpush2.msra.mxu0 0.0
    %380 = vmatprep.mubr.f32.mxu0 0.0
    %381 = vmatmul.mubr.f32.gmra.mxu0 %v312
    %v382 = vpop.f32.mrf.mxu0
    %v383 = vadd.f32 0.0, %v382
    %v384 = vpop.f32.mrf.mxu0
    %v385 = vadd.f32 0.0, %v384
    %386 = vdwg.mxu0
    %387 = vmatprep.subr.mxu0 0.0
    %388 = vmatpush1.msra.mxu0 %v135
    %389 = vmatprep.subr.mxu0 0.0
    %390 = vmatpush1.msra.mxu0 %v132
    %391 = vmatprep.subr.mxu0 0.0
    %392 = vmatpush1.msra.mxu0 %v129
    %393 = vmatprep.subr.mxu0 0.0
    %394 = vmatpush1.msra.mxu0 %v126
    %395 = vmatprep.subr.mxu0 0.0
    %396 = vmatpush1.msra.mxu0 %v123
    %397 = vmatprep.subr.mxu0 0.0
    %398 = vmatpush1.msra.mxu0 %v120
    %399 = vmatprep.subr.mxu0 0.0
    %400 = vmatpush1.msra.mxu0 %v117
    %401 = vmatprep.subr.mxu0 0.0
    %402 = vmatpush1.msra.mxu0 %v114
    %403 = vmatprep.subr.mxu0 0.0
    %404 = vmatpush1.msra.mxu0 %v111
    %405 = vmatprep.subr.mxu0 0.0
    %406 = vmatpush1.msra.mxu0 %v108
    %407 = vmatprep.subr.mxu0 0.0
    %408 = vmatpush1.msra.mxu0 %v105
    %409 = vmatprep.subr.mxu0 0.0
    %410 = vmatpush1.msra.mxu0 %v102
    %411 = vmatprep.subr.mxu0 0.0
    %412 = vmatpush1.msra.mxu0 %v99
    %413 = vmatprep.subr.mxu0 0.0
    %414 = vmatpush1.msra.mxu0 %v96
    %415 = vmatprep.subr.mxu0 0.0
    %416 = vmatpush1.msra.mxu0 %v93
    %417 = vmatprep.subr.mxu0 0.0
    %418 = vmatpush1.msra.mxu0 %v90
    %419 = vmatprep.subr.mxu0 0.0
    %420 = vmatpush2.msra.mxu0 0.0
    %421 = vmatprep.subr.mxu0 0.0
    %422 = vmatpush2.msra.mxu0 0.0
    %423 = vmatprep.subr.mxu0 0.0
    %424 = vmatpush2.msra.mxu0 0.0
    %425 = vmatprep.subr.mxu0 0.0
    %426 = vmatpush2.msra.mxu0 0.0
    %427 = vmatprep.subr.mxu0 0.0
    %428 = vmatpush2.msra.mxu0 0.0
    %429 = vmatprep.subr.mxu0 0.0
    %430 = vmatpush2.msra.mxu0 0.0
    %431 = vmatprep.subr.mxu0 0.0
    %432 = vmatpush2.msra.mxu0 0.0
    %433 = vmatprep.subr.mxu0 0.0
    %434 = vmatpush2.msra.mxu0 0.0
    %435 = vmatprep.subr.mxu0 0.0
    %436 = vmatpush2.msra.mxu0 0.0
    %437 = vmatprep.subr.mxu0 0.0
    %438 = vmatpush2.msra.mxu0 0.0
    %439 = vmatprep.subr.mxu0 0.0
    %440 = vmatpush2.msra.mxu0 0.0
    %441 = vmatprep.subr.mxu0 0.0
    %442 = vmatpush2.msra.mxu0 0.0
    %443 = vmatprep.subr.mxu0 0.0
    %444 = vmatpush2.msra.mxu0 0.0
    %445 = vmatprep.subr.mxu0 0.0
    %446 = vmatpush2.msra.mxu0 0.0
    %447 = vmatprep.subr.mxu0 0.0
    %448 = vmatpush2.msra.mxu0 0.0
    %449 = vmatprep.subr.mxu0 0.0
    %450 = vmatpush2.msra.mxu0 0.0
    %451 = vmatprep.mubr.f32.mxu0 0.0
    %452 = vmatmul.mubr.f32.gmra.mxu0 %v312
    %v453 = vpop.f32.mrf.mxu0
    %v454 = vadd.f32 0.0, %v453
    %v455 = vpop.f32.mrf.mxu0
    %456 = vdwg.mxu0
    %v457 = vadd.f32 %v315, %v383
    %v458 = vxor.u32 %v457, 2147483648
    %v459 = vmul.f32 %v458, 1.442695
    %v460 = vpow.pop %v459
    %v461 = vadd.f32 %v460, 1.0
    %v462 = vrcp.pop %v461
    %v463 = vmul.f32 1.0, %v462
    %v465 = vrot.slane %v315, 2
    %v467 = vadd.f32 %v465, %v385
    %v468 = vxor.u32 %v467, 2147483648
    %v469 = vmul.f32 %v468, 1.442695
    %v470 = vpow.pop %v469
    %v471 = vadd.f32 %v470, 1.0
    %v472 = vrcp.pop %v471
    %v473 = vmul.f32 1.0, %v472
    %v474 = vadd.f32 %v454, %v301
    %v475 = vmul.f32 %v463, %v474
    %v476 = vrot.slane %v315, 4
    %v478 = vadd.f32 %v476, %v475
    %v479 = vtanh.pop %v478
    %v480 = vsub.f32 1.0, %v473
    %v481 = vmul.f32 %v480, %v479
    %v482 = vmul.f32 %v473, %v312
    %v483 = vadd.f32 %v481, %v482
    %s484 = scalar_lea.vmem [#allocation2], 2
    %485 = vst [vmem:[%s484] sm:$0x3] %v483
    %s486 = scalar_lea.vmem %s1, 12
    %v487 = vld [vmem:[%s486] sm:$0x3f]
    %488 = vmatprep.subr.mxu0 %v134
    %489 = vmatpush1.msra.mxu0 %v133
    %490 = vmatprep.subr.mxu0 %v131
    %491 = vmatpush1.msra.mxu0 %v130
    %492 = vmatprep.subr.mxu0 %v128
    %493 = vmatpush1.msra.mxu0 %v127
    %494 = vmatprep.subr.mxu0 %v125
    %495 = vmatpush1.msra.mxu0 %v124
    %496 = vmatprep.subr.mxu0 %v122
    %497 = vmatpush1.msra.mxu0 %v121
    %498 = vmatprep.subr.mxu0 %v119
    %499 = vmatpush1.msra.mxu0 %v118
    %500 = vmatprep.subr.mxu0 %v116
    %501 = vmatpush1.msra.mxu0 %v115
    %502 = vmatprep.subr.mxu0 %v113
    %503 = vmatpush1.msra.mxu0 %v112
    %504 = vmatprep.subr.mxu0 %v110
    %505 = vmatpush1.msra.mxu0 %v109
    %506 = vmatprep.subr.mxu0 %v107
    %507 = vmatpush1.msra.mxu0 %v106
    %508 = vmatprep.subr.mxu0 %v104
    %509 = vmatpush1.msra.mxu0 %v103
    %510 = vmatprep.subr.mxu0 %v101
    %511 = vmatpush1.msra.mxu0 %v100
    %512 = vmatprep.subr.mxu0 %v98
    %513 = vmatpush1.msra.mxu0 %v97
    %514 = vmatprep.subr.mxu0 %v95
    %515 = vmatpush1.msra.mxu0 %v94
    %516 = vmatprep.subr.mxu0 %v92
    %517 = vmatpush1.msra.mxu0 %v91
    %518 = vmatprep.subr.mxu0 %v89
    %519 = vmatpush1.msra.mxu0 %v88
    %520 = vmatprep.subr.mxu0 0.0
    %521 = vmatpush2.msra.mxu0 0.0
    %522 = vmatprep.subr.mxu0 0.0
    %523 = vmatpush2.msra.mxu0 0.0
    %524 = vmatprep.subr.mxu0 0.0
    %525 = vmatpush2.msra.mxu0 0.0
    %526 = vmatprep.subr.mxu0 0.0
    %527 = vmatpush2.msra.mxu0 0.0
    %528 = vmatprep.subr.mxu0 0.0
    %529 = vmatpush2.msra.mxu0 0.0
    %530 = vmatprep.subr.mxu0 0.0
    %531 = vmatpush2.msra.mxu0 0.0
    %532 = vmatprep.subr.mxu0 0.0
    %533 = vmatpush2.msra.mxu0 0.0
    %534 = vmatprep.subr.mxu0 0.0
    %535 = vmatpush2.msra.mxu0 0.0
    %536 = vmatprep.subr.mxu0 0.0
    %537 = vmatpush2.msra.mxu0 0.0
    %538 = vmatprep.subr.mxu0 0.0
    %539 = vmatpush2.msra.mxu0 0.0
    %540 = vmatprep.subr.mxu0 0.0
    %541 = vmatpush2.msra.mxu0 0.0
    %542 = vmatprep.subr.mxu0 0.0
    %543 = vmatpush2.msra.mxu0 0.0
    %544 = vmatprep.subr.mxu0 0.0
    %545 = vmatpush2.msra.mxu0 0.0
    %546 = vmatprep.subr.mxu0 0.0
    %547 = vmatpush2.msra.mxu0 0.0
    %548 = vmatprep.subr.mxu0 0.0
    %549 = vmatpush2.msra.mxu0 0.0
    %550 = vmatprep.subr.mxu0 0.0
    %551 = vmatpush2.msra.mxu0 0.0
    %552 = vmatprep.mubr.f32.mxu0 0.0
    %553 = vmatmul.mubr.f32.gmra.mxu0 %v483
    %v554 = vpop.f32.mrf.mxu0
    %v555 = vadd.f32 0.0, %v554
    %v556 = vpop.f32.mrf.mxu0
    %v557 = vadd.f32 0.0, %v556
    %558 = vdwg.mxu0
    %559 = vmatprep.subr.mxu0 0.0
    %560 = vmatpush1.msra.mxu0 %v135
    %561 = vmatprep.subr.mxu0 0.0
    %562 = vmatpush1.msra.mxu0 %v132
    %563 = vmatprep.subr.mxu0 0.0
    %564 = vmatpush1.msra.mxu0 %v129
    %565 = vmatprep.subr.mxu0 0.0
    %566 = vmatpush1.msra.mxu0 %v126
    %567 = vmatprep.subr.mxu0 0.0
    %568 = vmatpush1.msra.mxu0 %v123
    %569 = vmatprep.subr.mxu0 0.0
    %570 = vmatpush1.msra.mxu0 %v120
    %571 = vmatprep.subr.mxu0 0.0
    %572 = vmatpush1.msra.mxu0 %v117
    %573 = vmatprep.subr.mxu0 0.0
    %574 = vmatpush1.msra.mxu0 %v114
    %575 = vmatprep.subr.mxu0 0.0
    %576 = vmatpush1.msra.mxu0 %v111
    %577 = vmatprep.subr.mxu0 0.0
    %578 = vmatpush1.msra.mxu0 %v108
    %579 = vmatprep.subr.mxu0 0.0
    %580 = vmatpush1.msra.mxu0 %v105
    %581 = vmatprep.subr.mxu0 0.0
    %582 = vmatpush1.msra.mxu0 %v102
    %583 = vmatprep.subr.mxu0 0.0
    %584 = vmatpush1.msra.mxu0 %v99
    %585 = vmatprep.subr.mxu0 0.0
    %586 = vmatpush1.msra.mxu0 %v96
    %587 = vmatprep.subr.mxu0 0.0
    %588 = vmatpush1.msra.mxu0 %v93
    %589 = vmatprep.subr.mxu0 0.0
    %590 = vmatpush1.msra.mxu0 %v90
    %591 = vmatprep.subr.mxu0 0.0
    %592 = vmatpush2.msra.mxu0 0.0
    %593 = vmatprep.subr.mxu0 0.0
    %594 = vmatpush2.msra.mxu0 0.0
    %595 = vmatprep.subr.mxu0 0.0
    %596 = vmatpush2.msra.mxu0 0.0
    %597 = vmatprep.subr.mxu0 0.0
    %598 = vmatpush2.msra.mxu0 0.0
    %599 = vmatprep.subr.mxu0 0.0
    %600 = vmatpush2.msra.mxu0 0.0
    %601 = vmatprep.subr.mxu0 0.0
    %602 = vmatpush2.msra.mxu0 0.0
    %603 = vmatprep.subr.mxu0 0.0
    %604 = vmatpush2.msra.mxu0 0.0
    %605 = vmatprep.subr.mxu0 0.0
    %606 = vmatpush2.msra.mxu0 0.0
    %607 = vmatprep.subr.mxu0 0.0
    %608 = vmatpush2.msra.mxu0 0.0
    %609 = vmatprep.subr.mxu0 0.0
    %610 = vmatpush2.msra.mxu0 0.0
    %611 = vmatprep.subr.mxu0 0.0
    %612 = vmatpush2.msra.mxu0 0.0
    %613 = vmatprep.subr.mxu0 0.0
    %614 = vmatpush2.msra.mxu0 0.0
    %615 = vmatprep.subr.mxu0 0.0
    %616 = vmatpush2.msra.mxu0 0.0
    %617 = vmatprep.subr.mxu0 0.0
    %618 = vmatpush2.msra.mxu0 0.0
    %619 = vmatprep.subr.mxu0 0.0
    %620 = vmatpush2.msra.mxu0 0.0
    %621 = vmatprep.subr.mxu0 0.0
    %622 = vmatpush2.msra.mxu0 0.0
    %623 = vmatprep.mubr.f32.mxu0 0.0
    %624 = vmatmul.mubr.f32.gmra.mxu0 %v483
    %v625 = vpop.f32.mrf.mxu0
    %v626 = vadd.f32 0.0, %v625
    %v627 = vpop.f32.mrf.mxu0
    %628 = vdwg.mxu0
    %v629 = vadd.f32 %v487, %v555
    %v630 = vxor.u32 %v629, 2147483648
    %v631 = vmul.f32 %v630, 1.442695
    %v632 = vpow.pop %v631
    %v633 = vadd.f32 %v632, 1.0
    %v634 = vrcp.pop %v633
    %v635 = vmul.f32 1.0, %v634
    %v637 = vrot.slane %v487, 2
    %v639 = vadd.f32 %v637, %v557
    %v640 = vxor.u32 %v639, 2147483648
    %v641 = vmul.f32 %v640, 1.442695
    %v642 = vpow.pop %v641
    %v643 = vadd.f32 %v642, 1.0
    %v644 = vrcp.pop %v643
    %v645 = vmul.f32 1.0, %v644
    %v646 = vadd.f32 %v626, %v301
    %v647 = vmul.f32 %v635, %v646
    %v648 = vrot.slane %v487, 4
    %v650 = vadd.f32 %v648, %v647
    %v651 = vtanh.pop %v650
    %v652 = vsub.f32 1.0, %v645
    %v653 = vmul.f32 %v652, %v651
    %v654 = vmul.f32 %v645, %v483
    %v655 = vadd.f32 %v653, %v654
    %s656 = scalar_lea.vmem [#allocation2], 4
    %657 = vst [vmem:[%s656] sm:$0x3] %v655
    %s658 = scalar_lea.vmem %s1, 18
    %v659 = vld [vmem:[%s658] sm:$0x3f]
    %660 = vmatprep.subr.mxu0 %v134
    %661 = vmatpush1.msra.mxu0 %v133
    %662 = vmatprep.subr.mxu0 %v131
    %663 = vmatpush1.msra.mxu0 %v130
    %664 = vmatprep.subr.mxu0 %v128
    %665 = vmatpush1.msra.mxu0 %v127
    %666 = vmatprep.subr.mxu0 %v125
    %667 = vmatpush1.msra.mxu0 %v124
    %668 = vmatprep.subr.mxu0 %v122
    %669 = vmatpush1.msra.mxu0 %v121
    %670 = vmatprep.subr.mxu0 %v119
    %671 = vmatpush1.msra.mxu0 %v118
    %672 = vmatprep.subr.mxu0 %v116
    %673 = vmatpush1.msra.mxu0 %v115
    %674 = vmatprep.subr.mxu0 %v113
    %675 = vmatpush1.msra.mxu0 %v112
    %676 = vmatprep.subr.mxu0 %v110
    %677 = vmatpush1.msra.mxu0 %v109
    %678 = vmatprep.subr.mxu0 %v107
    %679 = vmatpush1.msra.mxu0 %v106
    %680 = vmatprep.subr.mxu0 %v104
    %681 = vmatpush1.msra.mxu0 %v103
    %682 = vmatprep.subr.mxu0 %v101
    %683 = vmatpush1.msra.mxu0 %v100
    %684 = vmatprep.subr.mxu0 %v98
    %685 = vmatpush1.msra.mxu0 %v97
    %686 = vmatprep.subr.mxu0 %v95
    %687 = vmatpush1.msra.mxu0 %v94
    %688 = vmatprep.subr.mxu0 %v92
    %689 = vmatpush1.msra.mxu0 %v91
    %690 = vmatprep.subr.mxu0 %v89
    %691 = vmatpush1.msra.mxu0 %v88
    %692 = vmatprep.subr.mxu0 0.0
    %693 = vmatpush2.msra.mxu0 0.0
    %694 = vmatprep.subr.mxu0 0.0
    %695 = vmatpush2.msra.mxu0 0.0
    %696 = vmatprep.subr.mxu0 0.0
    %697 = vmatpush2.msra.mxu0 0.0
    %698 = vmatprep.subr.mxu0 0.0
    %699 = vmatpush2.msra.mxu0 0.0
    %700 = vmatprep.subr.mxu0 0.0
    %701 = vmatpush2.msra.mxu0 0.0
    %702 = vmatprep.subr.mxu0 0.0
    %703 = vmatpush2.msra.mxu0 0.0
    %704 = vmatprep.subr.mxu0 0.0
    %705 = vmatpush2.msra.mxu0 0.0
    %706 = vmatprep.subr.mxu0 0.0
    %707 = vmatpush2.msra.mxu0 0.0
    %708 = vmatprep.subr.mxu0 0.0
    %709 = vmatpush2.msra.mxu0 0.0
    %710 = vmatprep.subr.mxu0 0.0
    %711 = vmatpush2.msra.mxu0 0.0
    %712 = vmatprep.subr.mxu0 0.0
    %713 = vmatpush2.msra.mxu0 0.0
    %714 = vmatprep.subr.mxu0 0.0
    %715 = vmatpush2.msra.mxu0 0.0
    %716 = vmatprep.subr.mxu0 0.0
    %717 = vmatpush2.msra.mxu0 0.0
    %718 = vmatprep.subr.mxu0 0.0
    %719 = vmatpush2.msra.mxu0 0.0
    %720 = vmatprep.subr.mxu0 0.0
    %721 = vmatpush2.msra.mxu0 0.0
    %722 = vmatprep.subr.mxu0 0.0
    %723 = vmatpush2.msra.mxu0 0.0
    %724 = vmatprep.mubr.f32.mxu0 0.0
    %725 = vmatmul.mubr.f32.gmra.mxu0 %v655
    %v726 = vpop.f32.mrf.mxu0
    %v727 = vadd.f32 0.0, %v726
    %v728 = vpop.f32.mrf.mxu0
    %v729 = vadd.f32 0.0, %v728
    %730 = vdwg.mxu0
    %731 = vmatprep.subr.mxu0 0.0
    %732 = vmatpush1.msra.mxu0 %v135
    %733 = vmatprep.subr.mxu0 0.0
    %734 = vmatpush1.msra.mxu0 %v132
    %735 = vmatprep.subr.mxu0 0.0
    %736 = vmatpush1.msra.mxu0 %v129
    %737 = vmatprep.subr.mxu0 0.0
    %738 = vmatpush1.msra.mxu0 %v126
    %739 = vmatprep.subr.mxu0 0.0
    %740 = vmatpush1.msra.mxu0 %v123
    %741 = vmatprep.subr.mxu0 0.0
    %742 = vmatpush1.msra.mxu0 %v120
    %743 = vmatprep.subr.mxu0 0.0
    %744 = vmatpush1.msra.mxu0 %v117
    %745 = vmatprep.subr.mxu0 0.0
    %746 = vmatpush1.msra.mxu0 %v114
    %747 = vmatprep.subr.mxu0 0.0
    %748 = vmatpush1.msra.mxu0 %v111
    %749 = vmatprep.subr.mxu0 0.0
    %750 = vmatpush1.msra.mxu0 %v108
    %751 = vmatprep.subr.mxu0 0.0
    %752 = vmatpush1.msra.mxu0 %v105
    %753 = vmatprep.subr.mxu0 0.0
    %754 = vmatpush1.msra.mxu0 %v102
    %755 = vmatprep.subr.mxu0 0.0
    %756 = vmatpush1.msra.mxu0 %v99
    %757 = vmatprep.subr.mxu0 0.0
    %758 = vmatpush1.msra.mxu0 %v96
    %759 = vmatprep.subr.mxu0 0.0
    %760 = vmatpush1.msra.mxu0 %v93
    %761 = vmatprep.subr.mxu0 0.0
    %762 = vmatpush1.msra.mxu0 %v90
    %763 = vmatprep.subr.mxu0 0.0
    %764 = vmatpush2.msra.mxu0 0.0
    %765 = vmatprep.subr.mxu0 0.0
    %766 = vmatpush2.msra.mxu0 0.0
    %767 = vmatprep.subr.mxu0 0.0
    %768 = vmatpush2.msra.mxu0 0.0
    %769 = vmatprep.subr.mxu0 0.0
    %770 = vmatpush2.msra.mxu0 0.0
    %771 = vmatprep.subr.mxu0 0.0
    %772 = vmatpush2.msra.mxu0 0.0
    %773 = vmatprep.subr.mxu0 0.0
    %774 = vmatpush2.msra.mxu0 0.0
    %775 = vmatprep.subr.mxu0 0.0
    %776 = vmatpush2.msra.mxu0 0.0
    %777 = vmatprep.subr.mxu0 0.0
    %778 = vmatpush2.msra.mxu0 0.0
    %779 = vmatprep.subr.mxu0 0.0
    %780 = vmatpush2.msra.mxu0 0.0
    %781 = vmatprep.subr.mxu0 0.0
    %782 = vmatpush2.msra.mxu0 0.0
    %783 = vmatprep.subr.mxu0 0.0
    %784 = vmatpush2.msra.mxu0 0.0
    %785 = vmatprep.subr.mxu0 0.0
    %786 = vmatpush2.msra.mxu0 0.0
    %787 = vmatprep.subr.mxu0 0.0
    %788 = vmatpush2.msra.mxu0 0.0
    %789 = vmatprep.subr.mxu0 0.0
    %790 = vmatpush2.msra.mxu0 0.0
    %791 = vmatprep.subr.mxu0 0.0
    %792 = vmatpush2.msra.mxu0 0.0
    %793 = vmatprep.subr.mxu0 0.0
    %794 = vmatpush2.msra.mxu0 0.0
    %795 = vmatprep.mubr.f32.mxu0 0.0
    %796 = vmatmul.mubr.f32.gmra.mxu0 %v655
    %v797 = vpop.f32.mrf.mxu0
    %v798 = vadd.f32 0.0, %v797
    %v799 = vpop.f32.mrf.mxu0
    %800 = vdwg.mxu0
    %v801 = vadd.f32 %v659, %v727
    %v802 = vxor.u32 %v801, 2147483648
    %v803 = vmul.f32 %v802, 1.442695
    %v804 = vpow.pop %v803
    %v805 = vadd.f32 %v804, 1.0
    %v806 = vrcp.pop %v805
    %v807 = vmul.f32 1.0, %v806
    %v809 = vrot.slane %v659, 2
    %v811 = vadd.f32 %v809, %v729
    %v812 = vxor.u32 %v811, 2147483648
    %v813 = vmul.f32 %v812, 1.442695
    %v814 = vpow.pop %v813
    %v815 = vadd.f32 %v814, 1.0
    %v816 = vrcp.pop %v815
    %v817 = vmul.f32 1.0, %v816
    %v818 = vadd.f32 %v798, %v301
    %v819 = vmul.f32 %v807, %v818
    %v820 = vrot.slane %v659, 4
    %v822 = vadd.f32 %v820, %v819
    %v823 = vtanh.pop %v822
    %v824 = vsub.f32 1.0, %v817
    %v825 = vmul.f32 %v824, %v823
    %v826 = vmul.f32 %v817, %v655
    %v827 = vadd.f32 %v825, %v826
    %s828 = scalar_lea.vmem [#allocation2], 6
    %829 = vst [vmem:[%s828] sm:$0x3] %v827
    %s830 = scalar_lea.vmem %s1, 24
    %v831 = vld [vmem:[%s830] sm:$0x3f]
    %832 = vmatprep.subr.mxu0 %v134
    %833 = vmatpush1.msra.mxu0 %v133
    %834 = vmatprep.subr.mxu0 %v131
    %835 = vmatpush1.msra.mxu0 %v130
    %836 = vmatprep.subr.mxu0 %v128
    %837 = vmatpush1.msra.mxu0 %v127
    %838 = vmatprep.subr.mxu0 %v125
    %839 = vmatpush1.msra.mxu0 %v124
    %840 = vmatprep.subr.mxu0 %v122
    %841 = vmatpush1.msra.mxu0 %v121
    %842 = vmatprep.subr.mxu0 %v119
    %843 = vmatpush1.msra.mxu0 %v118
    %844 = vmatprep.subr.mxu0 %v116
    %845 = vmatpush1.msra.mxu0 %v115
    %846 = vmatprep.subr.mxu0 %v113
    %847 = vmatpush1.msra.mxu0 %v112
    %848 = vmatprep.subr.mxu0 %v110
    %849 = vmatpush1.msra.mxu0 %v109
    %850 = vmatprep.subr.mxu0 %v107
    %851 = vmatpush1.msra.mxu0 %v106
    %852 = vmatprep.subr.mxu0 %v104
    %853 = vmatpush1.msra.mxu0 %v103
    %854 = vmatprep.subr.mxu0 %v101
    %855 = vmatpush1.msra.mxu0 %v100
    %856 = vmatprep.subr.mxu0 %v98
    %857 = vmatpush1.msra.mxu0 %v97
    %858 = vmatprep.subr.mxu0 %v95
    %859 = vmatpush1.msra.mxu0 %v94
    %860 = vmatprep.subr.mxu0 %v92
    %861 = vmatpush1.msra.mxu0 %v91
    %862 = vmatprep.subr.mxu0 %v89
    %863 = vmatpush1.msra.mxu0 %v88
    %864 = vmatprep.subr.mxu0 0.0
    %865 = vmatpush2.msra.mxu0 0.0
    %866 = vmatprep.subr.mxu0 0.0
    %867 = vmatpush2.msra.mxu0 0.0
    %868 = vmatprep.subr.mxu0 0.0
    %869 = vmatpush2.msra.mxu0 0.0
    %870 = vmatprep.subr.mxu0 0.0
    %871 = vmatpush2.msra.mxu0 0.0
    %872 = vmatprep.subr.mxu0 0.0
    %873 = vmatpush2.msra.mxu0 0.0
    %874 = vmatprep.subr.mxu0 0.0
    %875 = vmatpush2.msra.mxu0 0.0
    %876 = vmatprep.subr.mxu0 0.0
    %877 = vmatpush2.msra.mxu0 0.0
    %878 = vmatprep.subr.mxu0 0.0
    %879 = vmatpush2.msra.mxu0 0.0
    %880 = vmatprep.subr.mxu0 0.0
    %881 = vmatpush2.msra.mxu0 0.0
    %882 = vmatprep.subr.mxu0 0.0
    %883 = vmatpush2.msra.mxu0 0.0
    %884 = vmatprep.subr.mxu0 0.0
    %885 = vmatpush2.msra.mxu0 0.0
    %886 = vmatprep.subr.mxu0 0.0
    %887 = vmatpush2.msra.mxu0 0.0
    %888 = vmatprep.subr.mxu0 0.0
    %889 = vmatpush2.msra.mxu0 0.0
    %890 = vmatprep.subr.mxu0 0.0
    %891 = vmatpush2.msra.mxu0 0.0
    %892 = vmatprep.subr.mxu0 0.0
    %893 = vmatpush2.msra.mxu0 0.0
    %894 = vmatprep.subr.mxu0 0.0
    %895 = vmatpush2.msra.mxu0 0.0
    %896 = vmatprep.mubr.f32.mxu0 0.0
    %897 = vmatmul.mubr.f32.gmra.mxu0 %v827
    %v898 = vpop.f32.mrf.mxu0
    %v899 = vadd.f32 0.0, %v898
    %v900 = vpop.f32.mrf.mxu0
    %v901 = vadd.f32 0.0, %v900
    %902 = vdwg.mxu0
    %903 = vmatprep.subr.mxu0 0.0
    %904 = vmatpush1.msra.mxu0 %v135
    %905 = vmatprep.subr.mxu0 0.0
    %906 = vmatpush1.msra.mxu0 %v132
    %907 = vmatprep.subr.mxu0 0.0
    %908 = vmatpush1.msra.mxu0 %v129
    %909 = vmatprep.subr.mxu0 0.0
    %910 = vmatpush1.msra.mxu0 %v126
    %911 = vmatprep.subr.mxu0 0.0
    %912 = vmatpush1.msra.mxu0 %v123
    %913 = vmatprep.subr.mxu0 0.0
    %914 = vmatpush1.msra.mxu0 %v120
    %915 = vmatprep.subr.mxu0 0.0
    %916 = vmatpush1.msra.mxu0 %v117
    %917 = vmatprep.subr.mxu0 0.0
    %918 = vmatpush1.msra.mxu0 %v114
    %919 = vmatprep.subr.mxu0 0.0
    %920 = vmatpush1.msra.mxu0 %v111
    %921 = vmatprep.subr.mxu0 0.0
    %922 = vmatpush1.msra.mxu0 %v108
    %923 = vmatprep.subr.mxu0 0.0
    %924 = vmatpush1.msra.mxu0 %v105
    %925 = vmatprep.subr.mxu0 0.0
    %926 = vmatpush1.msra.mxu0 %v102
    %927 = vmatprep.subr.mxu0 0.0
    %928 = vmatpush1.msra.mxu0 %v99
    %929 = vmatprep.subr.mxu0 0.0
    %930 = vmatpush1.msra.mxu0 %v96
    %931 = vmatprep.subr.mxu0 0.0
    %932 = vmatpush1.msra.mxu0 %v93
    %933 = vmatprep.subr.mxu0 0.0
    %934 = vmatpush1.msra.mxu0 %v90
    %935 = vmatprep.subr.mxu0 0.0
    %936 = vmatpush2.msra.mxu0 0.0
    %937 = vmatprep.subr.mxu0 0.0
    %938 = vmatpush2.msra.mxu0 0.0
    %939 = vmatprep.subr.mxu0 0.0
    %940 = vmatpush2.msra.mxu0 0.0
    %941 = vmatprep.subr.mxu0 0.0
    %942 = vmatpush2.msra.mxu0 0.0
    %943 = vmatprep.subr.mxu0 0.0
    %944 = vmatpush2.msra.mxu0 0.0
    %945 = vmatprep.subr.mxu0 0.0
    %946 = vmatpush2.msra.mxu0 0.0
    %947 = vmatprep.subr.mxu0 0.0
    %948 = vmatpush2.msra.mxu0 0.0
    %949 = vmatprep.subr.mxu0 0.0
    %950 = vmatpush2.msra.mxu0 0.0
    %951 = vmatprep.subr.mxu0 0.0
    %952 = vmatpush2.msra.mxu0 0.0
    %953 = vmatprep.subr.mxu0 0.0
    %954 = vmatpush2.msra.mxu0 0.0
    %955 = vmatprep.subr.mxu0 0.0
    %956 = vmatpush2.msra.mxu0 0.0
    %957 = vmatprep.subr.mxu0 0.0
    %958 = vmatpush2.msra.mxu0 0.0
    %959 = vmatprep.subr.mxu0 0.0
    %960 = vmatpush2.msra.mxu0 0.0
    %961 = vmatprep.subr.mxu0 0.0
    %962 = vmatpush2.msra.mxu0 0.0
    %963 = vmatprep.subr.mxu0 0.0
    %964 = vmatpush2.msra.mxu0 0.0
    %965 = vmatprep.subr.mxu0 0.0
    %966 = vmatpush2.msra.mxu0 0.0
    %967 = vmatprep.mubr.f32.mxu0 0.0
    %968 = vmatmul.mubr.f32.gmra.mxu0 %v827
    %v969 = vpop.f32.mrf.mxu0
    %v970 = vadd.f32 0.0, %v969
    %v971 = vpop.f32.mrf.mxu0
    %972 = vdwg.mxu0
    %v973 = vadd.f32 %v831, %v899
    %v974 = vxor.u32 %v973, 2147483648
    %v975 = vmul.f32 %v974, 1.442695
    %v976 = vpow.pop %v975
    %v977 = vadd.f32 %v976, 1.0
    %v978 = vrcp.pop %v977
    %v979 = vmul.f32 1.0, %v978
    %v981 = vrot.slane %v831, 2
    %v983 = vadd.f32 %v981, %v901
    %v984 = vxor.u32 %v983, 2147483648
    %v985 = vmul.f32 %v984, 1.442695
    %v986 = vpow.pop %v985
    %v987 = vadd.f32 %v986, 1.0
    %v988 = vrcp.pop %v987
    %v989 = vmul.f32 1.0, %v988
    %v990 = vadd.f32 %v970, %v301
    %v991 = vmul.f32 %v979, %v990
    %v992 = vrot.slane %v831, 4
    %v994 = vadd.f32 %v992, %v991
    %v995 = vtanh.pop %v994
    %v996 = vsub.f32 1.0, %v989
    %v997 = vmul.f32 %v996, %v995
    %v998 = vmul.f32 %v989, %v827
    %v999 = vadd.f32 %v997, %v998
    %s1000 = scalar_lea.vmem [#allocation2], 8
    %1001 = vst [vmem:[%s1000] sm:$0x3] %v999
    %s1002 = scalar_lea.vmem %s1, 30
    %v1003 = vld [vmem:[%s1002] sm:$0x3f]
    %1004 = vmatprep.subr.mxu0 %v134
    %1005 = vmatpush1.msra.mxu0 %v133
    %1006 = vmatprep.subr.mxu0 %v131
    %1007 = vmatpush1.msra.mxu0 %v130
    %1008 = vmatprep.subr.mxu0 %v128
    %1009 = vmatpush1.msra.mxu0 %v127
    %1010 = vmatprep.subr.mxu0 %v125
    %1011 = vmatpush1.msra.mxu0 %v124
    %1012 = vmatprep.subr.mxu0 %v122
    %1013 = vmatpush1.msra.mxu0 %v121
    %1014 = vmatprep.subr.mxu0 %v119
    %1015 = vmatpush1.msra.mxu0 %v118
    %1016 = vmatprep.subr.mxu0 %v116
    %1017 = vmatpush1.msra.mxu0 %v115
    %1018 = vmatprep.subr.mxu0 %v113
    %1019 = vmatpush1.msra.mxu0 %v112
    %1020 = vmatprep.subr.mxu0 %v110
    %1021 = vmatpush1.msra.mxu0 %v109
    %1022 = vmatprep.subr.mxu0 %v107
    %1023 = vmatpush1.msra.mxu0 %v106
    %1024 = vmatprep.subr.mxu0 %v104
    %1025 = vmatpush1.msra.mxu0 %v103
    %1026 = vmatprep.subr.mxu0 %v101
    %1027 = vmatpush1.msra.mxu0 %v100
    %1028 = vmatprep.subr.mxu0 %v98
    %1029 = vmatpush1.msra.mxu0 %v97
    %1030 = vmatprep.subr.mxu0 %v95
    %1031 = vmatpush1.msra.mxu0 %v94
    %1032 = vmatprep.subr.mxu0 %v92
    %1033 = vmatpush1.msra.mxu0 %v91
    %1034 = vmatprep.subr.mxu0 %v89
    %1035 = vmatpush1.msra.mxu0 %v88
    %1036 = vmatprep.subr.mxu0 0.0
    %1037 = vmatpush2.msra.mxu0 0.0
    %1038 = vmatprep.subr.mxu0 0.0
    %1039 = vmatpush2.msra.mxu0 0.0
    %1040 = vmatprep.subr.mxu0 0.0
    %1041 = vmatpush2.msra.mxu0 0.0
    %1042 = vmatprep.subr.mxu0 0.0
    %1043 = vmatpush2.msra.mxu0 0.0
    %1044 = vmatprep.subr.mxu0 0.0
    %1045 = vmatpush2.msra.mxu0 0.0
    %1046 = vmatprep.subr.mxu0 0.0
    %1047 = vmatpush2.msra.mxu0 0.0
    %1048 = vmatprep.subr.mxu0 0.0
    %1049 = vmatpush2.msra.mxu0 0.0
    %1050 = vmatprep.subr.mxu0 0.0
    %1051 = vmatpush2.msra.mxu0 0.0
    %1052 = vmatprep.subr.mxu0 0.0
    %1053 = vmatpush2.msra.mxu0 0.0
    %1054 = vmatprep.subr.mxu0 0.0
    %1055 = vmatpush2.msra.mxu0 0.0
    %1056 = vmatprep.subr.mxu0 0.0
    %1057 = vmatpush2.msra.mxu0 0.0
    %1058 = vmatprep.subr.mxu0 0.0
    %1059 = vmatpush2.msra.mxu0 0.0
    %1060 = vmatprep.subr.mxu0 0.0
    %1061 = vmatpush2.msra.mxu0 0.0
    %1062 = vmatprep.subr.mxu0 0.0
    %1063 = vmatpush2.msra.mxu0 0.0
    %1064 = vmatprep.subr.mxu0 0.0
    %1065 = vmatpush2.msra.mxu0 0.0
    %1066 = vmatprep.subr.mxu0 0.0
    %1067 = vmatpush2.msra.mxu0 0.0
    %1068 = vmatprep.mubr.f32.mxu0 0.0
    %1069 = vmatmul.mubr.f32.gmra.mxu0 %v999
    %v1070 = vpop.f32.mrf.mxu0
    %v1071 = vadd.f32 0.0, %v1070
    %v1072 = vpop.f32.mrf.mxu0
    %v1073 = vadd.f32 0.0, %v1072
    %1074 = vdwg.mxu0
    %1075 = vmatprep.subr.mxu0 0.0
    %1076 = vmatpush1.msra.mxu0 %v135
    %1077 = vmatprep.subr.mxu0 0.0
    %1078 = vmatpush1.msra.mxu0 %v132
    %1079 = vmatprep.subr.mxu0 0.0
    %1080 = vmatpush1.msra.mxu0 %v129
    %1081 = vmatprep.subr.mxu0 0.0
    %1082 = vmatpush1.msra.mxu0 %v126
    %1083 = vmatprep.subr.mxu0 0.0
    %1084 = vmatpush1.msra.mxu0 %v123
    %1085 = vmatprep.subr.mxu0 0.0
    %1086 = vmatpush1.msra.mxu0 %v120
    %1087 = vmatprep.subr.mxu0 0.0
    %1088 = vmatpush1.msra.mxu0 %v117
    %1089 = vmatprep.subr.mxu0 0.0
    %1090 = vmatpush1.msra.mxu0 %v114
    %1091 = vmatprep.subr.mxu0 0.0
    %1092 = vmatpush1.msra.mxu0 %v111
    %1093 = vmatprep.subr.mxu0 0.0
    %1094 = vmatpush1.msra.mxu0 %v108
    %1095 = vmatprep.subr.mxu0 0.0
    %1096 = vmatpush1.msra.mxu0 %v105
    %1097 = vmatprep.subr.mxu0 0.0
    %1098 = vmatpush1.msra.mxu0 %v102
    %1099 = vmatprep.subr.mxu0 0.0
    %1100 = vmatpush1.msra.mxu0 %v99
    %1101 = vmatprep.subr.mxu0 0.0
    %1102 = vmatpush1.msra.mxu0 %v96
    %1103 = vmatprep.subr.mxu0 0.0
    %1104 = vmatpush1.msra.mxu0 %v93
    %1105 = vmatprep.subr.mxu0 0.0
    %1106 = vmatpush1.msra.mxu0 %v90
    %1107 = vmatprep.subr.mxu0 0.0
    %1108 = vmatpush2.msra.mxu0 0.0
    %1109 = vmatprep.subr.mxu0 0.0
    %1110 = vmatpush2.msra.mxu0 0.0
    %1111 = vmatprep.subr.mxu0 0.0
    %1112 = vmatpush2.msra.mxu0 0.0
    %1113 = vmatprep.subr.mxu0 0.0
    %1114 = vmatpush2.msra.mxu0 0.0
    %1115 = vmatprep.subr.mxu0 0.0
    %1116 = vmatpush2.msra.mxu0 0.0
    %1117 = vmatprep.subr.mxu0 0.0
    %1118 = vmatpush2.msra.mxu0 0.0
    %1119 = vmatprep.subr.mxu0 0.0
    %1120 = vmatpush2.msra.mxu0 0.0
    %1121 = vmatprep.subr.mxu0 0.0
    %1122 = vmatpush2.msra.mxu0 0.0
    %1123 = vmatprep.subr.mxu0 0.0
    %1124 = vmatpush2.msra.mxu0 0.0
    %1125 = vmatprep.subr.mxu0 0.0
    %1126 = vmatpush2.msra.mxu0 0.0
    %1127 = vmatprep.subr.mxu0 0.0
    %1128 = vmatpush2.msra.mxu0 0.0
    %1129 = vmatprep.subr.mxu0 0.0
    %1130 = vmatpush2.msra.mxu0 0.0
    %1131 = vmatprep.subr.mxu0 0.0
    %1132 = vmatpush2.msra.mxu0 0.0
    %1133 = vmatprep.subr.mxu0 0.0
    %1134 = vmatpush2.msra.mxu0 0.0
    %1135 = vmatprep.subr.mxu0 0.0
    %1136 = vmatpush2.msra.mxu0 0.0
    %1137 = vmatprep.subr.mxu0 0.0
    %1138 = vmatpush2.msra.mxu0 0.0
    %1139 = vmatprep.mubr.f32.mxu0 0.0
    %1140 = vmatmul.mubr.f32.gmra.mxu0 %v999
    %v1141 = vpop.f32.mrf.mxu0
    %v1142 = vadd.f32 0.0, %v1141
    %v1143 = vpop.f32.mrf.mxu0
    %1144 = vdwg.mxu0
    %v1145 = vadd.f32 %v1003, %v1071
    %v1146 = vxor.u32 %v1145, 2147483648
    %v1147 = vmul.f32 %v1146, 1.442695
    %v1148 = vpow.pop %v1147
    %v1149 = vadd.f32 %v1148, 1.0
    %v1150 = vrcp.pop %v1149
    %v1151 = vmul.f32 1.0, %v1150
    %v1153 = vrot.slane %v1003, 2
    %v1155 = vadd.f32 %v1153, %v1073
    %v1156 = vxor.u32 %v1155, 2147483648
    %v1157 = vmul.f32 %v1156, 1.442695
    %v1158 = vpow.pop %v1157
    %v1159 = vadd.f32 %v1158, 1.0
    %v1160 = vrcp.pop %v1159
    %v1161 = vmul.f32 1.0, %v1160
    %v1162 = vadd.f32 %v1142, %v301
    %v1163 = vmul.f32 %v1151, %v1162
    %v1164 = vrot.slane %v1003, 4
    %v1166 = vadd.f32 %v1164, %v1163
    %v1167 = vtanh.pop %v1166
    %v1168 = vsub.f32 1.0, %v1161
    %v1169 = vmul.f32 %v1168, %v1167
    %v1170 = vmul.f32 %v1161, %v999
    %v1171 = vadd.f32 %v1169, %v1170
    %s1172 = scalar_lea.vmem [#allocation2], 10
    %1173 = vst [vmem:[%s1172] sm:$0x3] %v1171
    %s1174 = scalar_lea.vmem %s1, 36
    %v1175 = vld [vmem:[%s1174] sm:$0x3f]
    %1176 = vmatprep.subr.mxu0 %v134
    %1177 = vmatpush1.msra.mxu0 %v133
    %1178 = vmatprep.subr.mxu0 %v131
    %1179 = vmatpush1.msra.mxu0 %v130
    %1180 = vmatprep.subr.mxu0 %v128
    %1181 = vmatpush1.msra.mxu0 %v127
    %1182 = vmatprep.subr.mxu0 %v125
    %1183 = vmatpush1.msra.mxu0 %v124
    %1184 = vmatprep.subr.mxu0 %v122
    %1185 = vmatpush1.msra.mxu0 %v121
    %1186 = vmatprep.subr.mxu0 %v119
    %1187 = vmatpush1.msra.mxu0 %v118
    %1188 = vmatprep.subr.mxu0 %v116
    %1189 = vmatpush1.msra.mxu0 %v115
    %1190 = vmatprep.subr.mxu0 %v113
    %1191 = vmatpush1.msra.mxu0 %v112
    %1192 = vmatprep.subr.mxu0 %v110
    %1193 = vmatpush1.msra.mxu0 %v109
    %1194 = vmatprep.subr.mxu0 %v107
    %1195 = vmatpush1.msra.mxu0 %v106
    %1196 = vmatprep.subr.mxu0 %v104
    %1197 = vmatpush1.msra.mxu0 %v103
    %1198 = vmatprep.subr.mxu0 %v101
    %1199 = vmatpush1.msra.mxu0 %v100
    %1200 = vmatprep.subr.mxu0 %v98
    %1201 = vmatpush1.msra.mxu0 %v97
    %1202 = vmatprep.subr.mxu0 %v95
    %1203 = vmatpush1.msra.mxu0 %v94
    %1204 = vmatprep.subr.mxu0 %v92
    %1205 = vmatpush1.msra.mxu0 %v91
    %1206 = vmatprep.subr.mxu0 %v89
    %1207 = vmatpush1.msra.mxu0 %v88
    %1208 = vmatprep.subr.mxu0 0.0
    %1209 = vmatpush2.msra.mxu0 0.0
    %1210 = vmatprep.subr.mxu0 0.0
    %1211 = vmatpush2.msra.mxu0 0.0
    %1212 = vmatprep.subr.mxu0 0.0
    %1213 = vmatpush2.msra.mxu0 0.0
    %1214 = vmatprep.subr.mxu0 0.0
    %1215 = vmatpush2.msra.mxu0 0.0
    %1216 = vmatprep.subr.mxu0 0.0
    %1217 = vmatpush2.msra.mxu0 0.0
    %1218 = vmatprep.subr.mxu0 0.0
    %1219 = vmatpush2.msra.mxu0 0.0
    %1220 = vmatprep.subr.mxu0 0.0
    %1221 = vmatpush2.msra.mxu0 0.0
    %1222 = vmatprep.subr.mxu0 0.0
    %1223 = vmatpush2.msra.mxu0 0.0
    %1224 = vmatprep.subr.mxu0 0.0
    %1225 = vmatpush2.msra.mxu0 0.0
    %1226 = vmatprep.subr.mxu0 0.0
    %1227 = vmatpush2.msra.mxu0 0.0
    %1228 = vmatprep.subr.mxu0 0.0
    %1229 = vmatpush2.msra.mxu0 0.0
    %1230 = vmatprep.subr.mxu0 0.0
    %1231 = vmatpush2.msra.mxu0 0.0
    %1232 = vmatprep.subr.mxu0 0.0
    %1233 = vmatpush2.msra.mxu0 0.0
    %1234 = vmatprep.subr.mxu0 0.0
    %1235 = vmatpush2.msra.mxu0 0.0
    %1236 = vmatprep.subr.mxu0 0.0
    %1237 = vmatpush2.msra.mxu0 0.0
    %1238 = vmatprep.subr.mxu0 0.0
    %1239 = vmatpush2.msra.mxu0 0.0
    %1240 = vmatprep.mubr.f32.mxu0 0.0
    %1241 = vmatmul.mubr.f32.gmra.mxu0 %v1171
    %v1242 = vpop.f32.mrf.mxu0
    %v1243 = vadd.f32 0.0, %v1242
    %v1244 = vpop.f32.mrf.mxu0
    %v1245 = vadd.f32 0.0, %v1244
    %1246 = vdwg.mxu0
    %1247 = vmatprep.subr.mxu0 0.0
    %1248 = vmatpush1.msra.mxu0 %v135
    %1249 = vmatprep.subr.mxu0 0.0
    %1250 = vmatpush1.msra.mxu0 %v132
    %1251 = vmatprep.subr.mxu0 0.0
    %1252 = vmatpush1.msra.mxu0 %v129
    %1253 = vmatprep.subr.mxu0 0.0
    %1254 = vmatpush1.msra.mxu0 %v126
    %1255 = vmatprep.subr.mxu0 0.0
    %1256 = vmatpush1.msra.mxu0 %v123
    %1257 = vmatprep.subr.mxu0 0.0
    %1258 = vmatpush1.msra.mxu0 %v120
    %1259 = vmatprep.subr.mxu0 0.0
    %1260 = vmatpush1.msra.mxu0 %v117
    %1261 = vmatprep.subr.mxu0 0.0
    %1262 = vmatpush1.msra.mxu0 %v114
    %1263 = vmatprep.subr.mxu0 0.0
    %1264 = vmatpush1.msra.mxu0 %v111
    %1265 = vmatprep.subr.mxu0 0.0
    %1266 = vmatpush1.msra.mxu0 %v108
    %1267 = vmatprep.subr.mxu0 0.0
    %1268 = vmatpush1.msra.mxu0 %v105
    %1269 = vmatprep.subr.mxu0 0.0
    %1270 = vmatpush1.msra.mxu0 %v102
    %1271 = vmatprep.subr.mxu0 0.0
    %1272 = vmatpush1.msra.mxu0 %v99
    %1273 = vmatprep.subr.mxu0 0.0
    %1274 = vmatpush1.msra.mxu0 %v96
    %1275 = vmatprep.subr.mxu0 0.0
    %1276 = vmatpush1.msra.mxu0 %v93
    %1277 = vmatprep.subr.mxu0 0.0
    %1278 = vmatpush1.msra.mxu0 %v90
    %1279 = vmatprep.subr.mxu0 0.0
    %1280 = vmatpush2.msra.mxu0 0.0
    %1281 = vmatprep.subr.mxu0 0.0
    %1282 = vmatpush2.msra.mxu0 0.0
    %1283 = vmatprep.subr.mxu0 0.0
    %1284 = vmatpush2.msra.mxu0 0.0
    %1285 = vmatprep.subr.mxu0 0.0
    %1286 = vmatpush2.msra.mxu0 0.0
    %1287 = vmatprep.subr.mxu0 0.0
    %1288 = vmatpush2.msra.mxu0 0.0
    %1289 = vmatprep.subr.mxu0 0.0
    %1290 = vmatpush2.msra.mxu0 0.0
    %1291 = vmatprep.subr.mxu0 0.0
    %1292 = vmatpush2.msra.mxu0 0.0
    %1293 = vmatprep.subr.mxu0 0.0
    %1294 = vmatpush2.msra.mxu0 0.0
    %1295 = vmatprep.subr.mxu0 0.0
    %1296 = vmatpush2.msra.mxu0 0.0
    %1297 = vmatprep.subr.mxu0 0.0
    %1298 = vmatpush2.msra.mxu0 0.0
    %1299 = vmatprep.subr.mxu0 0.0
    %1300 = vmatpush2.msra.mxu0 0.0
    %1301 = vmatprep.subr.mxu0 0.0
    %1302 = vmatpush2.msra.mxu0 0.0
    %1303 = vmatprep.subr.mxu0 0.0
    %1304 = vmatpush2.msra.mxu0 0.0
    %1305 = vmatprep.subr.mxu0 0.0
    %1306 = vmatpush2.msra.mxu0 0.0
    %1307 = vmatprep.subr.mxu0 0.0
    %1308 = vmatpush2.msra.mxu0 0.0
    %1309 = vmatprep.subr.mxu0 0.0
    %1310 = vmatpush2.msra.mxu0 0.0
    %1311 = vmatprep.mubr.f32.mxu0 0.0
    %1312 = vmatmul.mubr.f32.gmra.mxu0 %v1171
    %v1313 = vpop.f32.mrf.mxu0
    %v1314 = vadd.f32 0.0, %v1313
    %v1315 = vpop.f32.mrf.mxu0
    %1316 = vdwg.mxu0
    %v1317 = vadd.f32 %v1175, %v1243
    %v1318 = vxor.u32 %v1317, 2147483648
    %v1319 = vmul.f32 %v1318, 1.442695
    %v1320 = vpow.pop %v1319
    %v1321 = vadd.f32 %v1320, 1.0
    %v1322 = vrcp.pop %v1321
    %v1323 = vmul.f32 1.0, %v1322
    %v1325 = vrot.slane %v1175, 2
    %v1327 = vadd.f32 %v1325, %v1245
    %v1328 = vxor.u32 %v1327, 2147483648
    %v1329 = vmul.f32 %v1328, 1.442695
    %v1330 = vpow.pop %v1329
    %v1331 = vadd.f32 %v1330, 1.0
    %v1332 = vrcp.pop %v1331
    %v1333 = vmul.f32 1.0, %v1332
    %v1334 = vadd.f32 %v1314, %v301
    %v1335 = vmul.f32 %v1323, %v1334
    %v1336 = vrot.slane %v1175, 4
    %v1338 = vadd.f32 %v1336, %v1335
    %v1339 = vtanh.pop %v1338
    %v1340 = vsub.f32 1.0, %v1333
    %v1341 = vmul.f32 %v1340, %v1339
    %v1342 = vmul.f32 %v1333, %v1171
    %v1343 = vadd.f32 %v1341, %v1342
    %s1344 = scalar_lea.vmem [#allocation2], 12
    %1345 = vst [vmem:[%s1344] sm:$0x3] %v1343
    %s1346 = scalar_lea.vmem %s1, 42
    %v1347 = vld [vmem:[%s1346] sm:$0x3f]
    %1348 = vmatprep.subr.mxu0 %v134
    %1349 = vmatpush1.msra.mxu0 %v133
    %1350 = vmatprep.subr.mxu0 %v131
    %1351 = vmatpush1.msra.mxu0 %v130
    %1352 = vmatprep.subr.mxu0 %v128
    %1353 = vmatpush1.msra.mxu0 %v127
    %1354 = vmatprep.subr.mxu0 %v125
    %1355 = vmatpush1.msra.mxu0 %v124
    %1356 = vmatprep.subr.mxu0 %v122
    %1357 = vmatpush1.msra.mxu0 %v121
    %1358 = vmatprep.subr.mxu0 %v119
    %1359 = vmatpush1.msra.mxu0 %v118
    %1360 = vmatprep.subr.mxu0 %v116
    %1361 = vmatpush1.msra.mxu0 %v115
    %1362 = vmatprep.subr.mxu0 %v113
    %1363 = vmatpush1.msra.mxu0 %v112
    %1364 = vmatprep.subr.mxu0 %v110
    %1365 = vmatpush1.msra.mxu0 %v109
    %1366 = vmatprep.subr.mxu0 %v107
    %1367 = vmatpush1.msra.mxu0 %v106
    %1368 = vmatprep.subr.mxu0 %v104
    %1369 = vmatpush1.msra.mxu0 %v103
    %1370 = vmatprep.subr.mxu0 %v101
    %1371 = vmatpush1.msra.mxu0 %v100
    %1372 = vmatprep.subr.mxu0 %v98
    %1373 = vmatpush1.msra.mxu0 %v97
    %1374 = vmatprep.subr.mxu0 %v95
    %1375 = vmatpush1.msra.mxu0 %v94
    %1376 = vmatprep.subr.mxu0 %v92
    %1377 = vmatpush1.msra.mxu0 %v91
    %1378 = vmatprep.subr.mxu0 %v89
    %1379 = vmatpush1.msra.mxu0 %v88
    %1380 = vmatprep.subr.mxu0 0.0
    %1381 = vmatpush2.msra.mxu0 0.0
    %1382 = vmatprep.subr.mxu0 0.0
    %1383 = vmatpush2.msra.mxu0 0.0
    %1384 = vmatprep.subr.mxu0 0.0
    %1385 = vmatpush2.msra.mxu0 0.0
    %1386 = vmatprep.subr.mxu0 0.0
    %1387 = vmatpush2.msra.mxu0 0.0
    %1388 = vmatprep.subr.mxu0 0.0
    %1389 = vmatpush2.msra.mxu0 0.0
    %1390 = vmatprep.subr.mxu0 0.0
    %1391 = vmatpush2.msra.mxu0 0.0
    %1392 = vmatprep.subr.mxu0 0.0
    %1393 = vmatpush2.msra.mxu0 0.0
    %1394 = vmatprep.subr.mxu0 0.0
    %1395 = vmatpush2.msra.mxu0 0.0
    %1396 = vmatprep.subr.mxu0 0.0
    %1397 = vmatpush2.msra.mxu0 0.0
    %1398 = vmatprep.subr.mxu0 0.0
    %1399 = vmatpush2.msra.mxu0 0.0
    %1400 = vmatprep.subr.mxu0 0.0
    %1401 = vmatpush2.msra.mxu0 0.0
    %1402 = vmatprep.subr.mxu0 0.0
    %1403 = vmatpush2.msra.mxu0 0.0
    %1404 = vmatprep.subr.mxu0 0.0
    %1405 = vmatpush2.msra.mxu0 0.0
    %1406 = vmatprep.subr.mxu0 0.0
    %1407 = vmatpush2.msra.mxu0 0.0
    %1408 = vmatprep.subr.mxu0 0.0
    %1409 = vmatpush2.msra.mxu0 0.0
    %1410 = vmatprep.subr.mxu0 0.0
    %1411 = vmatpush2.msra.mxu0 0.0
    %1412 = vmatprep.mubr.f32.mxu0 0.0
    %1413 = vmatmul.mubr.f32.gmra.mxu0 %v1343
    %v1414 = vpop.f32.mrf.mxu0
    %v1415 = vadd.f32 0.0, %v1414
    %v1416 = vpop.f32.mrf.mxu0
    %v1417 = vadd.f32 0.0, %v1416
    %1418 = vdwg.mxu0
    %1419 = vmatprep.subr.mxu0 0.0
    %1420 = vmatpush1.msra.mxu0 %v135
    %1421 = vmatprep.subr.mxu0 0.0
    %1422 = vmatpush1.msra.mxu0 %v132
    %1423 = vmatprep.subr.mxu0 0.0
    %1424 = vmatpush1.msra.mxu0 %v129
    %1425 = vmatprep.subr.mxu0 0.0
    %1426 = vmatpush1.msra.mxu0 %v126
    %1427 = vmatprep.subr.mxu0 0.0
    %1428 = vmatpush1.msra.mxu0 %v123
    %1429 = vmatprep.subr.mxu0 0.0
    %1430 = vmatpush1.msra.mxu0 %v120
    %1431 = vmatprep.subr.mxu0 0.0
    %1432 = vmatpush1.msra.mxu0 %v117
    %1433 = vmatprep.subr.mxu0 0.0
    %1434 = vmatpush1.msra.mxu0 %v114
    %1435 = vmatprep.subr.mxu0 0.0
    %1436 = vmatpush1.msra.mxu0 %v111
    %1437 = vmatprep.subr.mxu0 0.0
    %1438 = vmatpush1.msra.mxu0 %v108
    %1439 = vmatprep.subr.mxu0 0.0
    %1440 = vmatpush1.msra.mxu0 %v105
    %1441 = vmatprep.subr.mxu0 0.0
    %1442 = vmatpush1.msra.mxu0 %v102
    %1443 = vmatprep.subr.mxu0 0.0
    %1444 = vmatpush1.msra.mxu0 %v99
    %1445 = vmatprep.subr.mxu0 0.0
    %1446 = vmatpush1.msra.mxu0 %v96
    %1447 = vmatprep.subr.mxu0 0.0
    %1448 = vmatpush1.msra.mxu0 %v93
    %1449 = vmatprep.subr.mxu0 0.0
    %1450 = vmatpush1.msra.mxu0 %v90
    %1451 = vmatprep.subr.mxu0 0.0
    %1452 = vmatpush2.msra.mxu0 0.0
    %1453 = vmatprep.subr.mxu0 0.0
    %1454 = vmatpush2.msra.mxu0 0.0
    %1455 = vmatprep.subr.mxu0 0.0
    %1456 = vmatpush2.msra.mxu0 0.0
    %1457 = vmatprep.subr.mxu0 0.0
    %1458 = vmatpush2.msra.mxu0 0.0
    %1459 = vmatprep.subr.mxu0 0.0
    %1460 = vmatpush2.msra.mxu0 0.0
    %1461 = vmatprep.subr.mxu0 0.0
    %1462 = vmatpush2.msra.mxu0 0.0
    %1463 = vmatprep.subr.mxu0 0.0
    %1464 = vmatpush2.msra.mxu0 0.0
    %1465 = vmatprep.subr.mxu0 0.0
    %1466 = vmatpush2.msra.mxu0 0.0
    %1467 = vmatprep.subr.mxu0 0.0
    %1468 = vmatpush2.msra.mxu0 0.0
    %1469 = vmatprep.subr.mxu0 0.0
    %1470 = vmatpush2.msra.mxu0 0.0
    %1471 = vmatprep.subr.mxu0 0.0
    %1472 = vmatpush2.msra.mxu0 0.0
    %1473 = vmatprep.subr.mxu0 0.0
    %1474 = vmatpush2.msra.mxu0 0.0
    %1475 = vmatprep.subr.mxu0 0.0
    %1476 = vmatpush2.msra.mxu0 0.0
    %1477 = vmatprep.subr.mxu0 0.0
    %1478 = vmatpush2.msra.mxu0 0.0
    %1479 = vmatprep.subr.mxu0 0.0
    %1480 = vmatpush2.msra.mxu0 0.0
    %1481 = vmatprep.subr.mxu0 0.0
    %1482 = vmatpush2.msra.mxu0 0.0
    %1483 = vmatprep.mubr.f32.mxu0 0.0
    %1484 = vmatmul.mubr.f32.gmra.mxu0 %v1343
    %v1485 = vpop.f32.mrf.mxu0
    %v1486 = vadd.f32 0.0, %v1485
    %v1487 = vpop.f32.mrf.mxu0
    %1488 = vdwg.mxu0
    %v1489 = vadd.f32 %v1347, %v1415
    %v1490 = vxor.u32 %v1489, 2147483648
    %v1491 = vmul.f32 %v1490, 1.442695
    %v1492 = vpow.pop %v1491
    %v1493 = vadd.f32 %v1492, 1.0
    %v1494 = vrcp.pop %v1493
    %v1495 = vmul.f32 1.0, %v1494
    %v1497 = vrot.slane %v1347, 2
    %v1499 = vadd.f32 %v1497, %v1417
    %v1500 = vxor.u32 %v1499, 2147483648
    %v1501 = vmul.f32 %v1500, 1.442695
    %v1502 = vpow.pop %v1501
    %v1503 = vadd.f32 %v1502, 1.0
    %v1504 = vrcp.pop %v1503
    %v1505 = vmul.f32 1.0, %v1504
    %v1506 = vadd.f32 %v1486, %v301
    %v1507 = vmul.f32 %v1495, %v1506
    %v1508 = vrot.slane %v1347, 4
    %v1510 = vadd.f32 %v1508, %v1507
    %v1511 = vtanh.pop %v1510
    %v1512 = vsub.f32 1.0, %v1505
    %v1513 = vmul.f32 %v1512, %v1511
    %v1514 = vmul.f32 %v1505, %v1343
    %v1515 = vadd.f32 %v1513, %v1514
    %s1516 = scalar_lea.vmem [#allocation2], 14
    %1517 = vst [vmem:[%s1516] sm:$0x3] %v1515
    %v1518 = vld [vmem:[#allocation7] sm:$0xff]
    %v1519 = vld [vmem:[#allocation7 + $0x8] sm:$0xff]
    %v1520 = vld [vmem:[#allocation7 + $0x10] sm:$0xff]
    %v1521 = vld [vmem:[#allocation7 + $0x18] sm:$0xff]
    %v1522 = vld [vmem:[#allocation7 + $0x20] sm:$0xff]
    %v1523 = vld [vmem:[#allocation7 + $0x28] sm:$0xff]
    %v1524 = vld [vmem:[#allocation7 + $0x30] sm:$0xff]
    %v1525 = vld [vmem:[#allocation7 + $0x38] sm:$0xff]
    %v1526 = vld [vmem:[#allocation7 + $0x40] sm:$0xff]
    %v1527 = vld [vmem:[#allocation7 + $0x48] sm:$0xff]
    %v1528 = vld [vmem:[#allocation7 + $0x50] sm:$0xff]
    %v1529 = vld [vmem:[#allocation7 + $0x58] sm:$0xff]
    %v1530 = vld [vmem:[#allocation7 + $0x60] sm:$0xff]
    %v1531 = vld [vmem:[#allocation7 + $0x68] sm:$0xff]
    %v1532 = vld [vmem:[#allocation7 + $0x70] sm:$0xff]
    %v1533 = vld [vmem:[#allocation7 + $0x78] sm:$0xff]
    %v1534 = vld [vmem:[#allocation7 + $0x80] sm:$0xff]
    %v1535 = vld [vmem:[#allocation7 + $0x88] sm:$0xff]
    %v1536 = vld [vmem:[#allocation7 + $0x90] sm:$0xff]
    %v1537 = vld [vmem:[#allocation7 + $0x98] sm:$0xff]
    %v1538 = vld [vmem:[#allocation7 + $0xa0] sm:$0xff]
    %v1539 = vld [vmem:[#allocation7 + $0xa8] sm:$0xff]
    %v1540 = vld [vmem:[#allocation7 + $0xb0] sm:$0xff]
    %v1541 = vld [vmem:[#allocation7 + $0xb8] sm:$0xff]
    %v1542 = vld [vmem:[#allocation7 + $0xc0] sm:$0xff]
    %v1543 = vld [vmem:[#allocation7 + $0xc8] sm:$0xff]
    %v1544 = vld [vmem:[#allocation7 + $0xd0] sm:$0xff]
    %v1545 = vld [vmem:[#allocation7 + $0xd8] sm:$0xff]
    %v1546 = vld [vmem:[#allocation7 + $0xe0] sm:$0xff]
    %v1547 = vld [vmem:[#allocation7 + $0xe8] sm:$0xff]
    %v1548 = vld [vmem:[#allocation7 + $0xf0] sm:$0xff]
    %v1549 = vld [vmem:[#allocation7 + $0xf8] sm:$0xff]
    %v1550 = vld [vmem:[#allocation7 + $0x100] sm:$0xff]
    %v1551 = vld [vmem:[#allocation7 + $0x108] sm:$0xff]
    %v1552 = vld [vmem:[#allocation7 + $0x110] sm:$0xff]
    %v1553 = vld [vmem:[#allocation7 + $0x118] sm:$0xff]
    %v1554 = vld [vmem:[#allocation7 + $0x120] sm:$0xff]
    %v1555 = vld [vmem:[#allocation7 + $0x128] sm:$0xff]
    %v1556 = vld [vmem:[#allocation7 + $0x130] sm:$0xff]
    %v1557 = vld [vmem:[#allocation7 + $0x138] sm:$0xff]
    %v1558 = vld [vmem:[#allocation7 + $0x140] sm:$0xff]
    %v1559 = vld [vmem:[#allocation7 + $0x148] sm:$0xff]
    %v1560 = vld [vmem:[#allocation7 + $0x150] sm:$0xff]
    %v1561 = vld [vmem:[#allocation7 + $0x158] sm:$0xff]
    %v1562 = vld [vmem:[#allocation7 + $0x160] sm:$0xff]
    %v1563 = vld [vmem:[#allocation7 + $0x168] sm:$0xff]
    %v1564 = vld [vmem:[#allocation7 + $0x170] sm:$0xff]
    %v1565 = vld [vmem:[#allocation7 + $0x178] sm:$0xff]
    %v1566 = vld [vmem:[%s6] sm:$0x1]
    %v1567 = vld [vmem:[#allocation9] sm:$0xff]
    %v1568 = vld [vmem:[#allocation9 + $0x8] sm:$0xff]
    %v1569 = vld [vmem:[#allocation9 + $0x10] sm:$0xff]
    %v1570 = vld [vmem:[#allocation9 + $0x18] sm:$0xff]
    %v1571 = vld [vmem:[#allocation9 + $0x20] sm:$0xff]
    %v1572 = vld [vmem:[#allocation9 + $0x28] sm:$0xff]
    %v1573 = vld [vmem:[#allocation9 + $0x30] sm:$0xff]
    %v1574 = vld [vmem:[#allocation9 + $0x38] sm:$0xff]
    %v1575 = vld [vmem:[#allocation9 + $0x40] sm:$0xff]
    %v1576 = vld [vmem:[#allocation9 + $0x48] sm:$0xff]
    %v1577 = vld [vmem:[#allocation9 + $0x50] sm:$0xff]
    %v1578 = vld [vmem:[#allocation9 + $0x58] sm:$0xff]
    %v1579 = vld [vmem:[#allocation9 + $0x60] sm:$0xff]
    %v1580 = vld [vmem:[#allocation9 + $0x68] sm:$0xff]
    %v1581 = vld [vmem:[#allocation9 + $0x70] sm:$0xff]
    %v1582 = vld [vmem:[#allocation9 + $0x78] sm:$0xff]
    %v1583 = vld [vmem:[#allocation9 + $0x80] sm:$0xff]
    %v1584 = vld [vmem:[#allocation9 + $0x88] sm:$0xff]
    %v1585 = vld [vmem:[#allocation9 + $0x90] sm:$0xff]
    %v1586 = vld [vmem:[#allocation9 + $0x98] sm:$0xff]
    %v1587 = vld [vmem:[#allocation9 + $0xa0] sm:$0xff]
    %v1588 = vld [vmem:[#allocation9 + $0xa8] sm:$0xff]
    %v1589 = vld [vmem:[#allocation9 + $0xb0] sm:$0xff]
    %v1590 = vld [vmem:[#allocation9 + $0xb8] sm:$0xff]
    %v1591 = vld [vmem:[#allocation9 + $0xc0] sm:$0xff]
    %v1592 = vld [vmem:[#allocation9 + $0xc8] sm:$0xff]
    %v1593 = vld [vmem:[#allocation9 + $0xd0] sm:$0xff]
    %v1594 = vld [vmem:[#allocation9 + $0xd8] sm:$0xff]
    %v1595 = vld [vmem:[#allocation9 + $0xe0] sm:$0xff]
    %v1596 = vld [vmem:[#allocation9 + $0xe8] sm:$0xff]
    %v1597 = vld [vmem:[#allocation9 + $0xf0] sm:$0xff]
    %v1598 = vld [vmem:[#allocation9 + $0xf8] sm:$0xff]
    %v1599 = vld [vmem:[#allocation9 + $0x100] sm:$0xff]
    %v1600 = vld [vmem:[#allocation9 + $0x108] sm:$0xff]
    %v1601 = vld [vmem:[#allocation9 + $0x110] sm:$0xff]
    %v1602 = vld [vmem:[#allocation9 + $0x118] sm:$0xff]
    %v1603 = vld [vmem:[#allocation9 + $0x120] sm:$0xff]
    %v1604 = vld [vmem:[#allocation9 + $0x128] sm:$0xff]
    %v1605 = vld [vmem:[#allocation9 + $0x130] sm:$0xff]
    %v1606 = vld [vmem:[#allocation9 + $0x138] sm:$0xff]
    %v1607 = vld [vmem:[#allocation9 + $0x140] sm:$0xff]
    %v1608 = vld [vmem:[#allocation9 + $0x148] sm:$0xff]
    %v1609 = vld [vmem:[#allocation9 + $0x150] sm:$0xff]
    %v1610 = vld [vmem:[#allocation9 + $0x158] sm:$0xff]
    %v1611 = vld [vmem:[#allocation9 + $0x160] sm:$0xff]
    %v1612 = vld [vmem:[#allocation9 + $0x168] sm:$0xff]
    %v1613 = vld [vmem:[#allocation9 + $0x170] sm:$0xff]
    %v1614 = vld [vmem:[#allocation9 + $0x178] sm:$0xff]
    %v1615 = vld [vmem:[%s8] sm:$0x7]
    %v1616 = vld [vmem:[#allocation2] sm:$0x3]
    %v1618 = vlaneseq
    %v1619 = vshrl.u32 %v1618, 7
    %v1620 = vsub.s32 0, %v1619
    %v1621 = vrot.slane %v1615, %v1620
    %v1622 = vlaneseq
    %v1623 = vshrl.u32 %v1622, 7
    %v1624 = vsub.s32 1, %v1623
    %v1625 = vrot.slane %v1615, %v1624
    %v1626 = vlaneseq
    %v1627 = vshrl.u32 %v1626, 7
    %v1628 = vsub.s32 2, %v1627
    %v1629 = vrot.slane %v1615, %v1628
    %1633 = vmatprep.subr.mxu0 %v1613
    %1634 = vmatpush1.msra.mxu0 %v1612
    %1635 = vmatprep.subr.mxu0 %v1610
    %1636 = vmatpush1.msra.mxu0 %v1609
    %1637 = vmatprep.subr.mxu0 %v1607
    %1638 = vmatpush1.msra.mxu0 %v1606
    %1639 = vmatprep.subr.mxu0 %v1604
    %1640 = vmatpush1.msra.mxu0 %v1603
    %1641 = vmatprep.subr.mxu0 %v1601
    %1642 = vmatpush1.msra.mxu0 %v1600
    %1643 = vmatprep.subr.mxu0 %v1598
    %1644 = vmatpush1.msra.mxu0 %v1597
    %1645 = vmatprep.subr.mxu0 %v1595
    %1646 = vmatpush1.msra.mxu0 %v1594
    %1647 = vmatprep.subr.mxu0 %v1592
    %1648 = vmatpush1.msra.mxu0 %v1591
    %1649 = vmatprep.subr.mxu0 %v1589
    %1650 = vmatpush1.msra.mxu0 %v1588
    %1651 = vmatprep.subr.mxu0 %v1586
    %1652 = vmatpush1.msra.mxu0 %v1585
    %1653 = vmatprep.subr.mxu0 %v1583
    %1654 = vmatpush1.msra.mxu0 %v1582
    %1655 = vmatprep.subr.mxu0 %v1580
    %1656 = vmatpush1.msra.mxu0 %v1579
    %1657 = vmatprep.subr.mxu0 %v1577
    %1658 = vmatpush1.msra.mxu0 %v1576
    %1659 = vmatprep.subr.mxu0 %v1574
    %1660 = vmatpush1.msra.mxu0 %v1573
    %1661 = vmatprep.subr.mxu0 %v1571
    %1662 = vmatpush1.msra.mxu0 %v1570
    %1663 = vmatprep.subr.mxu0 %v1568
    %1664 = vmatpush1.msra.mxu0 %v1567
    %1665 = vmatprep.subr.mxu0 0.0
    %1666 = vmatpush2.msra.mxu0 0.0
    %1667 = vmatprep.subr.mxu0 0.0
    %1668 = vmatpush2.msra.mxu0 0.0
    %1669 = vmatprep.subr.mxu0 0.0
    %1670 = vmatpush2.msra.mxu0 0.0
    %1671 = vmatprep.subr.mxu0 0.0
    %1672 = vmatpush2.msra.mxu0 0.0
    %1673 = vmatprep.subr.mxu0 0.0
    %1674 = vmatpush2.msra.mxu0 0.0
    %1675 = vmatprep.subr.mxu0 0.0
    %1676 = vmatpush2.msra.mxu0 0.0
    %1677 = vmatprep.subr.mxu0 0.0
    %1678 = vmatpush2.msra.mxu0 0.0
    %1679 = vmatprep.subr.mxu0 0.0
    %1680 = vmatpush2.msra.mxu0 0.0
    %1681 = vmatprep.subr.mxu0 0.0
    %1682 = vmatpush2.msra.mxu0 0.0
    %1683 = vmatprep.subr.mxu0 0.0
    %1684 = vmatpush2.msra.mxu0 0.0
    %1685 = vmatprep.subr.mxu0 0.0
    %1686 = vmatpush2.msra.mxu0 0.0
    %1687 = vmatprep.subr.mxu0 0.0
    %1688 = vmatpush2.msra.mxu0 0.0
    %1689 = vmatprep.subr.mxu0 0.0
    %1690 = vmatpush2.msra.mxu0 0.0
    %1691 = vmatprep.subr.mxu0 0.0
    %1692 = vmatpush2.msra.mxu0 0.0
    %1693 = vmatprep.subr.mxu0 0.0
    %1694 = vmatpush2.msra.mxu0 0.0
    %1695 = vmatprep.subr.mxu0 0.0
    %1696 = vmatpush2.msra.mxu0 0.0
    %1697 = vmatprep.mubr.f32.mxu0 0.0
    %1698 = vmatmul.mubr.f32.gmra.mxu0 %v1616
    %v1699 = vpop.f32.mrf.mxu0
    %v1700 = vadd.f32 %v1621, %v1699
    %v1701 = vpop.f32.mrf.mxu0
    %v1702 = vadd.f32 %v1625, %v1701
    %1703 = vdwg.mxu0
    %1704 = vmatprep.subr.mxu0 0.0
    %1705 = vmatpush1.msra.mxu0 %v1614
    %1706 = vmatprep.subr.mxu0 0.0
    %1707 = vmatpush1.msra.mxu0 %v1611
    %1708 = vmatprep.subr.mxu0 0.0
    %1709 = vmatpush1.msra.mxu0 %v1608
    %1710 = vmatprep.subr.mxu0 0.0
    %1711 = vmatpush1.msra.mxu0 %v1605
    %1712 = vmatprep.subr.mxu0 0.0
    %1713 = vmatpush1.msra.mxu0 %v1602
    %1714 = vmatprep.subr.mxu0 0.0
    %1715 = vmatpush1.msra.mxu0 %v1599
    %1716 = vmatprep.subr.mxu0 0.0
    %1717 = vmatpush1.msra.mxu0 %v1596
    %1718 = vmatprep.subr.mxu0 0.0
    %1719 = vmatpush1.msra.mxu0 %v1593
    %1720 = vmatprep.subr.mxu0 0.0
    %1721 = vmatpush1.msra.mxu0 %v1590
    %1722 = vmatprep.subr.mxu0 0.0
    %1723 = vmatpush1.msra.mxu0 %v1587
    %1724 = vmatprep.subr.mxu0 0.0
    %1725 = vmatpush1.msra.mxu0 %v1584
    %1726 = vmatprep.subr.mxu0 0.0
    %1727 = vmatpush1.msra.mxu0 %v1581
    %1728 = vmatprep.subr.mxu0 0.0
    %1729 = vmatpush1.msra.mxu0 %v1578
    %1730 = vmatprep.subr.mxu0 0.0
    %1731 = vmatpush1.msra.mxu0 %v1575
    %1732 = vmatprep.subr.mxu0 0.0
    %1733 = vmatpush1.msra.mxu0 %v1572
    %1734 = vmatprep.subr.mxu0 0.0
    %1735 = vmatpush1.msra.mxu0 %v1569
    %1736 = vmatprep.subr.mxu0 0.0
    %1737 = vmatpush2.msra.mxu0 0.0
    %1738 = vmatprep.subr.mxu0 0.0
    %1739 = vmatpush2.msra.mxu0 0.0
    %1740 = vmatprep.subr.mxu0 0.0
    %1741 = vmatpush2.msra.mxu0 0.0
    %1742 = vmatprep.subr.mxu0 0.0
    %1743 = vmatpush2.msra.mxu0 0.0
    %1744 = vmatprep.subr.mxu0 0.0
    %1745 = vmatpush2.msra.mxu0 0.0
    %1746 = vmatprep.subr.mxu0 0.0
    %1747 = vmatpush2.msra.mxu0 0.0
    %1748 = vmatprep.subr.mxu0 0.0
    %1749 = vmatpush2.msra.mxu0 0.0
    %1750 = vmatprep.subr.mxu0 0.0
    %1751 = vmatpush2.msra.mxu0 0.0
    %1752 = vmatprep.subr.mxu0 0.0
    %1753 = vmatpush2.msra.mxu0 0.0
    %1754 = vmatprep.subr.mxu0 0.0
    %1755 = vmatpush2.msra.mxu0 0.0
    %1756 = vmatprep.subr.mxu0 0.0
    %1757 = vmatpush2.msra.mxu0 0.0
    %1758 = vmatprep.subr.mxu0 0.0
    %1759 = vmatpush2.msra.mxu0 0.0
    %1760 = vmatprep.subr.mxu0 0.0
    %1761 = vmatpush2.msra.mxu0 0.0
    %1762 = vmatprep.subr.mxu0 0.0
    %1763 = vmatpush2.msra.mxu0 0.0
    %1764 = vmatprep.subr.mxu0 0.0
    %1765 = vmatpush2.msra.mxu0 0.0
    %1766 = vmatprep.subr.mxu0 0.0
    %1767 = vmatpush2.msra.mxu0 0.0
    %1768 = vmatprep.mubr.f32.mxu0 0.0
    %1769 = vmatmul.mubr.f32.gmra.mxu0 %v1616
    %v1770 = vpop.f32.mrf.mxu0
    %v1771 = vadd.f32 %v1629, %v1770
    %v1772 = vpop.f32.mrf.mxu0
    %1773 = vdwg.mxu0
    %v1777 = vcombine.low %v1700, %v1702
    %v1779 = vunpack.c.l.s4 1983009808
    %v1780 = vunpack.c.0.s8 %v1779
    %v1781 = vlaneseq
    %v1782 = vshrl.u32 %v1781, 7
    %v1783 = vsub.s32 %v1780, %v1782
    %v1784 = vrot.slane %v1777, %v1783
    %v1786 = vunpack.c.l.s4 1983009808
    %v1787 = vunpack.c.0.s8 %v1786
    %v1788 = vlaneseq
    %v1789 = vshrl.u32 %v1788, 7
    %v1790 = vsub.s32 %v1787, %v1789
    %v1791 = vrot.slane %v1771, %v1790
    %v1792 = vcombine.low %v1784, %v1791
    %1794 = vst [vmem:[#allocation3] sm:$0x3f] %v1792
    %v1795 = vld [vmem:[%s484] sm:$0x3]
    %1796 = vmatprep.subr.mxu0 %v1613
    %1797 = vmatpush1.msra.mxu0 %v1612
    %1798 = vmatprep.subr.mxu0 %v1610
    %1799 = vmatpush1.msra.mxu0 %v1609
    %1800 = vmatprep.subr.mxu0 %v1607
    %1801 = vmatpush1.msra.mxu0 %v1606
    %1802 = vmatprep.subr.mxu0 %v1604
    %1803 = vmatpush1.msra.mxu0 %v1603
    %1804 = vmatprep.subr.mxu0 %v1601
    %1805 = vmatpush1.msra.mxu0 %v1600
    %1806 = vmatprep.subr.mxu0 %v1598
    %1807 = vmatpush1.msra.mxu0 %v1597
    %1808 = vmatprep.subr.mxu0 %v1595
    %1809 = vmatpush1.msra.mxu0 %v1594
    %1810 = vmatprep.subr.mxu0 %v1592
    %1811 = vmatpush1.msra.mxu0 %v1591
    %1812 = vmatprep.subr.mxu0 %v1589
    %1813 = vmatpush1.msra.mxu0 %v1588
    %1814 = vmatprep.subr.mxu0 %v1586
    %1815 = vmatpush1.msra.mxu0 %v1585
    %1816 = vmatprep.subr.mxu0 %v1583
    %1817 = vmatpush1.msra.mxu0 %v1582
    %1818 = vmatprep.subr.mxu0 %v1580
    %1819 = vmatpush1.msra.mxu0 %v1579
    %1820 = vmatprep.subr.mxu0 %v1577
    %1821 = vmatpush1.msra.mxu0 %v1576
    %1822 = vmatprep.subr.mxu0 %v1574
    %1823 = vmatpush1.msra.mxu0 %v1573
    %1824 = vmatprep.subr.mxu0 %v1571
    %1825 = vmatpush1.msra.mxu0 %v1570
    %1826 = vmatprep.subr.mxu0 %v1568
    %1827 = vmatpush1.msra.mxu0 %v1567
    %1828 = vmatprep.subr.mxu0 0.0
    %1829 = vmatpush2.msra.mxu0 0.0
    %1830 = vmatprep.subr.mxu0 0.0
    %1831 = vmatpush2.msra.mxu0 0.0
    %1832 = vmatprep.subr.mxu0 0.0
    %1833 = vmatpush2.msra.mxu0 0.0
    %1834 = vmatprep.subr.mxu0 0.0
    %1835 = vmatpush2.msra.mxu0 0.0
    %1836 = vmatprep.subr.mxu0 0.0
    %1837 = vmatpush2.msra.mxu0 0.0
    %1838 = vmatprep.subr.mxu0 0.0
    %1839 = vmatpush2.msra.mxu0 0.0
    %1840 = vmatprep.subr.mxu0 0.0
    %1841 = vmatpush2.msra.mxu0 0.0
    %1842 = vmatprep.subr.mxu0 0.0
    %1843 = vmatpush2.msra.mxu0 0.0
    %1844 = vmatprep.subr.mxu0 0.0
    %1845 = vmatpush2.msra.mxu0 0.0
    %1846 = vmatprep.subr.mxu0 0.0
    %1847 = vmatpush2.msra.mxu0 0.0
    %1848 = vmatprep.subr.mxu0 0.0
    %1849 = vmatpush2.msra.mxu0 0.0
    %1850 = vmatprep.subr.mxu0 0.0
    %1851 = vmatpush2.msra.mxu0 0.0
    %1852 = vmatprep.subr.mxu0 0.0
    %1853 = vmatpush2.msra.mxu0 0.0
    %1854 = vmatprep.subr.mxu0 0.0
    %1855 = vmatpush2.msra.mxu0 0.0
    %1856 = vmatprep.subr.mxu0 0.0
    %1857 = vmatpush2.msra.mxu0 0.0
    %1858 = vmatprep.subr.mxu0 0.0
    %1859 = vmatpush2.msra.mxu0 0.0
    %1860 = vmatprep.mubr.f32.mxu0 0.0
    %1861 = vmatmul.mubr.f32.gmra.mxu0 %v1795
    %v1862 = vpop.f32.mrf.mxu0
    %v1863 = vadd.f32 %v1621, %v1862
    %v1864 = vpop.f32.mrf.mxu0
    %v1865 = vadd.f32 %v1625, %v1864
    %1866 = vdwg.mxu0
    %1867 = vmatprep.subr.mxu0 0.0
    %1868 = vmatpush1.msra.mxu0 %v1614
    %1869 = vmatprep.subr.mxu0 0.0
    %1870 = vmatpush1.msra.mxu0 %v1611
    %1871 = vmatprep.subr.mxu0 0.0
    %1872 = vmatpush1.msra.mxu0 %v1608
    %1873 = vmatprep.subr.mxu0 0.0
    %1874 = vmatpush1.msra.mxu0 %v1605
    %1875 = vmatprep.subr.mxu0 0.0
    %1876 = vmatpush1.msra.mxu0 %v1602
    %1877 = vmatprep.subr.mxu0 0.0
    %1878 = vmatpush1.msra.mxu0 %v1599
    %1879 = vmatprep.subr.mxu0 0.0
    %1880 = vmatpush1.msra.mxu0 %v1596
    %1881 = vmatprep.subr.mxu0 0.0
    %1882 = vmatpush1.msra.mxu0 %v1593
    %1883 = vmatprep.subr.mxu0 0.0
    %1884 = vmatpush1.msra.mxu0 %v1590
    %1885 = vmatprep.subr.mxu0 0.0
    %1886 = vmatpush1.msra.mxu0 %v1587
    %1887 = vmatprep.subr.mxu0 0.0
    %1888 = vmatpush1.msra.mxu0 %v1584
    %1889 = vmatprep.subr.mxu0 0.0
    %1890 = vmatpush1.msra.mxu0 %v1581
    %1891 = vmatprep.subr.mxu0 0.0
    %1892 = vmatpush1.msra.mxu0 %v1578
    %1893 = vmatprep.subr.mxu0 0.0
    %1894 = vmatpush1.msra.mxu0 %v1575
    %1895 = vmatprep.subr.mxu0 0.0
    %1896 = vmatpush1.msra.mxu0 %v1572
    %1897 = vmatprep.subr.mxu0 0.0
    %1898 = vmatpush1.msra.mxu0 %v1569
    %1899 = vmatprep.subr.mxu0 0.0
    %1900 = vmatpush2.msra.mxu0 0.0
    %1901 = vmatprep.subr.mxu0 0.0
    %1902 = vmatpush2.msra.mxu0 0.0
    %1903 = vmatprep.subr.mxu0 0.0
    %1904 = vmatpush2.msra.mxu0 0.0
    %1905 = vmatprep.subr.mxu0 0.0
    %1906 = vmatpush2.msra.mxu0 0.0
    %1907 = vmatprep.subr.mxu0 0.0
    %1908 = vmatpush2.msra.mxu0 0.0
    %1909 = vmatprep.subr.mxu0 0.0
    %1910 = vmatpush2.msra.mxu0 0.0
    %1911 = vmatprep.subr.mxu0 0.0
    %1912 = vmatpush2.msra.mxu0 0.0
    %1913 = vmatprep.subr.mxu0 0.0
    %1914 = vmatpush2.msra.mxu0 0.0
    %1915 = vmatprep.subr.mxu0 0.0
    %1916 = vmatpush2.msra.mxu0 0.0
    %1917 = vmatprep.subr.mxu0 0.0
    %1918 = vmatpush2.msra.mxu0 0.0
    %1919 = vmatprep.subr.mxu0 0.0
    %1920 = vmatpush2.msra.mxu0 0.0
    %1921 = vmatprep.subr.mxu0 0.0
    %1922 = vmatpush2.msra.mxu0 0.0
    %1923 = vmatprep.subr.mxu0 0.0
    %1924 = vmatpush2.msra.mxu0 0.0
    %1925 = vmatprep.subr.mxu0 0.0
    %1926 = vmatpush2.msra.mxu0 0.0
    %1927 = vmatprep.subr.mxu0 0.0
    %1928 = vmatpush2.msra.mxu0 0.0
    %1929 = vmatprep.subr.mxu0 0.0
    %1930 = vmatpush2.msra.mxu0 0.0
    %1931 = vmatprep.mubr.f32.mxu0 0.0
    %1932 = vmatmul.mubr.f32.gmra.mxu0 %v1795
    %v1933 = vpop.f32.mrf.mxu0
    %v1934 = vadd.f32 %v1629, %v1933
    %v1935 = vpop.f32.mrf.mxu0
    %1936 = vdwg.mxu0
    %v1940 = vcombine.low %v1863, %v1865
    %v1942 = vunpack.c.l.s4 1983009808
    %v1943 = vunpack.c.0.s8 %v1942
    %v1944 = vlaneseq
    %v1945 = vshrl.u32 %v1944, 7
    %v1946 = vsub.s32 %v1943, %v1945
    %v1947 = vrot.slane %v1940, %v1946
    %v1949 = vunpack.c.l.s4 1983009808
    %v1950 = vunpack.c.0.s8 %v1949
    %v1951 = vlaneseq
    %v1952 = vshrl.u32 %v1951, 7
    %v1953 = vsub.s32 %v1950, %v1952
    %v1954 = vrot.slane %v1934, %v1953
    %v1955 = vcombine.low %v1947, %v1954
    %s1957 = scalar_lea.vmem [#allocation3], 6
    %1958 = vst [vmem:[%s1957] sm:$0x3f] %v1955
    %v1959 = vld [vmem:[%s656] sm:$0x3]
    %1960 = vmatprep.subr.mxu0 %v1613
    %1961 = vmatpush1.msra.mxu0 %v1612
    %1962 = vmatprep.subr.mxu0 %v1610
    %1963 = vmatpush1.msra.mxu0 %v1609
    %1964 = vmatprep.subr.mxu0 %v1607
    %1965 = vmatpush1.msra.mxu0 %v1606
    %1966 = vmatprep.subr.mxu0 %v1604
    %1967 = vmatpush1.msra.mxu0 %v1603
    %1968 = vmatprep.subr.mxu0 %v1601
    %1969 = vmatpush1.msra.mxu0 %v1600
    %1970 = vmatprep.subr.mxu0 %v1598
    %1971 = vmatpush1.msra.mxu0 %v1597
    %1972 = vmatprep.subr.mxu0 %v1595
    %1973 = vmatpush1.msra.mxu0 %v1594
    %1974 = vmatprep.subr.mxu0 %v1592
    %1975 = vmatpush1.msra.mxu0 %v1591
    %1976 = vmatprep.subr.mxu0 %v1589
    %1977 = vmatpush1.msra.mxu0 %v1588
    %1978 = vmatprep.subr.mxu0 %v1586
    %1979 = vmatpush1.msra.mxu0 %v1585
    %1980 = vmatprep.subr.mxu0 %v1583
    %1981 = vmatpush1.msra.mxu0 %v1582
    %1982 = vmatprep.subr.mxu0 %v1580
    %1983 = vmatpush1.msra.mxu0 %v1579
    %1984 = vmatprep.subr.mxu0 %v1577
    %1985 = vmatpush1.msra.mxu0 %v1576
    %1986 = vmatprep.subr.mxu0 %v1574
    %1987 = vmatpush1.msra.mxu0 %v1573
    %1988 = vmatprep.subr.mxu0 %v1571
    %1989 = vmatpush1.msra.mxu0 %v1570
    %1990 = vmatprep.subr.mxu0 %v1568
    %1991 = vmatpush1.msra.mxu0 %v1567
    %1992 = vmatprep.subr.mxu0 0.0
    %1993 = vmatpush2.msra.mxu0 0.0
    %1994 = vmatprep.subr.mxu0 0.0
    %1995 = vmatpush2.msra.mxu0 0.0
    %1996 = vmatprep.subr.mxu0 0.0
    %1997 = vmatpush2.msra.mxu0 0.0
    %1998 = vmatprep.subr.mxu0 0.0
    %1999 = vmatpush2.msra.mxu0 0.0
    %2000 = vmatprep.subr.mxu0 0.0
    %2001 = vmatpush2.msra.mxu0 0.0
    %2002 = vmatprep.subr.mxu0 0.0
    %2003 = vmatpush2.msra.mxu0 0.0
    %2004 = vmatprep.subr.mxu0 0.0
    %2005 = vmatpush2.msra.mxu0 0.0
    %2006 = vmatprep.subr.mxu0 0.0
    %2007 = vmatpush2.msra.mxu0 0.0
    %2008 = vmatprep.subr.mxu0 0.0
    %2009 = vmatpush2.msra.mxu0 0.0
    %2010 = vmatprep.subr.mxu0 0.0
    %2011 = vmatpush2.msra.mxu0 0.0
    %2012 = vmatprep.subr.mxu0 0.0
    %2013 = vmatpush2.msra.mxu0 0.0
    %2014 = vmatprep.subr.mxu0 0.0
    %2015 = vmatpush2.msra.mxu0 0.0
    %2016 = vmatprep.subr.mxu0 0.0
    %2017 = vmatpush2.msra.mxu0 0.0
    %2018 = vmatprep.subr.mxu0 0.0
    %2019 = vmatpush2.msra.mxu0 0.0
    %2020 = vmatprep.subr.mxu0 0.0
    %2021 = vmatpush2.msra.mxu0 0.0
    %2022 = vmatprep.subr.mxu0 0.0
    %2023 = vmatpush2.msra.mxu0 0.0
    %2024 = vmatprep.mubr.f32.mxu0 0.0
    %2025 = vmatmul.mubr.f32.gmra.mxu0 %v1959
    %v2026 = vpop.f32.mrf.mxu0
    %v2027 = vadd.f32 %v1621, %v2026
    %v2028 = vpop.f32.mrf.mxu0
    %v2029 = vadd.f32 %v1625, %v2028
    %2030 = vdwg.mxu0
    %2031 = vmatprep.subr.mxu0 0.0
    %2032 = vmatpush1.msra.mxu0 %v1614
    %2033 = vmatprep.subr.mxu0 0.0
    %2034 = vmatpush1.msra.mxu0 %v1611
    %2035 = vmatprep.subr.mxu0 0.0
    %2036 = vmatpush1.msra.mxu0 %v1608
    %2037 = vmatprep.subr.mxu0 0.0
    %2038 = vmatpush1.msra.mxu0 %v1605
    %2039 = vmatprep.subr.mxu0 0.0
    %2040 = vmatpush1.msra.mxu0 %v1602
    %2041 = vmatprep.subr.mxu0 0.0
    %2042 = vmatpush1.msra.mxu0 %v1599
    %2043 = vmatprep.subr.mxu0 0.0
    %2044 = vmatpush1.msra.mxu0 %v1596
    %2045 = vmatprep.subr.mxu0 0.0
    %2046 = vmatpush1.msra.mxu0 %v1593
    %2047 = vmatprep.subr.mxu0 0.0
    %2048 = vmatpush1.msra.mxu0 %v1590
    %2049 = vmatprep.subr.mxu0 0.0
    %2050 = vmatpush1.msra.mxu0 %v1587
    %2051 = vmatprep.subr.mxu0 0.0
    %2052 = vmatpush1.msra.mxu0 %v1584
    %2053 = vmatprep.subr.mxu0 0.0
    %2054 = vmatpush1.msra.mxu0 %v1581
    %2055 = vmatprep.subr.mxu0 0.0
    %2056 = vmatpush1.msra.mxu0 %v1578
    %2057 = vmatprep.subr.mxu0 0.0
    %2058 = vmatpush1.msra.mxu0 %v1575
    %2059 = vmatprep.subr.mxu0 0.0
    %2060 = vmatpush1.msra.mxu0 %v1572
    %2061 = vmatprep.subr.mxu0 0.0
    %2062 = vmatpush1.msra.mxu0 %v1569
    %2063 = vmatprep.subr.mxu0 0.0
    %2064 = vmatpush2.msra.mxu0 0.0
    %2065 = vmatprep.subr.mxu0 0.0
    %2066 = vmatpush2.msra.mxu0 0.0
    %2067 = vmatprep.subr.mxu0 0.0
    %2068 = vmatpush2.msra.mxu0 0.0
    %2069 = vmatprep.subr.mxu0 0.0
    %2070 = vmatpush2.msra.mxu0 0.0
    %2071 = vmatprep.subr.mxu0 0.0
    %2072 = vmatpush2.msra.mxu0 0.0
    %2073 = vmatprep.subr.mxu0 0.0
    %2074 = vmatpush2.msra.mxu0 0.0
    %2075 = vmatprep.subr.mxu0 0.0
    %2076 = vmatpush2.msra.mxu0 0.0
    %2077 = vmatprep.subr.mxu0 0.0
    %2078 = vmatpush2.msra.mxu0 0.0
    %2079 = vmatprep.subr.mxu0 0.0
    %2080 = vmatpush2.msra.mxu0 0.0
    %2081 = vmatprep.subr.mxu0 0.0
    %2082 = vmatpush2.msra.mxu0 0.0
    %2083 = vmatprep.subr.mxu0 0.0
    %2084 = vmatpush2.msra.mxu0 0.0
    %2085 = vmatprep.subr.mxu0 0.0
    %2086 = vmatpush2.msra.mxu0 0.0
    %2087 = vmatprep.subr.mxu0 0.0
    %2088 = vmatpush2.msra.mxu0 0.0
    %2089 = vmatprep.subr.mxu0 0.0
    %2090 = vmatpush2.msra.mxu0 0.0
    %2091 = vmatprep.subr.mxu0 0.0
    %2092 = vmatpush2.msra.mxu0 0.0
    %2093 = vmatprep.subr.mxu0 0.0
    %2094 = vmatpush2.msra.mxu0 0.0
    %2095 = vmatprep.mubr.f32.mxu0 0.0
    %2096 = vmatmul.mubr.f32.gmra.mxu0 %v1959
    %v2097 = vpop.f32.mrf.mxu0
    %v2098 = vadd.f32 %v1629, %v2097
    %v2099 = vpop.f32.mrf.mxu0
    %2100 = vdwg.mxu0
    %v2104 = vcombine.low %v2027, %v2029
    %v2106 = vunpack.c.l.s4 1983009808
    %v2107 = vunpack.c.0.s8 %v2106
    %v2108 = vlaneseq
    %v2109 = vshrl.u32 %v2108, 7
    %v2110 = vsub.s32 %v2107, %v2109
    %v2111 = vrot.slane %v2104, %v2110
    %v2113 = vunpack.c.l.s4 1983009808
    %v2114 = vunpack.c.0.s8 %v2113
    %v2115 = vlaneseq
    %v2116 = vshrl.u32 %v2115, 7
    %v2117 = vsub.s32 %v2114, %v2116
    %v2118 = vrot.slane %v2098, %v2117
    %v2119 = vcombine.low %v2111, %v2118
    %s2121 = scalar_lea.vmem [#allocation3], 12
    %2122 = vst [vmem:[%s2121] sm:$0x3f] %v2119
    %v2123 = vld [vmem:[%s828] sm:$0x3]
    %2124 = vmatprep.subr.mxu0 %v1613
    %2125 = vmatpush1.msra.mxu0 %v1612
    %2126 = vmatprep.subr.mxu0 %v1610
    %2127 = vmatpush1.msra.mxu0 %v1609
    %2128 = vmatprep.subr.mxu0 %v1607
    %2129 = vmatpush1.msra.mxu0 %v1606
    %2130 = vmatprep.subr.mxu0 %v1604
    %2131 = vmatpush1.msra.mxu0 %v1603
    %2132 = vmatprep.subr.mxu0 %v1601
    %2133 = vmatpush1.msra.mxu0 %v1600
    %2134 = vmatprep.subr.mxu0 %v1598
    %2135 = vmatpush1.msra.mxu0 %v1597
    %2136 = vmatprep.subr.mxu0 %v1595
    %2137 = vmatpush1.msra.mxu0 %v1594
    %2138 = vmatprep.subr.mxu0 %v1592
    %2139 = vmatpush1.msra.mxu0 %v1591
    %2140 = vmatprep.subr.mxu0 %v1589
    %2141 = vmatpush1.msra.mxu0 %v1588
    %2142 = vmatprep.subr.mxu0 %v1586
    %2143 = vmatpush1.msra.mxu0 %v1585
    %2144 = vmatprep.subr.mxu0 %v1583
    %2145 = vmatpush1.msra.mxu0 %v1582
    %2146 = vmatprep.subr.mxu0 %v1580
    %2147 = vmatpush1.msra.mxu0 %v1579
    %2148 = vmatprep.subr.mxu0 %v1577
    %2149 = vmatpush1.msra.mxu0 %v1576
    %2150 = vmatprep.subr.mxu0 %v1574
    %2151 = vmatpush1.msra.mxu0 %v1573
    %2152 = vmatprep.subr.mxu0 %v1571
    %2153 = vmatpush1.msra.mxu0 %v1570
    %2154 = vmatprep.subr.mxu0 %v1568
    %2155 = vmatpush1.msra.mxu0 %v1567
    %2156 = vmatprep.subr.mxu0 0.0
    %2157 = vmatpush2.msra.mxu0 0.0
    %2158 = vmatprep.subr.mxu0 0.0
    %2159 = vmatpush2.msra.mxu0 0.0
    %2160 = vmatprep.subr.mxu0 0.0
    %2161 = vmatpush2.msra.mxu0 0.0
    %2162 = vmatprep.subr.mxu0 0.0
    %2163 = vmatpush2.msra.mxu0 0.0
    %2164 = vmatprep.subr.mxu0 0.0
    %2165 = vmatpush2.msra.mxu0 0.0
    %2166 = vmatprep.subr.mxu0 0.0
    %2167 = vmatpush2.msra.mxu0 0.0
    %2168 = vmatprep.subr.mxu0 0.0
    %2169 = vmatpush2.msra.mxu0 0.0
    %2170 = vmatprep.subr.mxu0 0.0
    %2171 = vmatpush2.msra.mxu0 0.0
    %2172 = vmatprep.subr.mxu0 0.0
    %2173 = vmatpush2.msra.mxu0 0.0
    %2174 = vmatprep.subr.mxu0 0.0
    %2175 = vmatpush2.msra.mxu0 0.0
    %2176 = vmatprep.subr.mxu0 0.0
    %2177 = vmatpush2.msra.mxu0 0.0
    %2178 = vmatprep.subr.mxu0 0.0
    %2179 = vmatpush2.msra.mxu0 0.0
    %2180 = vmatprep.subr.mxu0 0.0
    %2181 = vmatpush2.msra.mxu0 0.0
    %2182 = vmatprep.subr.mxu0 0.0
    %2183 = vmatpush2.msra.mxu0 0.0
    %2184 = vmatprep.subr.mxu0 0.0
    %2185 = vmatpush2.msra.mxu0 0.0
    %2186 = vmatprep.subr.mxu0 0.0
    %2187 = vmatpush2.msra.mxu0 0.0
    %2188 = vmatprep.mubr.f32.mxu0 0.0
    %2189 = vmatmul.mubr.f32.gmra.mxu0 %v2123
    %v2190 = vpop.f32.mrf.mxu0
    %v2191 = vadd.f32 %v1621, %v2190
    %v2192 = vpop.f32.mrf.mxu0
    %v2193 = vadd.f32 %v1625, %v2192
    %2194 = vdwg.mxu0
    %2195 = vmatprep.subr.mxu0 0.0
    %2196 = vmatpush1.msra.mxu0 %v1614
    %2197 = vmatprep.subr.mxu0 0.0
    %2198 = vmatpush1.msra.mxu0 %v1611
    %2199 = vmatprep.subr.mxu0 0.0
    %2200 = vmatpush1.msra.mxu0 %v1608
    %2201 = vmatprep.subr.mxu0 0.0
    %2202 = vmatpush1.msra.mxu0 %v1605
    %2203 = vmatprep.subr.mxu0 0.0
    %2204 = vmatpush1.msra.mxu0 %v1602
    %2205 = vmatprep.subr.mxu0 0.0
    %2206 = vmatpush1.msra.mxu0 %v1599
    %2207 = vmatprep.subr.mxu0 0.0
    %2208 = vmatpush1.msra.mxu0 %v1596
    %2209 = vmatprep.subr.mxu0 0.0
    %2210 = vmatpush1.msra.mxu0 %v1593
    %2211 = vmatprep.subr.mxu0 0.0
    %2212 = vmatpush1.msra.mxu0 %v1590
    %2213 = vmatprep.subr.mxu0 0.0
    %2214 = vmatpush1.msra.mxu0 %v1587
    %2215 = vmatprep.subr.mxu0 0.0
    %2216 = vmatpush1.msra.mxu0 %v1584
    %2217 = vmatprep.subr.mxu0 0.0
    %2218 = vmatpush1.msra.mxu0 %v1581
    %2219 = vmatprep.subr.mxu0 0.0
    %2220 = vmatpush1.msra.mxu0 %v1578
    %2221 = vmatprep.subr.mxu0 0.0
    %2222 = vmatpush1.msra.mxu0 %v1575
    %2223 = vmatprep.subr.mxu0 0.0
    %2224 = vmatpush1.msra.mxu0 %v1572
    %2225 = vmatprep.subr.mxu0 0.0
    %2226 = vmatpush1.msra.mxu0 %v1569
    %2227 = vmatprep.subr.mxu0 0.0
    %2228 = vmatpush2.msra.mxu0 0.0
    %2229 = vmatprep.subr.mxu0 0.0
    %2230 = vmatpush2.msra.mxu0 0.0
    %2231 = vmatprep.subr.mxu0 0.0
    %2232 = vmatpush2.msra.mxu0 0.0
    %2233 = vmatprep.subr.mxu0 0.0
    %2234 = vmatpush2.msra.mxu0 0.0
    %2235 = vmatprep.subr.mxu0 0.0
    %2236 = vmatpush2.msra.mxu0 0.0
    %2237 = vmatprep.subr.mxu0 0.0
    %2238 = vmatpush2.msra.mxu0 0.0
    %2239 = vmatprep.subr.mxu0 0.0
    %2240 = vmatpush2.msra.mxu0 0.0
    %2241 = vmatprep.subr.mxu0 0.0
    %2242 = vmatpush2.msra.mxu0 0.0
    %2243 = vmatprep.subr.mxu0 0.0
    %2244 = vmatpush2.msra.mxu0 0.0
    %2245 = vmatprep.subr.mxu0 0.0
    %2246 = vmatpush2.msra.mxu0 0.0
    %2247 = vmatprep.subr.mxu0 0.0
    %2248 = vmatpush2.msra.mxu0 0.0
    %2249 = vmatprep.subr.mxu0 0.0
    %2250 = vmatpush2.msra.mxu0 0.0
    %2251 = vmatprep.subr.mxu0 0.0
    %2252 = vmatpush2.msra.mxu0 0.0
    %2253 = vmatprep.subr.mxu0 0.0
    %2254 = vmatpush2.msra.mxu0 0.0
    %2255 = vmatprep.subr.mxu0 0.0
    %2256 = vmatpush2.msra.mxu0 0.0
    %2257 = vmatprep.subr.mxu0 0.0
    %2258 = vmatpush2.msra.mxu0 0.0
    %2259 = vmatprep.mubr.f32.mxu0 0.0
    %2260 = vmatmul.mubr.f32.gmra.mxu0 %v2123
    %v2261 = vpop.f32.mrf.mxu0
    %v2262 = vadd.f32 %v1629, %v2261
    %v2263 = vpop.f32.mrf.mxu0
    %2264 = vdwg.mxu0
    %v2268 = vcombine.low %v2191, %v2193
    %v2270 = vunpack.c.l.s4 1983009808
    %v2271 = vunpack.c.0.s8 %v2270
    %v2272 = vlaneseq
    %v2273 = vshrl.u32 %v2272, 7
    %v2274 = vsub.s32 %v2271, %v2273
    %v2275 = vrot.slane %v2268, %v2274
    %v2277 = vunpack.c.l.s4 1983009808
    %v2278 = vunpack.c.0.s8 %v2277
    %v2279 = vlaneseq
    %v2280 = vshrl.u32 %v2279, 7
    %v2281 = vsub.s32 %v2278, %v2280
    %v2282 = vrot.slane %v2262, %v2281
    %v2283 = vcombine.low %v2275, %v2282
    %s2285 = scalar_lea.vmem [#allocation3], 18
    %2286 = vst [vmem:[%s2285] sm:$0x3f] %v2283
    %v2287 = vld [vmem:[%s1000] sm:$0x3]
    %2288 = vmatprep.subr.mxu0 %v1613
    %2289 = vmatpush1.msra.mxu0 %v1612
    %2290 = vmatprep.subr.mxu0 %v1610
    %2291 = vmatpush1.msra.mxu0 %v1609
    %2292 = vmatprep.subr.mxu0 %v1607
    %2293 = vmatpush1.msra.mxu0 %v1606
    %2294 = vmatprep.subr.mxu0 %v1604
    %2295 = vmatpush1.msra.mxu0 %v1603
    %2296 = vmatprep.subr.mxu0 %v1601
    %2297 = vmatpush1.msra.mxu0 %v1600
    %2298 = vmatprep.subr.mxu0 %v1598
    %2299 = vmatpush1.msra.mxu0 %v1597
    %2300 = vmatprep.subr.mxu0 %v1595
    %2301 = vmatpush1.msra.mxu0 %v1594
    %2302 = vmatprep.subr.mxu0 %v1592
    %2303 = vmatpush1.msra.mxu0 %v1591
    %2304 = vmatprep.subr.mxu0 %v1589
    %2305 = vmatpush1.msra.mxu0 %v1588
    %2306 = vmatprep.subr.mxu0 %v1586
    %2307 = vmatpush1.msra.mxu0 %v1585
    %2308 = vmatprep.subr.mxu0 %v1583
    %2309 = vmatpush1.msra.mxu0 %v1582
    %2310 = vmatprep.subr.mxu0 %v1580
    %2311 = vmatpush1.msra.mxu0 %v1579
    %2312 = vmatprep.subr.mxu0 %v1577
    %2313 = vmatpush1.msra.mxu0 %v1576
    %2314 = vmatprep.subr.mxu0 %v1574
    %2315 = vmatpush1.msra.mxu0 %v1573
    %2316 = vmatprep.subr.mxu0 %v1571
    %2317 = vmatpush1.msra.mxu0 %v1570
    %2318 = vmatprep.subr.mxu0 %v1568
    %2319 = vmatpush1.msra.mxu0 %v1567
    %2320 = vmatprep.subr.mxu0 0.0
    %2321 = vmatpush2.msra.mxu0 0.0
    %2322 = vmatprep.subr.mxu0 0.0
    %2323 = vmatpush2.msra.mxu0 0.0
    %2324 = vmatprep.subr.mxu0 0.0
    %2325 = vmatpush2.msra.mxu0 0.0
    %2326 = vmatprep.subr.mxu0 0.0
    %2327 = vmatpush2.msra.mxu0 0.0
    %2328 = vmatprep.subr.mxu0 0.0
    %2329 = vmatpush2.msra.mxu0 0.0
    %2330 = vmatprep.subr.mxu0 0.0
    %2331 = vmatpush2.msra.mxu0 0.0
    %2332 = vmatprep.subr.mxu0 0.0
    %2333 = vmatpush2.msra.mxu0 0.0
    %2334 = vmatprep.subr.mxu0 0.0
    %2335 = vmatpush2.msra.mxu0 0.0
    %2336 = vmatprep.subr.mxu0 0.0
    %2337 = vmatpush2.msra.mxu0 0.0
    %2338 = vmatprep.subr.mxu0 0.0
    %2339 = vmatpush2.msra.mxu0 0.0
    %2340 = vmatprep.subr.mxu0 0.0
    %2341 = vmatpush2.msra.mxu0 0.0
    %2342 = vmatprep.subr.mxu0 0.0
    %2343 = vmatpush2.msra.mxu0 0.0
    %2344 = vmatprep.subr.mxu0 0.0
    %2345 = vmatpush2.msra.mxu0 0.0
    %2346 = vmatprep.subr.mxu0 0.0
    %2347 = vmatpush2.msra.mxu0 0.0
    %2348 = vmatprep.subr.mxu0 0.0
    %2349 = vmatpush2.msra.mxu0 0.0
    %2350 = vmatprep.subr.mxu0 0.0
    %2351 = vmatpush2.msra.mxu0 0.0
    %2352 = vmatprep.mubr.f32.mxu0 0.0
    %2353 = vmatmul.mubr.f32.gmra.mxu0 %v2287
    %v2354 = vpop.f32.mrf.mxu0
    %v2355 = vadd.f32 %v1621, %v2354
    %v2356 = vpop.f32.mrf.mxu0
    %v2357 = vadd.f32 %v1625, %v2356
    %2358 = vdwg.mxu0
    %2359 = vmatprep.subr.mxu0 0.0
    %2360 = vmatpush1.msra.mxu0 %v1614
    %2361 = vmatprep.subr.mxu0 0.0
    %2362 = vmatpush1.msra.mxu0 %v1611
    %2363 = vmatprep.subr.mxu0 0.0
    %2364 = vmatpush1.msra.mxu0 %v1608
    %2365 = vmatprep.subr.mxu0 0.0
    %2366 = vmatpush1.msra.mxu0 %v1605
    %2367 = vmatprep.subr.mxu0 0.0
    %2368 = vmatpush1.msra.mxu0 %v1602
    %2369 = vmatprep.subr.mxu0 0.0
    %2370 = vmatpush1.msra.mxu0 %v1599
    %2371 = vmatprep.subr.mxu0 0.0
    %2372 = vmatpush1.msra.mxu0 %v1596
    %2373 = vmatprep.subr.mxu0 0.0
    %2374 = vmatpush1.msra.mxu0 %v1593
    %2375 = vmatprep.subr.mxu0 0.0
    %2376 = vmatpush1.msra.mxu0 %v1590
    %2377 = vmatprep.subr.mxu0 0.0
    %2378 = vmatpush1.msra.mxu0 %v1587
    %2379 = vmatprep.subr.mxu0 0.0
    %2380 = vmatpush1.msra.mxu0 %v1584
    %2381 = vmatprep.subr.mxu0 0.0
    %2382 = vmatpush1.msra.mxu0 %v1581
    %2383 = vmatprep.subr.mxu0 0.0
    %2384 = vmatpush1.msra.mxu0 %v1578
    %2385 = vmatprep.subr.mxu0 0.0
    %2386 = vmatpush1.msra.mxu0 %v1575
    %2387 = vmatprep.subr.mxu0 0.0
    %2388 = vmatpush1.msra.mxu0 %v1572
    %2389 = vmatprep.subr.mxu0 0.0
    %2390 = vmatpush1.msra.mxu0 %v1569
    %2391 = vmatprep.subr.mxu0 0.0
    %2392 = vmatpush2.msra.mxu0 0.0
    %2393 = vmatprep.subr.mxu0 0.0
    %2394 = vmatpush2.msra.mxu0 0.0
    %2395 = vmatprep.subr.mxu0 0.0
    %2396 = vmatpush2.msra.mxu0 0.0
    %2397 = vmatprep.subr.mxu0 0.0
    %2398 = vmatpush2.msra.mxu0 0.0
    %2399 = vmatprep.subr.mxu0 0.0
    %2400 = vmatpush2.msra.mxu0 0.0
    %2401 = vmatprep.subr.mxu0 0.0
    %2402 = vmatpush2.msra.mxu0 0.0
    %2403 = vmatprep.subr.mxu0 0.0
    %2404 = vmatpush2.msra.mxu0 0.0
    %2405 = vmatprep.subr.mxu0 0.0
    %2406 = vmatpush2.msra.mxu0 0.0
    %2407 = vmatprep.subr.mxu0 0.0
    %2408 = vmatpush2.msra.mxu0 0.0
    %2409 = vmatprep.subr.mxu0 0.0
    %2410 = vmatpush2.msra.mxu0 0.0
    %2411 = vmatprep.subr.mxu0 0.0
    %2412 = vmatpush2.msra.mxu0 0.0
    %2413 = vmatprep.subr.mxu0 0.0
    %2414 = vmatpush2.msra.mxu0 0.0
    %2415 = vmatprep.subr.mxu0 0.0
    %2416 = vmatpush2.msra.mxu0 0.0
    %2417 = vmatprep.subr.mxu0 0.0
    %2418 = vmatpush2.msra.mxu0 0.0
    %2419 = vmatprep.subr.mxu0 0.0
    %2420 = vmatpush2.msra.mxu0 0.0
    %2421 = vmatprep.subr.mxu0 0.0
    %2422 = vmatpush2.msra.mxu0 0.0
    %2423 = vmatprep.mubr.f32.mxu0 0.0
    %2424 = vmatmul.mubr.f32.gmra.mxu0 %v2287
    %v2425 = vpop.f32.mrf.mxu0
    %v2426 = vadd.f32 %v1629, %v2425
    %v2427 = vpop.f32.mrf.mxu0
    %2428 = vdwg.mxu0
    %v2432 = vcombine.low %v2355, %v2357
    %v2434 = vunpack.c.l.s4 1983009808
    %v2435 = vunpack.c.0.s8 %v2434
    %v2436 = vlaneseq
    %v2437 = vshrl.u32 %v2436, 7
    %v2438 = vsub.s32 %v2435, %v2437
    %v2439 = vrot.slane %v2432, %v2438
    %v2441 = vunpack.c.l.s4 1983009808
    %v2442 = vunpack.c.0.s8 %v2441
    %v2443 = vlaneseq
    %v2444 = vshrl.u32 %v2443, 7
    %v2445 = vsub.s32 %v2442, %v2444
    %v2446 = vrot.slane %v2426, %v2445
    %v2447 = vcombine.low %v2439, %v2446
    %s2449 = scalar_lea.vmem [#allocation3], 24
    %2450 = vst [vmem:[%s2449] sm:$0x3f] %v2447
    %v2451 = vld [vmem:[%s1172] sm:$0x3]
    %2452 = vmatprep.subr.mxu0 %v1613
    %2453 = vmatpush1.msra.mxu0 %v1612
    %2454 = vmatprep.subr.mxu0 %v1610
    %2455 = vmatpush1.msra.mxu0 %v1609
    %2456 = vmatprep.subr.mxu0 %v1607
    %2457 = vmatpush1.msra.mxu0 %v1606
    %2458 = vmatprep.subr.mxu0 %v1604
    %2459 = vmatpush1.msra.mxu0 %v1603
    %2460 = vmatprep.subr.mxu0 %v1601
    %2461 = vmatpush1.msra.mxu0 %v1600
    %2462 = vmatprep.subr.mxu0 %v1598
    %2463 = vmatpush1.msra.mxu0 %v1597
    %2464 = vmatprep.subr.mxu0 %v1595
    %2465 = vmatpush1.msra.mxu0 %v1594
    %2466 = vmatprep.subr.mxu0 %v1592
    %2467 = vmatpush1.msra.mxu0 %v1591
    %2468 = vmatprep.subr.mxu0 %v1589
    %2469 = vmatpush1.msra.mxu0 %v1588
    %2470 = vmatprep.subr.mxu0 %v1586
    %2471 = vmatpush1.msra.mxu0 %v1585
    %2472 = vmatprep.subr.mxu0 %v1583
    %2473 = vmatpush1.msra.mxu0 %v1582
    %2474 = vmatprep.subr.mxu0 %v1580
    %2475 = vmatpush1.msra.mxu0 %v1579
    %2476 = vmatprep.subr.mxu0 %v1577
    %2477 = vmatpush1.msra.mxu0 %v1576
    %2478 = vmatprep.subr.mxu0 %v1574
    %2479 = vmatpush1.msra.mxu0 %v1573
    %2480 = vmatprep.subr.mxu0 %v1571
    %2481 = vmatpush1.msra.mxu0 %v1570
    %2482 = vmatprep.subr.mxu0 %v1568
    %2483 = vmatpush1.msra.mxu0 %v1567
    %2484 = vmatprep.subr.mxu0 0.0
    %2485 = vmatpush2.msra.mxu0 0.0
    %2486 = vmatprep.subr.mxu0 0.0
    %2487 = vmatpush2.msra.mxu0 0.0
    %2488 = vmatprep.subr.mxu0 0.0
    %2489 = vmatpush2.msra.mxu0 0.0
    %2490 = vmatprep.subr.mxu0 0.0
    %2491 = vmatpush2.msra.mxu0 0.0
    %2492 = vmatprep.subr.mxu0 0.0
    %2493 = vmatpush2.msra.mxu0 0.0
    %2494 = vmatprep.subr.mxu0 0.0
    %2495 = vmatpush2.msra.mxu0 0.0
    %2496 = vmatprep.subr.mxu0 0.0
    %2497 = vmatpush2.msra.mxu0 0.0
    %2498 = vmatprep.subr.mxu0 0.0
    %2499 = vmatpush2.msra.mxu0 0.0
    %2500 = vmatprep.subr.mxu0 0.0
    %2501 = vmatpush2.msra.mxu0 0.0
    %2502 = vmatprep.subr.mxu0 0.0
    %2503 = vmatpush2.msra.mxu0 0.0
    %2504 = vmatprep.subr.mxu0 0.0
    %2505 = vmatpush2.msra.mxu0 0.0
    %2506 = vmatprep.subr.mxu0 0.0
    %2507 = vmatpush2.msra.mxu0 0.0
    %2508 = vmatprep.subr.mxu0 0.0
    %2509 = vmatpush2.msra.mxu0 0.0
    %2510 = vmatprep.subr.mxu0 0.0
    %2511 = vmatpush2.msra.mxu0 0.0
    %2512 = vmatprep.subr.mxu0 0.0
    %2513 = vmatpush2.msra.mxu0 0.0
    %2514 = vmatprep.subr.mxu0 0.0
    %2515 = vmatpush2.msra.mxu0 0.0
    %2516 = vmatprep.mubr.f32.mxu0 0.0
    %2517 = vmatmul.mubr.f32.gmra.mxu0 %v2451
    %v2518 = vpop.f32.mrf.mxu0
    %v2519 = vadd.f32 %v1621, %v2518
    %v2520 = vpop.f32.mrf.mxu0
    %v2521 = vadd.f32 %v1625, %v2520
    %2522 = vdwg.mxu0
    %2523 = vmatprep.subr.mxu0 0.0
    %2524 = vmatpush1.msra.mxu0 %v1614
    %2525 = vmatprep.subr.mxu0 0.0
    %2526 = vmatpush1.msra.mxu0 %v1611
    %2527 = vmatprep.subr.mxu0 0.0
    %2528 = vmatpush1.msra.mxu0 %v1608
    %2529 = vmatprep.subr.mxu0 0.0
    %2530 = vmatpush1.msra.mxu0 %v1605
    %2531 = vmatprep.subr.mxu0 0.0
    %2532 = vmatpush1.msra.mxu0 %v1602
    %2533 = vmatprep.subr.mxu0 0.0
    %2534 = vmatpush1.msra.mxu0 %v1599
    %2535 = vmatprep.subr.mxu0 0.0
    %2536 = vmatpush1.msra.mxu0 %v1596
    %2537 = vmatprep.subr.mxu0 0.0
    %2538 = vmatpush1.msra.mxu0 %v1593
    %2539 = vmatprep.subr.mxu0 0.0
    %2540 = vmatpush1.msra.mxu0 %v1590
    %2541 = vmatprep.subr.mxu0 0.0
    %2542 = vmatpush1.msra.mxu0 %v1587
    %2543 = vmatprep.subr.mxu0 0.0
    %2544 = vmatpush1.msra.mxu0 %v1584
    %2545 = vmatprep.subr.mxu0 0.0
    %2546 = vmatpush1.msra.mxu0 %v1581
    %2547 = vmatprep.subr.mxu0 0.0
    %2548 = vmatpush1.msra.mxu0 %v1578
    %2549 = vmatprep.subr.mxu0 0.0
    %2550 = vmatpush1.msra.mxu0 %v1575
    %2551 = vmatprep.subr.mxu0 0.0
    %2552 = vmatpush1.msra.mxu0 %v1572
    %2553 = vmatprep.subr.mxu0 0.0
    %2554 = vmatpush1.msra.mxu0 %v1569
    %2555 = vmatprep.subr.mxu0 0.0
    %2556 = vmatpush2.msra.mxu0 0.0
    %2557 = vmatprep.subr.mxu0 0.0
    %2558 = vmatpush2.msra.mxu0 0.0
    %2559 = vmatprep.subr.mxu0 0.0
    %2560 = vmatpush2.msra.mxu0 0.0
    %2561 = vmatprep.subr.mxu0 0.0
    %2562 = vmatpush2.msra.mxu0 0.0
    %2563 = vmatprep.subr.mxu0 0.0
    %2564 = vmatpush2.msra.mxu0 0.0
    %2565 = vmatprep.subr.mxu0 0.0
    %2566 = vmatpush2.msra.mxu0 0.0
    %2567 = vmatprep.subr.mxu0 0.0
    %2568 = vmatpush2.msra.mxu0 0.0
    %2569 = vmatprep.subr.mxu0 0.0
    %2570 = vmatpush2.msra.mxu0 0.0
    %2571 = vmatprep.subr.mxu0 0.0
    %2572 = vmatpush2.msra.mxu0 0.0
    %2573 = vmatprep.subr.mxu0 0.0
    %2574 = vmatpush2.msra.mxu0 0.0
    %2575 = vmatprep.subr.mxu0 0.0
    %2576 = vmatpush2.msra.mxu0 0.0
    %2577 = vmatprep.subr.mxu0 0.0
    %2578 = vmatpush2.msra.mxu0 0.0
    %2579 = vmatprep.subr.mxu0 0.0
    %2580 = vmatpush2.msra.mxu0 0.0
    %2581 = vmatprep.subr.mxu0 0.0
    %2582 = vmatpush2.msra.mxu0 0.0
    %2583 = vmatprep.subr.mxu0 0.0
    %2584 = vmatpush2.msra.mxu0 0.0
    %2585 = vmatprep.subr.mxu0 0.0
    %2586 = vmatpush2.msra.mxu0 0.0
    %2587 = vmatprep.mubr.f32.mxu0 0.0
    %2588 = vmatmul.mubr.f32.gmra.mxu0 %v2451
    %v2589 = vpop.f32.mrf.mxu0
    %v2590 = vadd.f32 %v1629, %v2589
    %v2591 = vpop.f32.mrf.mxu0
    %2592 = vdwg.mxu0
    %v2596 = vcombine.low %v2519, %v2521
    %v2598 = vunpack.c.l.s4 1983009808
    %v2599 = vunpack.c.0.s8 %v2598
    %v2600 = vlaneseq
    %v2601 = vshrl.u32 %v2600, 7
    %v2602 = vsub.s32 %v2599, %v2601
    %v2603 = vrot.slane %v2596, %v2602
    %v2605 = vunpack.c.l.s4 1983009808
    %v2606 = vunpack.c.0.s8 %v2605
    %v2607 = vlaneseq
    %v2608 = vshrl.u32 %v2607, 7
    %v2609 = vsub.s32 %v2606, %v2608
    %v2610 = vrot.slane %v2590, %v2609
    %v2611 = vcombine.low %v2603, %v2610
    %s2613 = scalar_lea.vmem [#allocation3], 30
    %2614 = vst [vmem:[%s2613] sm:$0x3f] %v2611
    %v2615 = vld [vmem:[%s1344] sm:$0x3]
    %2616 = vmatprep.subr.mxu0 %v1613
    %2617 = vmatpush1.msra.mxu0 %v1612
    %2618 = vmatprep.subr.mxu0 %v1610
    %2619 = vmatpush1.msra.mxu0 %v1609
    %2620 = vmatprep.subr.mxu0 %v1607
    %2621 = vmatpush1.msra.mxu0 %v1606
    %2622 = vmatprep.subr.mxu0 %v1604
    %2623 = vmatpush1.msra.mxu0 %v1603
    %2624 = vmatprep.subr.mxu0 %v1601
    %2625 = vmatpush1.msra.mxu0 %v1600
    %2626 = vmatprep.subr.mxu0 %v1598
    %2627 = vmatpush1.msra.mxu0 %v1597
    %2628 = vmatprep.subr.mxu0 %v1595
    %2629 = vmatpush1.msra.mxu0 %v1594
    %2630 = vmatprep.subr.mxu0 %v1592
    %2631 = vmatpush1.msra.mxu0 %v1591
    %2632 = vmatprep.subr.mxu0 %v1589
    %2633 = vmatpush1.msra.mxu0 %v1588
    %2634 = vmatprep.subr.mxu0 %v1586
    %2635 = vmatpush1.msra.mxu0 %v1585
    %2636 = vmatprep.subr.mxu0 %v1583
    %2637 = vmatpush1.msra.mxu0 %v1582
    %2638 = vmatprep.subr.mxu0 %v1580
    %2639 = vmatpush1.msra.mxu0 %v1579
    %2640 = vmatprep.subr.mxu0 %v1577
    %2641 = vmatpush1.msra.mxu0 %v1576
    %2642 = vmatprep.subr.mxu0 %v1574
    %2643 = vmatpush1.msra.mxu0 %v1573
    %2644 = vmatprep.subr.mxu0 %v1571
    %2645 = vmatpush1.msra.mxu0 %v1570
    %2646 = vmatprep.subr.mxu0 %v1568
    %2647 = vmatpush1.msra.mxu0 %v1567
    %2648 = vmatprep.subr.mxu0 0.0
    %2649 = vmatpush2.msra.mxu0 0.0
    %2650 = vmatprep.subr.mxu0 0.0
    %2651 = vmatpush2.msra.mxu0 0.0
    %2652 = vmatprep.subr.mxu0 0.0
    %2653 = vmatpush2.msra.mxu0 0.0
    %2654 = vmatprep.subr.mxu0 0.0
    %2655 = vmatpush2.msra.mxu0 0.0
    %2656 = vmatprep.subr.mxu0 0.0
    %2657 = vmatpush2.msra.mxu0 0.0
    %2658 = vmatprep.subr.mxu0 0.0
    %2659 = vmatpush2.msra.mxu0 0.0
    %2660 = vmatprep.subr.mxu0 0.0
    %2661 = vmatpush2.msra.mxu0 0.0
    %2662 = vmatprep.subr.mxu0 0.0
    %2663 = vmatpush2.msra.mxu0 0.0
    %2664 = vmatprep.subr.mxu0 0.0
    %2665 = vmatpush2.msra.mxu0 0.0
    %2666 = vmatprep.subr.mxu0 0.0
    %2667 = vmatpush2.msra.mxu0 0.0
    %2668 = vmatprep.subr.mxu0 0.0
    %2669 = vmatpush2.msra.mxu0 0.0
    %2670 = vmatprep.subr.mxu0 0.0
    %2671 = vmatpush2.msra.mxu0 0.0
    %2672 = vmatprep.subr.mxu0 0.0
    %2673 = vmatpush2.msra.mxu0 0.0
    %2674 = vmatprep.subr.mxu0 0.0
    %2675 = vmatpush2.msra.mxu0 0.0
    %2676 = vmatprep.subr.mxu0 0.0
    %2677 = vmatpush2.msra.mxu0 0.0
    %2678 = vmatprep.subr.mxu0 0.0
    %2679 = vmatpush2.msra.mxu0 0.0
    %2680 = vmatprep.mubr.f32.mxu0 0.0
    %2681 = vmatmul.mubr.f32.gmra.mxu0 %v2615
    %v2682 = vpop.f32.mrf.mxu0
    %v2683 = vadd.f32 %v1621, %v2682
    %v2684 = vpop.f32.mrf.mxu0
    %v2685 = vadd.f32 %v1625, %v2684
    %2686 = vdwg.mxu0
    %2687 = vmatprep.subr.mxu0 0.0
    %2688 = vmatpush1.msra.mxu0 %v1614
    %2689 = vmatprep.subr.mxu0 0.0
    %2690 = vmatpush1.msra.mxu0 %v1611
    %2691 = vmatprep.subr.mxu0 0.0
    %2692 = vmatpush1.msra.mxu0 %v1608
    %2693 = vmatprep.subr.mxu0 0.0
    %2694 = vmatpush1.msra.mxu0 %v1605
    %2695 = vmatprep.subr.mxu0 0.0
    %2696 = vmatpush1.msra.mxu0 %v1602
    %2697 = vmatprep.subr.mxu0 0.0
    %2698 = vmatpush1.msra.mxu0 %v1599
    %2699 = vmatprep.subr.mxu0 0.0
    %2700 = vmatpush1.msra.mxu0 %v1596
    %2701 = vmatprep.subr.mxu0 0.0
    %2702 = vmatpush1.msra.mxu0 %v1593
    %2703 = vmatprep.subr.mxu0 0.0
    %2704 = vmatpush1.msra.mxu0 %v1590
    %2705 = vmatprep.subr.mxu0 0.0
    %2706 = vmatpush1.msra.mxu0 %v1587
    %2707 = vmatprep.subr.mxu0 0.0
    %2708 = vmatpush1.msra.mxu0 %v1584
    %2709 = vmatprep.subr.mxu0 0.0
    %2710 = vmatpush1.msra.mxu0 %v1581
    %2711 = vmatprep.subr.mxu0 0.0
    %2712 = vmatpush1.msra.mxu0 %v1578
    %2713 = vmatprep.subr.mxu0 0.0
    %2714 = vmatpush1.msra.mxu0 %v1575
    %2715 = vmatprep.subr.mxu0 0.0
    %2716 = vmatpush1.msra.mxu0 %v1572
    %2717 = vmatprep.subr.mxu0 0.0
    %2718 = vmatpush1.msra.mxu0 %v1569
    %2719 = vmatprep.subr.mxu0 0.0
    %2720 = vmatpush2.msra.mxu0 0.0
    %2721 = vmatprep.subr.mxu0 0.0
    %2722 = vmatpush2.msra.mxu0 0.0
    %2723 = vmatprep.subr.mxu0 0.0
    %2724 = vmatpush2.msra.mxu0 0.0
    %2725 = vmatprep.subr.mxu0 0.0
    %2726 = vmatpush2.msra.mxu0 0.0
    %2727 = vmatprep.subr.mxu0 0.0
    %2728 = vmatpush2.msra.mxu0 0.0
    %2729 = vmatprep.subr.mxu0 0.0
    %2730 = vmatpush2.msra.mxu0 0.0
    %2731 = vmatprep.subr.mxu0 0.0
    %2732 = vmatpush2.msra.mxu0 0.0
    %2733 = vmatprep.subr.mxu0 0.0
    %2734 = vmatpush2.msra.mxu0 0.0
    %2735 = vmatprep.subr.mxu0 0.0
    %2736 = vmatpush2.msra.mxu0 0.0
    %2737 = vmatprep.subr.mxu0 0.0
    %2738 = vmatpush2.msra.mxu0 0.0
    %2739 = vmatprep.subr.mxu0 0.0
    %2740 = vmatpush2.msra.mxu0 0.0
    %2741 = vmatprep.subr.mxu0 0.0
    %2742 = vmatpush2.msra.mxu0 0.0
    %2743 = vmatprep.subr.mxu0 0.0
    %2744 = vmatpush2.msra.mxu0 0.0
    %2745 = vmatprep.subr.mxu0 0.0
    %2746 = vmatpush2.msra.mxu0 0.0
    %2747 = vmatprep.subr.mxu0 0.0
    %2748 = vmatpush2.msra.mxu0 0.0
    %2749 = vmatprep.subr.mxu0 0.0
    %2750 = vmatpush2.msra.mxu0 0.0
    %2751 = vmatprep.mubr.f32.mxu0 0.0
    %2752 = vmatmul.mubr.f32.gmra.mxu0 %v2615
    %v2753 = vpop.f32.mrf.mxu0
    %v2754 = vadd.f32 %v1629, %v2753
    %v2755 = vpop.f32.mrf.mxu0
    %2756 = vdwg.mxu0
    %v2760 = vcombine.low %v2683, %v2685
    %v2762 = vunpack.c.l.s4 1983009808
    %v2763 = vunpack.c.0.s8 %v2762
    %v2764 = vlaneseq
    %v2765 = vshrl.u32 %v2764, 7
    %v2766 = vsub.s32 %v2763, %v2765
    %v2767 = vrot.slane %v2760, %v2766
    %v2769 = vunpack.c.l.s4 1983009808
    %v2770 = vunpack.c.0.s8 %v2769
    %v2771 = vlaneseq
    %v2772 = vshrl.u32 %v2771, 7
    %v2773 = vsub.s32 %v2770, %v2772
    %v2774 = vrot.slane %v2754, %v2773
    %v2775 = vcombine.low %v2767, %v2774
    %s2777 = scalar_lea.vmem [#allocation3], 36
    %2778 = vst [vmem:[%s2777] sm:$0x3f] %v2775
    %v2779 = vld [vmem:[%s1516] sm:$0x3]
    %2780 = vmatprep.subr.mxu0 %v1613
    %2781 = vmatpush1.msra.mxu0 %v1612
    %2782 = vmatprep.subr.mxu0 %v1610
    %2783 = vmatpush1.msra.mxu0 %v1609
    %2784 = vmatprep.subr.mxu0 %v1607
    %2785 = vmatpush1.msra.mxu0 %v1606
    %2786 = vmatprep.subr.mxu0 %v1604
    %2787 = vmatpush1.msra.mxu0 %v1603
    %2788 = vmatprep.subr.mxu0 %v1601
    %2789 = vmatpush1.msra.mxu0 %v1600
    %2790 = vmatprep.subr.mxu0 %v1598
    %2791 = vmatpush1.msra.mxu0 %v1597
    %2792 = vmatprep.subr.mxu0 %v1595
    %2793 = vmatpush1.msra.mxu0 %v1594
    %2794 = vmatprep.subr.mxu0 %v1592
    %2795 = vmatpush1.msra.mxu0 %v1591
    %2796 = vmatprep.subr.mxu0 %v1589
    %2797 = vmatpush1.msra.mxu0 %v1588
    %2798 = vmatprep.subr.mxu0 %v1586
    %2799 = vmatpush1.msra.mxu0 %v1585
    %2800 = vmatprep.subr.mxu0 %v1583
    %2801 = vmatpush1.msra.mxu0 %v1582
    %2802 = vmatprep.subr.mxu0 %v1580
    %2803 = vmatpush1.msra.mxu0 %v1579
    %2804 = vmatprep.subr.mxu0 %v1577
    %2805 = vmatpush1.msra.mxu0 %v1576
    %2806 = vmatprep.subr.mxu0 %v1574
    %2807 = vmatpush1.msra.mxu0 %v1573
    %2808 = vmatprep.subr.mxu0 %v1571
    %2809 = vmatpush1.msra.mxu0 %v1570
    %2810 = vmatprep.subr.mxu0 %v1568
    %2811 = vmatpush1.msra.mxu0 %v1567
    %2812 = vmatprep.subr.mxu0 0.0
    %2813 = vmatpush2.msra.mxu0 0.0
    %2814 = vmatprep.subr.mxu0 0.0
    %2815 = vmatpush2.msra.mxu0 0.0
    %2816 = vmatprep.subr.mxu0 0.0
    %2817 = vmatpush2.msra.mxu0 0.0
    %2818 = vmatprep.subr.mxu0 0.0
    %2819 = vmatpush2.msra.mxu0 0.0
    %2820 = vmatprep.subr.mxu0 0.0
    %2821 = vmatpush2.msra.mxu0 0.0
    %2822 = vmatprep.subr.mxu0 0.0
    %2823 = vmatpush2.msra.mxu0 0.0
    %2824 = vmatprep.subr.mxu0 0.0
    %2825 = vmatpush2.msra.mxu0 0.0
    %2826 = vmatprep.subr.mxu0 0.0
    %2827 = vmatpush2.msra.mxu0 0.0
    %2828 = vmatprep.subr.mxu0 0.0
    %2829 = vmatpush2.msra.mxu0 0.0
    %2830 = vmatprep.subr.mxu0 0.0
    %2831 = vmatpush2.msra.mxu0 0.0
    %2832 = vmatprep.subr.mxu0 0.0
    %2833 = vmatpush2.msra.mxu0 0.0
    %2834 = vmatprep.subr.mxu0 0.0
    %2835 = vmatpush2.msra.mxu0 0.0
    %2836 = vmatprep.subr.mxu0 0.0
    %2837 = vmatpush2.msra.mxu0 0.0
    %2838 = vmatprep.subr.mxu0 0.0
    %2839 = vmatpush2.msra.mxu0 0.0
    %2840 = vmatprep.subr.mxu0 0.0
    %2841 = vmatpush2.msra.mxu0 0.0
    %2842 = vmatprep.subr.mxu0 0.0
    %2843 = vmatpush2.msra.mxu0 0.0
    %2844 = vmatprep.mubr.f32.mxu0 0.0
    %2845 = vmatmul.mubr.f32.gmra.mxu0 %v2779
    %v2846 = vpop.f32.mrf.mxu0
    %v2847 = vadd.f32 %v1621, %v2846
    %v2848 = vpop.f32.mrf.mxu0
    %v2849 = vadd.f32 %v1625, %v2848
    %2850 = vdwg.mxu0
    %2851 = vmatprep.subr.mxu0 0.0
    %2852 = vmatpush1.msra.mxu0 %v1614
    %2853 = vmatprep.subr.mxu0 0.0
    %2854 = vmatpush1.msra.mxu0 %v1611
    %2855 = vmatprep.subr.mxu0 0.0
    %2856 = vmatpush1.msra.mxu0 %v1608
    %2857 = vmatprep.subr.mxu0 0.0
    %2858 = vmatpush1.msra.mxu0 %v1605
    %2859 = vmatprep.subr.mxu0 0.0
    %2860 = vmatpush1.msra.mxu0 %v1602
    %2861 = vmatprep.subr.mxu0 0.0
    %2862 = vmatpush1.msra.mxu0 %v1599
    %2863 = vmatprep.subr.mxu0 0.0
    %2864 = vmatpush1.msra.mxu0 %v1596
    %2865 = vmatprep.subr.mxu0 0.0
    %2866 = vmatpush1.msra.mxu0 %v1593
    %2867 = vmatprep.subr.mxu0 0.0
    %2868 = vmatpush1.msra.mxu0 %v1590
    %2869 = vmatprep.subr.mxu0 0.0
    %2870 = vmatpush1.msra.mxu0 %v1587
    %2871 = vmatprep.subr.mxu0 0.0
    %2872 = vmatpush1.msra.mxu0 %v1584
    %2873 = vmatprep.subr.mxu0 0.0
    %2874 = vmatpush1.msra.mxu0 %v1581
    %2875 = vmatprep.subr.mxu0 0.0
    %2876 = vmatpush1.msra.mxu0 %v1578
    %2877 = vmatprep.subr.mxu0 0.0
    %2878 = vmatpush1.msra.mxu0 %v1575
    %2879 = vmatprep.subr.mxu0 0.0
    %2880 = vmatpush1.msra.mxu0 %v1572
    %2881 = vmatprep.subr.mxu0 0.0
    %2882 = vmatpush1.msra.mxu0 %v1569
    %2883 = vmatprep.subr.mxu0 0.0
    %2884 = vmatpush2.msra.mxu0 0.0
    %2885 = vmatprep.subr.mxu0 0.0
    %2886 = vmatpush2.msra.mxu0 0.0
    %2887 = vmatprep.subr.mxu0 0.0
    %2888 = vmatpush2.msra.mxu0 0.0
    %2889 = vmatprep.subr.mxu0 0.0
    %2890 = vmatpush2.msra.mxu0 0.0
    %2891 = vmatprep.subr.mxu0 0.0
    %2892 = vmatpush2.msra.mxu0 0.0
    %2893 = vmatprep.subr.mxu0 0.0
    %2894 = vmatpush2.msra.mxu0 0.0
    %2895 = vmatprep.subr.mxu0 0.0
    %2896 = vmatpush2.msra.mxu0 0.0
    %2897 = vmatprep.subr.mxu0 0.0
    %2898 = vmatpush2.msra.mxu0 0.0
    %2899 = vmatprep.subr.mxu0 0.0
    %2900 = vmatpush2.msra.mxu0 0.0
    %2901 = vmatprep.subr.mxu0 0.0
    %2902 = vmatpush2.msra.mxu0 0.0
    %2903 = vmatprep.subr.mxu0 0.0
    %2904 = vmatpush2.msra.mxu0 0.0
    %2905 = vmatprep.subr.mxu0 0.0
    %2906 = vmatpush2.msra.mxu0 0.0
    %2907 = vmatprep.subr.mxu0 0.0
    %2908 = vmatpush2.msra.mxu0 0.0
    %2909 = vmatprep.subr.mxu0 0.0
    %2910 = vmatpush2.msra.mxu0 0.0
    %2911 = vmatprep.subr.mxu0 0.0
    %2912 = vmatpush2.msra.mxu0 0.0
    %2913 = vmatprep.subr.mxu0 0.0
    %2914 = vmatpush2.msra.mxu0 0.0
    %2915 = vmatprep.mubr.f32.mxu0 0.0
    %2916 = vmatmul.mubr.f32.gmra.mxu0 %v2779
    %v2917 = vpop.f32.mrf.mxu0
    %v2918 = vadd.f32 %v1629, %v2917
    %v2919 = vpop.f32.mrf.mxu0
    %2920 = vdwg.mxu0
    %v2924 = vcombine.low %v2847, %v2849
    %v2926 = vunpack.c.l.s4 1983009808
    %v2927 = vunpack.c.0.s8 %v2926
    %v2928 = vlaneseq
    %v2929 = vshrl.u32 %v2928, 7
    %v2930 = vsub.s32 %v2927, %v2929
    %v2931 = vrot.slane %v2924, %v2930
    %v2933 = vunpack.c.l.s4 1983009808
    %v2934 = vunpack.c.0.s8 %v2933
    %v2935 = vlaneseq
    %v2936 = vshrl.u32 %v2935, 7
    %v2937 = vsub.s32 %v2934, %v2936
    %v2938 = vrot.slane %v2918, %v2937
    %v2939 = vcombine.low %v2931, %v2938
    %s2941 = scalar_lea.vmem [#allocation3], 42
    %2942 = vst [vmem:[%s2941] sm:$0x3f] %v2939
    %s2943 = scalar_lea.vmem %s2, 2
    %v2944 = vld [vmem:[%s2943] sm:$0x3]
    %v2945 = vld [vmem:[#allocation3] sm:$0x3f]
    %2946 = vmatprep.subr.mxu0 %v1564
    %2947 = vmatpush1.msra.mxu0 %v1563
    %2948 = vmatprep.subr.mxu0 %v1561
    %2949 = vmatpush1.msra.mxu0 %v1560
    %2950 = vmatprep.subr.mxu0 %v1558
    %2951 = vmatpush1.msra.mxu0 %v1557
    %2952 = vmatprep.subr.mxu0 %v1555
    %2953 = vmatpush1.msra.mxu0 %v1554
    %2954 = vmatprep.subr.mxu0 %v1552
    %2955 = vmatpush1.msra.mxu0 %v1551
    %2956 = vmatprep.subr.mxu0 %v1549
    %2957 = vmatpush1.msra.mxu0 %v1548
    %2958 = vmatprep.subr.mxu0 %v1546
    %2959 = vmatpush1.msra.mxu0 %v1545
    %2960 = vmatprep.subr.mxu0 %v1543
    %2961 = vmatpush1.msra.mxu0 %v1542
    %2962 = vmatprep.subr.mxu0 %v1540
    %2963 = vmatpush1.msra.mxu0 %v1539
    %2964 = vmatprep.subr.mxu0 %v1537
    %2965 = vmatpush1.msra.mxu0 %v1536
    %2966 = vmatprep.subr.mxu0 %v1534
    %2967 = vmatpush1.msra.mxu0 %v1533
    %2968 = vmatprep.subr.mxu0 %v1531
    %2969 = vmatpush1.msra.mxu0 %v1530
    %2970 = vmatprep.subr.mxu0 %v1528
    %2971 = vmatpush1.msra.mxu0 %v1527
    %2972 = vmatprep.subr.mxu0 %v1525
    %2973 = vmatpush1.msra.mxu0 %v1524
    %2974 = vmatprep.subr.mxu0 %v1522
    %2975 = vmatpush1.msra.mxu0 %v1521
    %2976 = vmatprep.subr.mxu0 %v1519
    %2977 = vmatpush1.msra.mxu0 %v1518
    %2978 = vmatprep.subr.mxu0 0.0
    %2979 = vmatpush2.msra.mxu0 0.0
    %2980 = vmatprep.subr.mxu0 0.0
    %2981 = vmatpush2.msra.mxu0 0.0
    %2982 = vmatprep.subr.mxu0 0.0
    %2983 = vmatpush2.msra.mxu0 0.0
    %2984 = vmatprep.subr.mxu0 0.0
    %2985 = vmatpush2.msra.mxu0 0.0
    %2986 = vmatprep.subr.mxu0 0.0
    %2987 = vmatpush2.msra.mxu0 0.0
    %2988 = vmatprep.subr.mxu0 0.0
    %2989 = vmatpush2.msra.mxu0 0.0
    %2990 = vmatprep.subr.mxu0 0.0
    %2991 = vmatpush2.msra.mxu0 0.0
    %2992 = vmatprep.subr.mxu0 0.0
    %2993 = vmatpush2.msra.mxu0 0.0
    %2994 = vmatprep.subr.mxu0 0.0
    %2995 = vmatpush2.msra.mxu0 0.0
    %2996 = vmatprep.subr.mxu0 0.0
    %2997 = vmatpush2.msra.mxu0 0.0
    %2998 = vmatprep.subr.mxu0 0.0
    %2999 = vmatpush2.msra.mxu0 0.0
    %3000 = vmatprep.subr.mxu0 0.0
    %3001 = vmatpush2.msra.mxu0 0.0
    %3002 = vmatprep.subr.mxu0 0.0
    %3003 = vmatpush2.msra.mxu0 0.0
    %3004 = vmatprep.subr.mxu0 0.0
    %3005 = vmatpush2.msra.mxu0 0.0
    %3006 = vmatprep.subr.mxu0 0.0
    %3007 = vmatpush2.msra.mxu0 0.0
    %3008 = vmatprep.subr.mxu0 0.0
    %3009 = vmatpush2.msra.mxu0 0.0
    %3010 = vmatprep.mubr.f32.mxu0 0.0
    %3011 = vmatmul.mubr.f32.gmra.mxu0 %v2944
    %v3012 = vpop.f32.mrf.mxu0
    %v3013 = vadd.f32 0.0, %v3012
    %v3014 = vpop.f32.mrf.mxu0
    %v3015 = vadd.f32 0.0, %v3014
    %3016 = vdwg.mxu0
    %3017 = vmatprep.subr.mxu0 0.0
    %3018 = vmatpush1.msra.mxu0 %v1565
    %3019 = vmatprep.subr.mxu0 0.0
    %3020 = vmatpush1.msra.mxu0 %v1562
    %3021 = vmatprep.subr.mxu0 0.0
    %3022 = vmatpush1.msra.mxu0 %v1559
    %3023 = vmatprep.subr.mxu0 0.0
    %3024 = vmatpush1.msra.mxu0 %v1556
    %3025 = vmatprep.subr.mxu0 0.0
    %3026 = vmatpush1.msra.mxu0 %v1553
    %3027 = vmatprep.subr.mxu0 0.0
    %3028 = vmatpush1.msra.mxu0 %v1550
    %3029 = vmatprep.subr.mxu0 0.0
    %3030 = vmatpush1.msra.mxu0 %v1547
    %3031 = vmatprep.subr.mxu0 0.0
    %3032 = vmatpush1.msra.mxu0 %v1544
    %3033 = vmatprep.subr.mxu0 0.0
    %3034 = vmatpush1.msra.mxu0 %v1541
    %3035 = vmatprep.subr.mxu0 0.0
    %3036 = vmatpush1.msra.mxu0 %v1538
    %3037 = vmatprep.subr.mxu0 0.0
    %3038 = vmatpush1.msra.mxu0 %v1535
    %3039 = vmatprep.subr.mxu0 0.0
    %3040 = vmatpush1.msra.mxu0 %v1532
    %3041 = vmatprep.subr.mxu0 0.0
    %3042 = vmatpush1.msra.mxu0 %v1529
    %3043 = vmatprep.subr.mxu0 0.0
    %3044 = vmatpush1.msra.mxu0 %v1526
    %3045 = vmatprep.subr.mxu0 0.0
    %3046 = vmatpush1.msra.mxu0 %v1523
    %3047 = vmatprep.subr.mxu0 0.0
    %3048 = vmatpush1.msra.mxu0 %v1520
    %3049 = vmatprep.subr.mxu0 0.0
    %3050 = vmatpush2.msra.mxu0 0.0
    %3051 = vmatprep.subr.mxu0 0.0
    %3052 = vmatpush2.msra.mxu0 0.0
    %3053 = vmatprep.subr.mxu0 0.0
    %3054 = vmatpush2.msra.mxu0 0.0
    %3055 = vmatprep.subr.mxu0 0.0
    %3056 = vmatpush2.msra.mxu0 0.0
    %3057 = vmatprep.subr.mxu0 0.0
    %3058 = vmatpush2.msra.mxu0 0.0
    %3059 = vmatprep.subr.mxu0 0.0
    %3060 = vmatpush2.msra.mxu0 0.0
    %3061 = vmatprep.subr.mxu0 0.0
    %3062 = vmatpush2.msra.mxu0 0.0
    %3063 = vmatprep.subr.mxu0 0.0
    %3064 = vmatpush2.msra.mxu0 0.0
    %3065 = vmatprep.subr.mxu0 0.0
    %3066 = vmatpush2.msra.mxu0 0.0
    %3067 = vmatprep.subr.mxu0 0.0
    %3068 = vmatpush2.msra.mxu0 0.0
    %3069 = vmatprep.subr.mxu0 0.0
    %3070 = vmatpush2.msra.mxu0 0.0
    %3071 = vmatprep.subr.mxu0 0.0
    %3072 = vmatpush2.msra.mxu0 0.0
    %3073 = vmatprep.subr.mxu0 0.0
    %3074 = vmatpush2.msra.mxu0 0.0
    %3075 = vmatprep.subr.mxu0 0.0
    %3076 = vmatpush2.msra.mxu0 0.0
    %3077 = vmatprep.subr.mxu0 0.0
    %3078 = vmatpush2.msra.mxu0 0.0
    %3079 = vmatprep.subr.mxu0 0.0
    %3080 = vmatpush2.msra.mxu0 0.0
    %3081 = vmatprep.mubr.f32.mxu0 0.0
    %3082 = vmatmul.mubr.f32.gmra.mxu0 %v2944
    %v3083 = vpop.f32.mrf.mxu0
    %v3084 = vadd.f32 0.0, %v3083
    %v3085 = vpop.f32.mrf.mxu0
    %3086 = vdwg.mxu0
    %v3087 = vadd.f32 %v2945, %v3013
    %v3088 = vxor.u32 %v3087, 2147483648
    %v3089 = vmul.f32 %v3088, 1.442695
    %v3090 = vpow.pop %v3089
    %v3091 = vadd.f32 %v3090, 1.0
    %v3092 = vrcp.pop %v3091
    %v3093 = vmul.f32 1.0, %v3092
    %v3095 = vrot.slane %v2945, 2
    %v3097 = vadd.f32 %v3095, %v3015
    %v3098 = vxor.u32 %v3097, 2147483648
    %v3099 = vmul.f32 %v3098, 1.442695
    %v3100 = vpow.pop %v3099
    %v3101 = vadd.f32 %v3100, 1.0
    %v3102 = vrcp.pop %v3101
    %v3103 = vmul.f32 1.0, %v3102
    %v3105 = vlaneseq
    %v3106 = vshrl.u32 %v3105, 7
    %v3107 = vsub.s32 0, %v3106
    %v3108 = vrot.slane %v1566, %v3107
    %v3110 = vadd.f32 %v3084, %v3108
    %v3111 = vmul.f32 %v3093, %v3110
    %v3112 = vrot.slane %v2945, 4
    %v3114 = vadd.f32 %v3112, %v3111
    %v3115 = vtanh.pop %v3114
    %v3116 = vsub.f32 1.0, %v3103
    %v3117 = vmul.f32 %v3116, %v3115
    %v3118 = vmul.f32 %v3103, %v2944
    %v3119 = vadd.f32 %v3117, %v3118
    %vm3120 = vcmp.eq.s32.totalorder %v87, 0
    %v3121 = vsel %vm3120, 1, 0
    %3122 = vset.pattern.permute.xlu0 0
    %3123 = vperm.xlu0 %3122, %v3121
    %v3124 = vpop.permute.xlu0 %3123
    %vm3125 = vcmp.eq.s32.totalorder %v3124, 1
    %v3126 = vsel %vm3125, %v3119, 0.0
    %v3127 = vld [vmem:[%s1957] sm:$0x3f]
    %3128 = vmatprep.subr.mxu0 %v1564
    %3129 = vmatpush1.msra.mxu0 %v1563
    %3130 = vmatprep.subr.mxu0 %v1561
    %3131 = vmatpush1.msra.mxu0 %v1560
    %3132 = vmatprep.subr.mxu0 %v1558
    %3133 = vmatpush1.msra.mxu0 %v1557
    %3134 = vmatprep.subr.mxu0 %v1555
    %3135 = vmatpush1.msra.mxu0 %v1554
    %3136 = vmatprep.subr.mxu0 %v1552
    %3137 = vmatpush1.msra.mxu0 %v1551
    %3138 = vmatprep.subr.mxu0 %v1549
    %3139 = vmatpush1.msra.mxu0 %v1548
    %3140 = vmatprep.subr.mxu0 %v1546
    %3141 = vmatpush1.msra.mxu0 %v1545
    %3142 = vmatprep.subr.mxu0 %v1543
    %3143 = vmatpush1.msra.mxu0 %v1542
    %3144 = vmatprep.subr.mxu0 %v1540
    %3145 = vmatpush1.msra.mxu0 %v1539
    %3146 = vmatprep.subr.mxu0 %v1537
    %3147 = vmatpush1.msra.mxu0 %v1536
    %3148 = vmatprep.subr.mxu0 %v1534
    %3149 = vmatpush1.msra.mxu0 %v1533
    %3150 = vmatprep.subr.mxu0 %v1531
    %3151 = vmatpush1.msra.mxu0 %v1530
    %3152 = vmatprep.subr.mxu0 %v1528
    %3153 = vmatpush1.msra.mxu0 %v1527
    %3154 = vmatprep.subr.mxu0 %v1525
    %3155 = vmatpush1.msra.mxu0 %v1524
    %3156 = vmatprep.subr.mxu0 %v1522
    %3157 = vmatpush1.msra.mxu0 %v1521
    %3158 = vmatprep.subr.mxu0 %v1519
    %3159 = vmatpush1.msra.mxu0 %v1518
    %3160 = vmatprep.subr.mxu0 0.0
    %3161 = vmatpush2.msra.mxu0 0.0
    %3162 = vmatprep.subr.mxu0 0.0
    %3163 = vmatpush2.msra.mxu0 0.0
    %3164 = vmatprep.subr.mxu0 0.0
    %3165 = vmatpush2.msra.mxu0 0.0
    %3166 = vmatprep.subr.mxu0 0.0
    %3167 = vmatpush2.msra.mxu0 0.0
    %3168 = vmatprep.subr.mxu0 0.0
    %3169 = vmatpush2.msra.mxu0 0.0
    %3170 = vmatprep.subr.mxu0 0.0
    %3171 = vmatpush2.msra.mxu0 0.0
    %3172 = vmatprep.subr.mxu0 0.0
    %3173 = vmatpush2.msra.mxu0 0.0
    %3174 = vmatprep.subr.mxu0 0.0
    %3175 = vmatpush2.msra.mxu0 0.0
    %3176 = vmatprep.subr.mxu0 0.0
    %3177 = vmatpush2.msra.mxu0 0.0
    %3178 = vmatprep.subr.mxu0 0.0
    %3179 = vmatpush2.msra.mxu0 0.0
    %3180 = vmatprep.subr.mxu0 0.0
    %3181 = vmatpush2.msra.mxu0 0.0
    %3182 = vmatprep.subr.mxu0 0.0
    %3183 = vmatpush2.msra.mxu0 0.0
    %3184 = vmatprep.subr.mxu0 0.0
    %3185 = vmatpush2.msra.mxu0 0.0
    %3186 = vmatprep.subr.mxu0 0.0
    %3187 = vmatpush2.msra.mxu0 0.0
    %3188 = vmatprep.subr.mxu0 0.0
    %3189 = vmatpush2.msra.mxu0 0.0
    %3190 = vmatprep.subr.mxu0 0.0
    %3191 = vmatpush2.msra.mxu0 0.0
    %3192 = vmatprep.mubr.f32.mxu0 0.0
    %3193 = vmatmul.mubr.f32.gmra.mxu0 %v3119
    %v3194 = vpop.f32.mrf.mxu0
    %v3195 = vadd.f32 0.0, %v3194
    %v3196 = vpop.f32.mrf.mxu0
    %v3197 = vadd.f32 0.0, %v3196
    %3198 = vdwg.mxu0
    %3199 = vmatprep.subr.mxu0 0.0
    %3200 = vmatpush1.msra.mxu0 %v1565
    %3201 = vmatprep.subr.mxu0 0.0
    %3202 = vmatpush1.msra.mxu0 %v1562
    %3203 = vmatprep.subr.mxu0 0.0
    %3204 = vmatpush1.msra.mxu0 %v1559
    %3205 = vmatprep.subr.mxu0 0.0
    %3206 = vmatpush1.msra.mxu0 %v1556
    %3207 = vmatprep.subr.mxu0 0.0
    %3208 = vmatpush1.msra.mxu0 %v1553
    %3209 = vmatprep.subr.mxu0 0.0
    %3210 = vmatpush1.msra.mxu0 %v1550
    %3211 = vmatprep.subr.mxu0 0.0
    %3212 = vmatpush1.msra.mxu0 %v1547
    %3213 = vmatprep.subr.mxu0 0.0
    %3214 = vmatpush1.msra.mxu0 %v1544
    %3215 = vmatprep.subr.mxu0 0.0
    %3216 = vmatpush1.msra.mxu0 %v1541
    %3217 = vmatprep.subr.mxu0 0.0
    %3218 = vmatpush1.msra.mxu0 %v1538
    %3219 = vmatprep.subr.mxu0 0.0
    %3220 = vmatpush1.msra.mxu0 %v1535
    %3221 = vmatprep.subr.mxu0 0.0
    %3222 = vmatpush1.msra.mxu0 %v1532
    %3223 = vmatprep.subr.mxu0 0.0
    %3224 = vmatpush1.msra.mxu0 %v1529
    %3225 = vmatprep.subr.mxu0 0.0
    %3226 = vmatpush1.msra.mxu0 %v1526
    %3227 = vmatprep.subr.mxu0 0.0
    %3228 = vmatpush1.msra.mxu0 %v1523
    %3229 = vmatprep.subr.mxu0 0.0
    %3230 = vmatpush1.msra.mxu0 %v1520
    %3231 = vmatprep.subr.mxu0 0.0
    %3232 = vmatpush2.msra.mxu0 0.0
    %3233 = vmatprep.subr.mxu0 0.0
    %3234 = vmatpush2.msra.mxu0 0.0
    %3235 = vmatprep.subr.mxu0 0.0
    %3236 = vmatpush2.msra.mxu0 0.0
    %3237 = vmatprep.subr.mxu0 0.0
    %3238 = vmatpush2.msra.mxu0 0.0
    %3239 = vmatprep.subr.mxu0 0.0
    %3240 = vmatpush2.msra.mxu0 0.0
    %3241 = vmatprep.subr.mxu0 0.0
    %3242 = vmatpush2.msra.mxu0 0.0
    %3243 = vmatprep.subr.mxu0 0.0
    %3244 = vmatpush2.msra.mxu0 0.0
    %3245 = vmatprep.subr.mxu0 0.0
    %3246 = vmatpush2.msra.mxu0 0.0
    %3247 = vmatprep.subr.mxu0 0.0
    %3248 = vmatpush2.msra.mxu0 0.0
    %3249 = vmatprep.subr.mxu0 0.0
    %3250 = vmatpush2.msra.mxu0 0.0
    %3251 = vmatprep.subr.mxu0 0.0
    %3252 = vmatpush2.msra.mxu0 0.0
    %3253 = vmatprep.subr.mxu0 0.0
    %3254 = vmatpush2.msra.mxu0 0.0
    %3255 = vmatprep.subr.mxu0 0.0
    %3256 = vmatpush2.msra.mxu0 0.0
    %3257 = vmatprep.subr.mxu0 0.0
    %3258 = vmatpush2.msra.mxu0 0.0
    %3259 = vmatprep.subr.mxu0 0.0
    %3260 = vmatpush2.msra.mxu0 0.0
    %3261 = vmatprep.subr.mxu0 0.0
    %3262 = vmatpush2.msra.mxu0 0.0
    %3263 = vmatprep.mubr.f32.mxu0 0.0
    %3264 = vmatmul.mubr.f32.gmra.mxu0 %v3119
    %v3265 = vpop.f32.mrf.mxu0
    %v3266 = vadd.f32 0.0, %v3265
    %v3267 = vpop.f32.mrf.mxu0
    %3268 = vdwg.mxu0
    %v3269 = vadd.f32 %v3127, %v3195
    %v3270 = vxor.u32 %v3269, 2147483648
    %v3271 = vmul.f32 %v3270, 1.442695
    %v3272 = vpow.pop %v3271
    %v3273 = vadd.f32 %v3272, 1.0
    %v3274 = vrcp.pop %v3273
    %v3275 = vmul.f32 1.0, %v3274
    %v3277 = vrot.slane %v3127, 2
    %v3279 = vadd.f32 %v3277, %v3197
    %v3280 = vxor.u32 %v3279, 2147483648
    %v3281 = vmul.f32 %v3280, 1.442695
    %v3282 = vpow.pop %v3281
    %v3283 = vadd.f32 %v3282, 1.0
    %v3284 = vrcp.pop %v3283
    %v3285 = vmul.f32 1.0, %v3284
    %v3286 = vadd.f32 %v3266, %v3108
    %v3287 = vmul.f32 %v3275, %v3286
    %v3288 = vrot.slane %v3127, 4
    %v3290 = vadd.f32 %v3288, %v3287
    %v3291 = vtanh.pop %v3290
    %v3292 = vsub.f32 1.0, %v3285
    %v3293 = vmul.f32 %v3292, %v3291
    %v3294 = vmul.f32 %v3285, %v3119
    %v3295 = vadd.f32 %v3293, %v3294
    %vm3296 = vcmp.eq.s32.totalorder %v87, 1
    %v3297 = vsel %vm3296, 1, 0
    %3298 = vset.pattern.permute.xlu0 0
    %3299 = vperm.xlu0 %3298, %v3297
    %v3300 = vpop.permute.xlu0 %3299
    %vm3301 = vcmp.eq.s32.totalorder %v3300, 1
    %v3302 = vsel %vm3301, %v3295, %v3126
    %v3303 = vld [vmem:[%s2121] sm:$0x3f]
    %3304 = vmatprep.subr.mxu0 %v1564
    %3305 = vmatpush1.msra.mxu0 %v1563
    %3306 = vmatprep.subr.mxu0 %v1561
    %3307 = vmatpush1.msra.mxu0 %v1560
    %3308 = vmatprep.subr.mxu0 %v1558
    %3309 = vmatpush1.msra.mxu0 %v1557
    %3310 = vmatprep.subr.mxu0 %v1555
    %3311 = vmatpush1.msra.mxu0 %v1554
    %3312 = vmatprep.subr.mxu0 %v1552
    %3313 = vmatpush1.msra.mxu0 %v1551
    %3314 = vmatprep.subr.mxu0 %v1549
    %3315 = vmatpush1.msra.mxu0 %v1548
    %3316 = vmatprep.subr.mxu0 %v1546
    %3317 = vmatpush1.msra.mxu0 %v1545
    %3318 = vmatprep.subr.mxu0 %v1543
    %3319 = vmatpush1.msra.mxu0 %v1542
    %3320 = vmatprep.subr.mxu0 %v1540
    %3321 = vmatpush1.msra.mxu0 %v1539
    %3322 = vmatprep.subr.mxu0 %v1537
    %3323 = vmatpush1.msra.mxu0 %v1536
    %3324 = vmatprep.subr.mxu0 %v1534
    %3325 = vmatpush1.msra.mxu0 %v1533
    %3326 = vmatprep.subr.mxu0 %v1531
    %3327 = vmatpush1.msra.mxu0 %v1530
    %3328 = vmatprep.subr.mxu0 %v1528
    %3329 = vmatpush1.msra.mxu0 %v1527
    %3330 = vmatprep.subr.mxu0 %v1525
    %3331 = vmatpush1.msra.mxu0 %v1524
    %3332 = vmatprep.subr.mxu0 %v1522
    %3333 = vmatpush1.msra.mxu0 %v1521
    %3334 = vmatprep.subr.mxu0 %v1519
    %3335 = vmatpush1.msra.mxu0 %v1518
    %3336 = vmatprep.subr.mxu0 0.0
    %3337 = vmatpush2.msra.mxu0 0.0
    %3338 = vmatprep.subr.mxu0 0.0
    %3339 = vmatpush2.msra.mxu0 0.0
    %3340 = vmatprep.subr.mxu0 0.0
    %3341 = vmatpush2.msra.mxu0 0.0
    %3342 = vmatprep.subr.mxu0 0.0
    %3343 = vmatpush2.msra.mxu0 0.0
    %3344 = vmatprep.subr.mxu0 0.0
    %3345 = vmatpush2.msra.mxu0 0.0
    %3346 = vmatprep.subr.mxu0 0.0
    %3347 = vmatpush2.msra.mxu0 0.0
    %3348 = vmatprep.subr.mxu0 0.0
    %3349 = vmatpush2.msra.mxu0 0.0
    %3350 = vmatprep.subr.mxu0 0.0
    %3351 = vmatpush2.msra.mxu0 0.0
    %3352 = vmatprep.subr.mxu0 0.0
    %3353 = vmatpush2.msra.mxu0 0.0
    %3354 = vmatprep.subr.mxu0 0.0
    %3355 = vmatpush2.msra.mxu0 0.0
    %3356 = vmatprep.subr.mxu0 0.0
    %3357 = vmatpush2.msra.mxu0 0.0
    %3358 = vmatprep.subr.mxu0 0.0
    %3359 = vmatpush2.msra.mxu0 0.0
    %3360 = vmatprep.subr.mxu0 0.0
    %3361 = vmatpush2.msra.mxu0 0.0
    %3362 = vmatprep.subr.mxu0 0.0
    %3363 = vmatpush2.msra.mxu0 0.0
    %3364 = vmatprep.subr.mxu0 0.0
    %3365 = vmatpush2.msra.mxu0 0.0
    %3366 = vmatprep.subr.mxu0 0.0
    %3367 = vmatpush2.msra.mxu0 0.0
    %3368 = vmatprep.mubr.f32.mxu0 0.0
    %3369 = vmatmul.mubr.f32.gmra.mxu0 %v3295
    %v3370 = vpop.f32.mrf.mxu0
    %v3371 = vadd.f32 0.0, %v3370
    %v3372 = vpop.f32.mrf.mxu0
    %v3373 = vadd.f32 0.0, %v3372
    %3374 = vdwg.mxu0
    %3375 = vmatprep.subr.mxu0 0.0
    %3376 = vmatpush1.msra.mxu0 %v1565
    %3377 = vmatprep.subr.mxu0 0.0
    %3378 = vmatpush1.msra.mxu0 %v1562
    %3379 = vmatprep.subr.mxu0 0.0
    %3380 = vmatpush1.msra.mxu0 %v1559
    %3381 = vmatprep.subr.mxu0 0.0
    %3382 = vmatpush1.msra.mxu0 %v1556
    %3383 = vmatprep.subr.mxu0 0.0
    %3384 = vmatpush1.msra.mxu0 %v1553
    %3385 = vmatprep.subr.mxu0 0.0
    %3386 = vmatpush1.msra.mxu0 %v1550
    %3387 = vmatprep.subr.mxu0 0.0
    %3388 = vmatpush1.msra.mxu0 %v1547
    %3389 = vmatprep.subr.mxu0 0.0
    %3390 = vmatpush1.msra.mxu0 %v1544
    %3391 = vmatprep.subr.mxu0 0.0
    %3392 = vmatpush1.msra.mxu0 %v1541
    %3393 = vmatprep.subr.mxu0 0.0
    %3394 = vmatpush1.msra.mxu0 %v1538
    %3395 = vmatprep.subr.mxu0 0.0
    %3396 = vmatpush1.msra.mxu0 %v1535
    %3397 = vmatprep.subr.mxu0 0.0
    %3398 = vmatpush1.msra.mxu0 %v1532
    %3399 = vmatprep.subr.mxu0 0.0
    %3400 = vmatpush1.msra.mxu0 %v1529
    %3401 = vmatprep.subr.mxu0 0.0
    %3402 = vmatpush1.msra.mxu0 %v1526
    %3403 = vmatprep.subr.mxu0 0.0
    %3404 = vmatpush1.msra.mxu0 %v1523
    %3405 = vmatprep.subr.mxu0 0.0
    %3406 = vmatpush1.msra.mxu0 %v1520
    %3407 = vmatprep.subr.mxu0 0.0
    %3408 = vmatpush2.msra.mxu0 0.0
    %3409 = vmatprep.subr.mxu0 0.0
    %3410 = vmatpush2.msra.mxu0 0.0
    %3411 = vmatprep.subr.mxu0 0.0
    %3412 = vmatpush2.msra.mxu0 0.0
    %3413 = vmatprep.subr.mxu0 0.0
    %3414 = vmatpush2.msra.mxu0 0.0
    %3415 = vmatprep.subr.mxu0 0.0
    %3416 = vmatpush2.msra.mxu0 0.0
    %3417 = vmatprep.subr.mxu0 0.0
    %3418 = vmatpush2.msra.mxu0 0.0
    %3419 = vmatprep.subr.mxu0 0.0
    %3420 = vmatpush2.msra.mxu0 0.0
    %3421 = vmatprep.subr.mxu0 0.0
    %3422 = vmatpush2.msra.mxu0 0.0
    %3423 = vmatprep.subr.mxu0 0.0
    %3424 = vmatpush2.msra.mxu0 0.0
    %3425 = vmatprep.subr.mxu0 0.0
    %3426 = vmatpush2.msra.mxu0 0.0
    %3427 = vmatprep.subr.mxu0 0.0
    %3428 = vmatpush2.msra.mxu0 0.0
    %3429 = vmatprep.subr.mxu0 0.0
    %3430 = vmatpush2.msra.mxu0 0.0
    %3431 = vmatprep.subr.mxu0 0.0
    %3432 = vmatpush2.msra.mxu0 0.0
    %3433 = vmatprep.subr.mxu0 0.0
    %3434 = vmatpush2.msra.mxu0 0.0
    %3435 = vmatprep.subr.mxu0 0.0
    %3436 = vmatpush2.msra.mxu0 0.0
    %3437 = vmatprep.subr.mxu0 0.0
    %3438 = vmatpush2.msra.mxu0 0.0
    %3439 = vmatprep.mubr.f32.mxu0 0.0
    %3440 = vmatmul.mubr.f32.gmra.mxu0 %v3295
    %v3441 = vpop.f32.mrf.mxu0
    %v3442 = vadd.f32 0.0, %v3441
    %v3443 = vpop.f32.mrf.mxu0
    %3444 = vdwg.mxu0
    %v3445 = vadd.f32 %v3303, %v3371
    %v3446 = vxor.u32 %v3445, 2147483648
    %v3447 = vmul.f32 %v3446, 1.442695
    %v3448 = vpow.pop %v3447
    %v3449 = vadd.f32 %v3448, 1.0
    %v3450 = vrcp.pop %v3449
    %v3451 = vmul.f32 1.0, %v3450
    %v3453 = vrot.slane %v3303, 2
    %v3455 = vadd.f32 %v3453, %v3373
    %v3456 = vxor.u32 %v3455, 2147483648
    %v3457 = vmul.f32 %v3456, 1.442695
    %v3458 = vpow.pop %v3457
    %v3459 = vadd.f32 %v3458, 1.0
    %v3460 = vrcp.pop %v3459
    %v3461 = vmul.f32 1.0, %v3460
    %v3462 = vadd.f32 %v3442, %v3108
    %v3463 = vmul.f32 %v3451, %v3462
    %v3464 = vrot.slane %v3303, 4
    %v3466 = vadd.f32 %v3464, %v3463
    %v3467 = vtanh.pop %v3466
    %v3468 = vsub.f32 1.0, %v3461
    %v3469 = vmul.f32 %v3468, %v3467
    %v3470 = vmul.f32 %v3461, %v3295
    %v3471 = vadd.f32 %v3469, %v3470
    %vm3472 = vcmp.eq.s32.totalorder %v87, 2
    %v3473 = vsel %vm3472, 1, 0
    %3474 = vset.pattern.permute.xlu0 0
    %3475 = vperm.xlu0 %3474, %v3473
    %v3476 = vpop.permute.xlu0 %3475
    %vm3477 = vcmp.eq.s32.totalorder %v3476, 1
    %v3478 = vsel %vm3477, %v3471, %v3302
    %v3479 = vld [vmem:[%s2285] sm:$0x3f]
    %3480 = vmatprep.subr.mxu0 %v1564
    %3481 = vmatpush1.msra.mxu0 %v1563
    %3482 = vmatprep.subr.mxu0 %v1561
    %3483 = vmatpush1.msra.mxu0 %v1560
    %3484 = vmatprep.subr.mxu0 %v1558
    %3485 = vmatpush1.msra.mxu0 %v1557
    %3486 = vmatprep.subr.mxu0 %v1555
    %3487 = vmatpush1.msra.mxu0 %v1554
    %3488 = vmatprep.subr.mxu0 %v1552
    %3489 = vmatpush1.msra.mxu0 %v1551
    %3490 = vmatprep.subr.mxu0 %v1549
    %3491 = vmatpush1.msra.mxu0 %v1548
    %3492 = vmatprep.subr.mxu0 %v1546
    %3493 = vmatpush1.msra.mxu0 %v1545
    %3494 = vmatprep.subr.mxu0 %v1543
    %3495 = vmatpush1.msra.mxu0 %v1542
    %3496 = vmatprep.subr.mxu0 %v1540
    %3497 = vmatpush1.msra.mxu0 %v1539
    %3498 = vmatprep.subr.mxu0 %v1537
    %3499 = vmatpush1.msra.mxu0 %v1536
    %3500 = vmatprep.subr.mxu0 %v1534
    %3501 = vmatpush1.msra.mxu0 %v1533
    %3502 = vmatprep.subr.mxu0 %v1531
    %3503 = vmatpush1.msra.mxu0 %v1530
    %3504 = vmatprep.subr.mxu0 %v1528
    %3505 = vmatpush1.msra.mxu0 %v1527
    %3506 = vmatprep.subr.mxu0 %v1525
    %3507 = vmatpush1.msra.mxu0 %v1524
    %3508 = vmatprep.subr.mxu0 %v1522
    %3509 = vmatpush1.msra.mxu0 %v1521
    %3510 = vmatprep.subr.mxu0 %v1519
    %3511 = vmatpush1.msra.mxu0 %v1518
    %3512 = vmatprep.subr.mxu0 0.0
    %3513 = vmatpush2.msra.mxu0 0.0
    %3514 = vmatprep.subr.mxu0 0.0
    %3515 = vmatpush2.msra.mxu0 0.0
    %3516 = vmatprep.subr.mxu0 0.0
    %3517 = vmatpush2.msra.mxu0 0.0
    %3518 = vmatprep.subr.mxu0 0.0
    %3519 = vmatpush2.msra.mxu0 0.0
    %3520 = vmatprep.subr.mxu0 0.0
    %3521 = vmatpush2.msra.mxu0 0.0
    %3522 = vmatprep.subr.mxu0 0.0
    %3523 = vmatpush2.msra.mxu0 0.0
    %3524 = vmatprep.subr.mxu0 0.0
    %3525 = vmatpush2.msra.mxu0 0.0
    %3526 = vmatprep.subr.mxu0 0.0
    %3527 = vmatpush2.msra.mxu0 0.0
    %3528 = vmatprep.subr.mxu0 0.0
    %3529 = vmatpush2.msra.mxu0 0.0
    %3530 = vmatprep.subr.mxu0 0.0
    %3531 = vmatpush2.msra.mxu0 0.0
    %3532 = vmatprep.subr.mxu0 0.0
    %3533 = vmatpush2.msra.mxu0 0.0
    %3534 = vmatprep.subr.mxu0 0.0
    %3535 = vmatpush2.msra.mxu0 0.0
    %3536 = vmatprep.subr.mxu0 0.0
    %3537 = vmatpush2.msra.mxu0 0.0
    %3538 = vmatprep.subr.mxu0 0.0
    %3539 = vmatpush2.msra.mxu0 0.0
    %3540 = vmatprep.subr.mxu0 0.0
    %3541 = vmatpush2.msra.mxu0 0.0
    %3542 = vmatprep.subr.mxu0 0.0
    %3543 = vmatpush2.msra.mxu0 0.0
    %3544 = vmatprep.mubr.f32.mxu0 0.0
    %3545 = vmatmul.mubr.f32.gmra.mxu0 %v3471
    %v3546 = vpop.f32.mrf.mxu0
    %v3547 = vadd.f32 0.0, %v3546
    %v3548 = vpop.f32.mrf.mxu0
    %v3549 = vadd.f32 0.0, %v3548
    %3550 = vdwg.mxu0
    %3551 = vmatprep.subr.mxu0 0.0
    %3552 = vmatpush1.msra.mxu0 %v1565
    %3553 = vmatprep.subr.mxu0 0.0
    %3554 = vmatpush1.msra.mxu0 %v1562
    %3555 = vmatprep.subr.mxu0 0.0
    %3556 = vmatpush1.msra.mxu0 %v1559
    %3557 = vmatprep.subr.mxu0 0.0
    %3558 = vmatpush1.msra.mxu0 %v1556
    %3559 = vmatprep.subr.mxu0 0.0
    %3560 = vmatpush1.msra.mxu0 %v1553
    %3561 = vmatprep.subr.mxu0 0.0
    %3562 = vmatpush1.msra.mxu0 %v1550
    %3563 = vmatprep.subr.mxu0 0.0
    %3564 = vmatpush1.msra.mxu0 %v1547
    %3565 = vmatprep.subr.mxu0 0.0
    %3566 = vmatpush1.msra.mxu0 %v1544
    %3567 = vmatprep.subr.mxu0 0.0
    %3568 = vmatpush1.msra.mxu0 %v1541
    %3569 = vmatprep.subr.mxu0 0.0
    %3570 = vmatpush1.msra.mxu0 %v1538
    %3571 = vmatprep.subr.mxu0 0.0
    %3572 = vmatpush1.msra.mxu0 %v1535
    %3573 = vmatprep.subr.mxu0 0.0
    %3574 = vmatpush1.msra.mxu0 %v1532
    %3575 = vmatprep.subr.mxu0 0.0
    %3576 = vmatpush1.msra.mxu0 %v1529
    %3577 = vmatprep.subr.mxu0 0.0
    %3578 = vmatpush1.msra.mxu0 %v1526
    %3579 = vmatprep.subr.mxu0 0.0
    %3580 = vmatpush1.msra.mxu0 %v1523
    %3581 = vmatprep.subr.mxu0 0.0
    %3582 = vmatpush1.msra.mxu0 %v1520
    %3583 = vmatprep.subr.mxu0 0.0
    %3584 = vmatpush2.msra.mxu0 0.0
    %3585 = vmatprep.subr.mxu0 0.0
    %3586 = vmatpush2.msra.mxu0 0.0
    %3587 = vmatprep.subr.mxu0 0.0
    %3588 = vmatpush2.msra.mxu0 0.0
    %3589 = vmatprep.subr.mxu0 0.0
    %3590 = vmatpush2.msra.mxu0 0.0
    %3591 = vmatprep.subr.mxu0 0.0
    %3592 = vmatpush2.msra.mxu0 0.0
    %3593 = vmatprep.subr.mxu0 0.0
    %3594 = vmatpush2.msra.mxu0 0.0
    %3595 = vmatprep.subr.mxu0 0.0
    %3596 = vmatpush2.msra.mxu0 0.0
    %3597 = vmatprep.subr.mxu0 0.0
    %3598 = vmatpush2.msra.mxu0 0.0
    %3599 = vmatprep.subr.mxu0 0.0
    %3600 = vmatpush2.msra.mxu0 0.0
    %3601 = vmatprep.subr.mxu0 0.0
    %3602 = vmatpush2.msra.mxu0 0.0
    %3603 = vmatprep.subr.mxu0 0.0
    %3604 = vmatpush2.msra.mxu0 0.0
    %3605 = vmatprep.subr.mxu0 0.0
    %3606 = vmatpush2.msra.mxu0 0.0
    %3607 = vmatprep.subr.mxu0 0.0
    %3608 = vmatpush2.msra.mxu0 0.0
    %3609 = vmatprep.subr.mxu0 0.0
    %3610 = vmatpush2.msra.mxu0 0.0
    %3611 = vmatprep.subr.mxu0 0.0
    %3612 = vmatpush2.msra.mxu0 0.0
    %3613 = vmatprep.subr.mxu0 0.0
    %3614 = vmatpush2.msra.mxu0 0.0
    %3615 = vmatprep.mubr.f32.mxu0 0.0
    %3616 = vmatmul.mubr.f32.gmra.mxu0 %v3471
    %v3617 = vpop.f32.mrf.mxu0
    %v3618 = vadd.f32 0.0, %v3617
    %v3619 = vpop.f32.mrf.mxu0
    %3620 = vdwg.mxu0
    %v3621 = vadd.f32 %v3479, %v3547
    %v3622 = vxor.u32 %v3621, 2147483648
    %v3623 = vmul.f32 %v3622, 1.442695
    %v3624 = vpow.pop %v3623
    %v3625 = vadd.f32 %v3624, 1.0
    %v3626 = vrcp.pop %v3625
    %v3627 = vmul.f32 1.0, %v3626
    %v3629 = vrot.slane %v3479, 2
    %v3631 = vadd.f32 %v3629, %v3549
    %v3632 = vxor.u32 %v3631, 2147483648
    %v3633 = vmul.f32 %v3632, 1.442695
    %v3634 = vpow.pop %v3633
    %v3635 = vadd.f32 %v3634, 1.0
    %v3636 = vrcp.pop %v3635
    %v3637 = vmul.f32 1.0, %v3636
    %v3638 = vadd.f32 %v3618, %v3108
    %v3639 = vmul.f32 %v3627, %v3638
    %v3640 = vrot.slane %v3479, 4
    %v3642 = vadd.f32 %v3640, %v3639
    %v3643 = vtanh.pop %v3642
    %v3644 = vsub.f32 1.0, %v3637
    %v3645 = vmul.f32 %v3644, %v3643
    %v3646 = vmul.f32 %v3637, %v3471
    %v3647 = vadd.f32 %v3645, %v3646
    %vm3648 = vcmp.eq.s32.totalorder %v87, 3
    %v3649 = vsel %vm3648, 1, 0
    %3650 = vset.pattern.permute.xlu0 0
    %3651 = vperm.xlu0 %3650, %v3649
    %v3652 = vpop.permute.xlu0 %3651
    %vm3653 = vcmp.eq.s32.totalorder %v3652, 1
    %v3654 = vsel %vm3653, %v3647, %v3478
    %v3655 = vld [vmem:[%s2449] sm:$0x3f]
    %3656 = vmatprep.subr.mxu0 %v1564
    %3657 = vmatpush1.msra.mxu0 %v1563
    %3658 = vmatprep.subr.mxu0 %v1561
    %3659 = vmatpush1.msra.mxu0 %v1560
    %3660 = vmatprep.subr.mxu0 %v1558
    %3661 = vmatpush1.msra.mxu0 %v1557
    %3662 = vmatprep.subr.mxu0 %v1555
    %3663 = vmatpush1.msra.mxu0 %v1554
    %3664 = vmatprep.subr.mxu0 %v1552
    %3665 = vmatpush1.msra.mxu0 %v1551
    %3666 = vmatprep.subr.mxu0 %v1549
    %3667 = vmatpush1.msra.mxu0 %v1548
    %3668 = vmatprep.subr.mxu0 %v1546
    %3669 = vmatpush1.msra.mxu0 %v1545
    %3670 = vmatprep.subr.mxu0 %v1543
    %3671 = vmatpush1.msra.mxu0 %v1542
    %3672 = vmatprep.subr.mxu0 %v1540
    %3673 = vmatpush1.msra.mxu0 %v1539
    %3674 = vmatprep.subr.mxu0 %v1537
    %3675 = vmatpush1.msra.mxu0 %v1536
    %3676 = vmatprep.subr.mxu0 %v1534
    %3677 = vmatpush1.msra.mxu0 %v1533
    %3678 = vmatprep.subr.mxu0 %v1531
    %3679 = vmatpush1.msra.mxu0 %v1530
    %3680 = vmatprep.subr.mxu0 %v1528
    %3681 = vmatpush1.msra.mxu0 %v1527
    %3682 = vmatprep.subr.mxu0 %v1525
    %3683 = vmatpush1.msra.mxu0 %v1524
    %3684 = vmatprep.subr.mxu0 %v1522
    %3685 = vmatpush1.msra.mxu0 %v1521
    %3686 = vmatprep.subr.mxu0 %v1519
    %3687 = vmatpush1.msra.mxu0 %v1518
    %3688 = vmatprep.subr.mxu0 0.0
    %3689 = vmatpush2.msra.mxu0 0.0
    %3690 = vmatprep.subr.mxu0 0.0
    %3691 = vmatpush2.msra.mxu0 0.0
    %3692 = vmatprep.subr.mxu0 0.0
    %3693 = vmatpush2.msra.mxu0 0.0
    %3694 = vmatprep.subr.mxu0 0.0
    %3695 = vmatpush2.msra.mxu0 0.0
    %3696 = vmatprep.subr.mxu0 0.0
    %3697 = vmatpush2.msra.mxu0 0.0
    %3698 = vmatprep.subr.mxu0 0.0
    %3699 = vmatpush2.msra.mxu0 0.0
    %3700 = vmatprep.subr.mxu0 0.0
    %3701 = vmatpush2.msra.mxu0 0.0
    %3702 = vmatprep.subr.mxu0 0.0
    %3703 = vmatpush2.msra.mxu0 0.0
    %3704 = vmatprep.subr.mxu0 0.0
    %3705 = vmatpush2.msra.mxu0 0.0
    %3706 = vmatprep.subr.mxu0 0.0
    %3707 = vmatpush2.msra.mxu0 0.0
    %3708 = vmatprep.subr.mxu0 0.0
    %3709 = vmatpush2.msra.mxu0 0.0
    %3710 = vmatprep.subr.mxu0 0.0
    %3711 = vmatpush2.msra.mxu0 0.0
    %3712 = vmatprep.subr.mxu0 0.0
    %3713 = vmatpush2.msra.mxu0 0.0
    %3714 = vmatprep.subr.mxu0 0.0
    %3715 = vmatpush2.msra.mxu0 0.0
    %3716 = vmatprep.subr.mxu0 0.0
    %3717 = vmatpush2.msra.mxu0 0.0
    %3718 = vmatprep.subr.mxu0 0.0
    %3719 = vmatpush2.msra.mxu0 0.0
    %3720 = vmatprep.mubr.f32.mxu0 0.0
    %3721 = vmatmul.mubr.f32.gmra.mxu0 %v3647
    %v3722 = vpop.f32.mrf.mxu0
    %v3723 = vadd.f32 0.0, %v3722
    %v3724 = vpop.f32.mrf.mxu0
    %v3725 = vadd.f32 0.0, %v3724
    %3726 = vdwg.mxu0
    %3727 = vmatprep.subr.mxu0 0.0
    %3728 = vmatpush1.msra.mxu0 %v1565
    %3729 = vmatprep.subr.mxu0 0.0
    %3730 = vmatpush1.msra.mxu0 %v1562
    %3731 = vmatprep.subr.mxu0 0.0
    %3732 = vmatpush1.msra.mxu0 %v1559
    %3733 = vmatprep.subr.mxu0 0.0
    %3734 = vmatpush1.msra.mxu0 %v1556
    %3735 = vmatprep.subr.mxu0 0.0
    %3736 = vmatpush1.msra.mxu0 %v1553
    %3737 = vmatprep.subr.mxu0 0.0
    %3738 = vmatpush1.msra.mxu0 %v1550
    %3739 = vmatprep.subr.mxu0 0.0
    %3740 = vmatpush1.msra.mxu0 %v1547
    %3741 = vmatprep.subr.mxu0 0.0
    %3742 = vmatpush1.msra.mxu0 %v1544
    %3743 = vmatprep.subr.mxu0 0.0
    %3744 = vmatpush1.msra.mxu0 %v1541
    %3745 = vmatprep.subr.mxu0 0.0
    %3746 = vmatpush1.msra.mxu0 %v1538
    %3747 = vmatprep.subr.mxu0 0.0
    %3748 = vmatpush1.msra.mxu0 %v1535
    %3749 = vmatprep.subr.mxu0 0.0
    %3750 = vmatpush1.msra.mxu0 %v1532
    %3751 = vmatprep.subr.mxu0 0.0
    %3752 = vmatpush1.msra.mxu0 %v1529
    %3753 = vmatprep.subr.mxu0 0.0
    %3754 = vmatpush1.msra.mxu0 %v1526
    %3755 = vmatprep.subr.mxu0 0.0
    %3756 = vmatpush1.msra.mxu0 %v1523
    %3757 = vmatprep.subr.mxu0 0.0
    %3758 = vmatpush1.msra.mxu0 %v1520
    %3759 = vmatprep.subr.mxu0 0.0
    %3760 = vmatpush2.msra.mxu0 0.0
    %3761 = vmatprep.subr.mxu0 0.0
    %3762 = vmatpush2.msra.mxu0 0.0
    %3763 = vmatprep.subr.mxu0 0.0
    %3764 = vmatpush2.msra.mxu0 0.0
    %3765 = vmatprep.subr.mxu0 0.0
    %3766 = vmatpush2.msra.mxu0 0.0
    %3767 = vmatprep.subr.mxu0 0.0
    %3768 = vmatpush2.msra.mxu0 0.0
    %3769 = vmatprep.subr.mxu0 0.0
    %3770 = vmatpush2.msra.mxu0 0.0
    %3771 = vmatprep.subr.mxu0 0.0
    %3772 = vmatpush2.msra.mxu0 0.0
    %3773 = vmatprep.subr.mxu0 0.0
    %3774 = vmatpush2.msra.mxu0 0.0
    %3775 = vmatprep.subr.mxu0 0.0
    %3776 = vmatpush2.msra.mxu0 0.0
    %3777 = vmatprep.subr.mxu0 0.0
    %3778 = vmatpush2.msra.mxu0 0.0
    %3779 = vmatprep.subr.mxu0 0.0
    %3780 = vmatpush2.msra.mxu0 0.0
    %3781 = vmatprep.subr.mxu0 0.0
    %3782 = vmatpush2.msra.mxu0 0.0
    %3783 = vmatprep.subr.mxu0 0.0
    %3784 = vmatpush2.msra.mxu0 0.0
    %3785 = vmatprep.subr.mxu0 0.0
    %3786 = vmatpush2.msra.mxu0 0.0
    %3787 = vmatprep.subr.mxu0 0.0
    %3788 = vmatpush2.msra.mxu0 0.0
    %3789 = vmatprep.subr.mxu0 0.0
    %3790 = vmatpush2.msra.mxu0 0.0
    %3791 = vmatprep.mubr.f32.mxu0 0.0
    %3792 = vmatmul.mubr.f32.gmra.mxu0 %v3647
    %v3793 = vpop.f32.mrf.mxu0
    %v3794 = vadd.f32 0.0, %v3793
    %v3795 = vpop.f32.mrf.mxu0
    %3796 = vdwg.mxu0
    %v3797 = vadd.f32 %v3655, %v3723
    %v3798 = vxor.u32 %v3797, 2147483648
    %v3799 = vmul.f32 %v3798, 1.442695
    %v3800 = vpow.pop %v3799
    %v3801 = vadd.f32 %v3800, 1.0
    %v3802 = vrcp.pop %v3801
    %v3803 = vmul.f32 1.0, %v3802
    %v3805 = vrot.slane %v3655, 2
    %v3807 = vadd.f32 %v3805, %v3725
    %v3808 = vxor.u32 %v3807, 2147483648
    %v3809 = vmul.f32 %v3808, 1.442695
    %v3810 = vpow.pop %v3809
    %v3811 = vadd.f32 %v3810, 1.0
    %v3812 = vrcp.pop %v3811
    %v3813 = vmul.f32 1.0, %v3812
    %v3814 = vadd.f32 %v3794, %v3108
    %v3815 = vmul.f32 %v3803, %v3814
    %v3816 = vrot.slane %v3655, 4
    %v3818 = vadd.f32 %v3816, %v3815
    %v3819 = vtanh.pop %v3818
    %v3820 = vsub.f32 1.0, %v3813
    %v3821 = vmul.f32 %v3820, %v3819
    %v3822 = vmul.f32 %v3813, %v3647
    %v3823 = vadd.f32 %v3821, %v3822
    %vm3824 = vcmp.eq.s32.totalorder %v87, 4
    %v3825 = vsel %vm3824, 1, 0
    %3826 = vset.pattern.permute.xlu0 0
    %3827 = vperm.xlu0 %3826, %v3825
    %v3828 = vpop.permute.xlu0 %3827
    %vm3829 = vcmp.eq.s32.totalorder %v3828, 1
    %v3830 = vsel %vm3829, %v3823, %v3654
    %v3831 = vld [vmem:[%s2613] sm:$0x3f]
    %3832 = vmatprep.subr.mxu0 %v1564
    %3833 = vmatpush1.msra.mxu0 %v1563
    %3834 = vmatprep.subr.mxu0 %v1561
    %3835 = vmatpush1.msra.mxu0 %v1560
    %3836 = vmatprep.subr.mxu0 %v1558
    %3837 = vmatpush1.msra.mxu0 %v1557
    %3838 = vmatprep.subr.mxu0 %v1555
    %3839 = vmatpush1.msra.mxu0 %v1554
    %3840 = vmatprep.subr.mxu0 %v1552
    %3841 = vmatpush1.msra.mxu0 %v1551
    %3842 = vmatprep.subr.mxu0 %v1549
    %3843 = vmatpush1.msra.mxu0 %v1548
    %3844 = vmatprep.subr.mxu0 %v1546
    %3845 = vmatpush1.msra.mxu0 %v1545
    %3846 = vmatprep.subr.mxu0 %v1543
    %3847 = vmatpush1.msra.mxu0 %v1542
    %3848 = vmatprep.subr.mxu0 %v1540
    %3849 = vmatpush1.msra.mxu0 %v1539
    %3850 = vmatprep.subr.mxu0 %v1537
    %3851 = vmatpush1.msra.mxu0 %v1536
    %3852 = vmatprep.subr.mxu0 %v1534
    %3853 = vmatpush1.msra.mxu0 %v1533
    %3854 = vmatprep.subr.mxu0 %v1531
    %3855 = vmatpush1.msra.mxu0 %v1530
    %3856 = vmatprep.subr.mxu0 %v1528
    %3857 = vmatpush1.msra.mxu0 %v1527
    %3858 = vmatprep.subr.mxu0 %v1525
    %3859 = vmatpush1.msra.mxu0 %v1524
    %3860 = vmatprep.subr.mxu0 %v1522
    %3861 = vmatpush1.msra.mxu0 %v1521
    %3862 = vmatprep.subr.mxu0 %v1519
    %3863 = vmatpush1.msra.mxu0 %v1518
    %3864 = vmatprep.subr.mxu0 0.0
    %3865 = vmatpush2.msra.mxu0 0.0
    %3866 = vmatprep.subr.mxu0 0.0
    %3867 = vmatpush2.msra.mxu0 0.0
    %3868 = vmatprep.subr.mxu0 0.0
    %3869 = vmatpush2.msra.mxu0 0.0
    %3870 = vmatprep.subr.mxu0 0.0
    %3871 = vmatpush2.msra.mxu0 0.0
    %3872 = vmatprep.subr.mxu0 0.0
    %3873 = vmatpush2.msra.mxu0 0.0
    %3874 = vmatprep.subr.mxu0 0.0
    %3875 = vmatpush2.msra.mxu0 0.0
    %3876 = vmatprep.subr.mxu0 0.0
    %3877 = vmatpush2.msra.mxu0 0.0
    %3878 = vmatprep.subr.mxu0 0.0
    %3879 = vmatpush2.msra.mxu0 0.0
    %3880 = vmatprep.subr.mxu0 0.0
    %3881 = vmatpush2.msra.mxu0 0.0
    %3882 = vmatprep.subr.mxu0 0.0
    %3883 = vmatpush2.msra.mxu0 0.0
    %3884 = vmatprep.subr.mxu0 0.0
    %3885 = vmatpush2.msra.mxu0 0.0
    %3886 = vmatprep.subr.mxu0 0.0
    %3887 = vmatpush2.msra.mxu0 0.0
    %3888 = vmatprep.subr.mxu0 0.0
    %3889 = vmatpush2.msra.mxu0 0.0
    %3890 = vmatprep.subr.mxu0 0.0
    %3891 = vmatpush2.msra.mxu0 0.0
    %3892 = vmatprep.subr.mxu0 0.0
    %3893 = vmatpush2.msra.mxu0 0.0
    %3894 = vmatprep.subr.mxu0 0.0
    %3895 = vmatpush2.msra.mxu0 0.0
    %3896 = vmatprep.mubr.f32.mxu0 0.0
    %3897 = vmatmul.mubr.f32.gmra.mxu0 %v3823
    %v3898 = vpop.f32.mrf.mxu0
    %v3899 = vadd.f32 0.0, %v3898
    %v3900 = vpop.f32.mrf.mxu0
    %v3901 = vadd.f32 0.0, %v3900
    %3902 = vdwg.mxu0
    %3903 = vmatprep.subr.mxu0 0.0
    %3904 = vmatpush1.msra.mxu0 %v1565
    %3905 = vmatprep.subr.mxu0 0.0
    %3906 = vmatpush1.msra.mxu0 %v1562
    %3907 = vmatprep.subr.mxu0 0.0
    %3908 = vmatpush1.msra.mxu0 %v1559
    %3909 = vmatprep.subr.mxu0 0.0
    %3910 = vmatpush1.msra.mxu0 %v1556
    %3911 = vmatprep.subr.mxu0 0.0
    %3912 = vmatpush1.msra.mxu0 %v1553
    %3913 = vmatprep.subr.mxu0 0.0
    %3914 = vmatpush1.msra.mxu0 %v1550
    %3915 = vmatprep.subr.mxu0 0.0
    %3916 = vmatpush1.msra.mxu0 %v1547
    %3917 = vmatprep.subr.mxu0 0.0
    %3918 = vmatpush1.msra.mxu0 %v1544
    %3919 = vmatprep.subr.mxu0 0.0
    %3920 = vmatpush1.msra.mxu0 %v1541
    %3921 = vmatprep.subr.mxu0 0.0
    %3922 = vmatpush1.msra.mxu0 %v1538
    %3923 = vmatprep.subr.mxu0 0.0
    %3924 = vmatpush1.msra.mxu0 %v1535
    %3925 = vmatprep.subr.mxu0 0.0
    %3926 = vmatpush1.msra.mxu0 %v1532
    %3927 = vmatprep.subr.mxu0 0.0
    %3928 = vmatpush1.msra.mxu0 %v1529
    %3929 = vmatprep.subr.mxu0 0.0
    %3930 = vmatpush1.msra.mxu0 %v1526
    %3931 = vmatprep.subr.mxu0 0.0
    %3932 = vmatpush1.msra.mxu0 %v1523
    %3933 = vmatprep.subr.mxu0 0.0
    %3934 = vmatpush1.msra.mxu0 %v1520
    %3935 = vmatprep.subr.mxu0 0.0
    %3936 = vmatpush2.msra.mxu0 0.0
    %3937 = vmatprep.subr.mxu0 0.0
    %3938 = vmatpush2.msra.mxu0 0.0
    %3939 = vmatprep.subr.mxu0 0.0
    %3940 = vmatpush2.msra.mxu0 0.0
    %3941 = vmatprep.subr.mxu0 0.0
    %3942 = vmatpush2.msra.mxu0 0.0
    %3943 = vmatprep.subr.mxu0 0.0
    %3944 = vmatpush2.msra.mxu0 0.0
    %3945 = vmatprep.subr.mxu0 0.0
    %3946 = vmatpush2.msra.mxu0 0.0
    %3947 = vmatprep.subr.mxu0 0.0
    %3948 = vmatpush2.msra.mxu0 0.0
    %3949 = vmatprep.subr.mxu0 0.0
    %3950 = vmatpush2.msra.mxu0 0.0
    %3951 = vmatprep.subr.mxu0 0.0
    %3952 = vmatpush2.msra.mxu0 0.0
    %3953 = vmatprep.subr.mxu0 0.0
    %3954 = vmatpush2.msra.mxu0 0.0
    %3955 = vmatprep.subr.mxu0 0.0
    %3956 = vmatpush2.msra.mxu0 0.0
    %3957 = vmatprep.subr.mxu0 0.0
    %3958 = vmatpush2.msra.mxu0 0.0
    %3959 = vmatprep.subr.mxu0 0.0
    %3960 = vmatpush2.msra.mxu0 0.0
    %3961 = vmatprep.subr.mxu0 0.0
    %3962 = vmatpush2.msra.mxu0 0.0
    %3963 = vmatprep.subr.mxu0 0.0
    %3964 = vmatpush2.msra.mxu0 0.0
    %3965 = vmatprep.subr.mxu0 0.0
    %3966 = vmatpush2.msra.mxu0 0.0
    %3967 = vmatprep.mubr.f32.mxu0 0.0
    %3968 = vmatmul.mubr.f32.gmra.mxu0 %v3823
    %v3969 = vpop.f32.mrf.mxu0
    %v3970 = vadd.f32 0.0, %v3969
    %v3971 = vpop.f32.mrf.mxu0
    %3972 = vdwg.mxu0
    %v3973 = vadd.f32 %v3831, %v3899
    %v3974 = vxor.u32 %v3973, 2147483648
    %v3975 = vmul.f32 %v3974, 1.442695
    %v3976 = vpow.pop %v3975
    %v3977 = vadd.f32 %v3976, 1.0
    %v3978 = vrcp.pop %v3977
    %v3979 = vmul.f32 1.0, %v3978
    %v3981 = vrot.slane %v3831, 2
    %v3983 = vadd.f32 %v3981, %v3901
    %v3984 = vxor.u32 %v3983, 2147483648
    %v3985 = vmul.f32 %v3984, 1.442695
    %v3986 = vpow.pop %v3985
    %v3987 = vadd.f32 %v3986, 1.0
    %v3988 = vrcp.pop %v3987
    %v3989 = vmul.f32 1.0, %v3988
    %v3990 = vadd.f32 %v3970, %v3108
    %v3991 = vmul.f32 %v3979, %v3990
    %v3992 = vrot.slane %v3831, 4
    %v3994 = vadd.f32 %v3992, %v3991
    %v3995 = vtanh.pop %v3994
    %v3996 = vsub.f32 1.0, %v3989
    %v3997 = vmul.f32 %v3996, %v3995
    %v3998 = vmul.f32 %v3989, %v3823
    %v3999 = vadd.f32 %v3997, %v3998
    %vm4000 = vcmp.eq.s32.totalorder %v87, 5
    %v4001 = vsel %vm4000, 1, 0
    %4002 = vset.pattern.permute.xlu0 0
    %4003 = vperm.xlu0 %4002, %v4001
    %v4004 = vpop.permute.xlu0 %4003
    %vm4005 = vcmp.eq.s32.totalorder %v4004, 1
    %v4006 = vsel %vm4005, %v3999, %v3830
    %v4007 = vld [vmem:[%s2777] sm:$0x3f]
    %4008 = vmatprep.subr.mxu0 %v1564
    %4009 = vmatpush1.msra.mxu0 %v1563
    %4010 = vmatprep.subr.mxu0 %v1561
    %4011 = vmatpush1.msra.mxu0 %v1560
    %4012 = vmatprep.subr.mxu0 %v1558
    %4013 = vmatpush1.msra.mxu0 %v1557
    %4014 = vmatprep.subr.mxu0 %v1555
    %4015 = vmatpush1.msra.mxu0 %v1554
    %4016 = vmatprep.subr.mxu0 %v1552
    %4017 = vmatpush1.msra.mxu0 %v1551
    %4018 = vmatprep.subr.mxu0 %v1549
    %4019 = vmatpush1.msra.mxu0 %v1548
    %4020 = vmatprep.subr.mxu0 %v1546
    %4021 = vmatpush1.msra.mxu0 %v1545
    %4022 = vmatprep.subr.mxu0 %v1543
    %4023 = vmatpush1.msra.mxu0 %v1542
    %4024 = vmatprep.subr.mxu0 %v1540
    %4025 = vmatpush1.msra.mxu0 %v1539
    %4026 = vmatprep.subr.mxu0 %v1537
    %4027 = vmatpush1.msra.mxu0 %v1536
    %4028 = vmatprep.subr.mxu0 %v1534
    %4029 = vmatpush1.msra.mxu0 %v1533
    %4030 = vmatprep.subr.mxu0 %v1531
    %4031 = vmatpush1.msra.mxu0 %v1530
    %4032 = vmatprep.subr.mxu0 %v1528
    %4033 = vmatpush1.msra.mxu0 %v1527
    %4034 = vmatprep.subr.mxu0 %v1525
    %4035 = vmatpush1.msra.mxu0 %v1524
    %4036 = vmatprep.subr.mxu0 %v1522
    %4037 = vmatpush1.msra.mxu0 %v1521
    %4038 = vmatprep.subr.mxu0 %v1519
    %4039 = vmatpush1.msra.mxu0 %v1518
    %4040 = vmatprep.subr.mxu0 0.0
    %4041 = vmatpush2.msra.mxu0 0.0
    %4042 = vmatprep.subr.mxu0 0.0
    %4043 = vmatpush2.msra.mxu0 0.0
    %4044 = vmatprep.subr.mxu0 0.0
    %4045 = vmatpush2.msra.mxu0 0.0
    %4046 = vmatprep.subr.mxu0 0.0
    %4047 = vmatpush2.msra.mxu0 0.0
    %4048 = vmatprep.subr.mxu0 0.0
    %4049 = vmatpush2.msra.mxu0 0.0
    %4050 = vmatprep.subr.mxu0 0.0
    %4051 = vmatpush2.msra.mxu0 0.0
    %4052 = vmatprep.subr.mxu0 0.0
    %4053 = vmatpush2.msra.mxu0 0.0
    %4054 = vmatprep.subr.mxu0 0.0
    %4055 = vmatpush2.msra.mxu0 0.0
    %4056 = vmatprep.subr.mxu0 0.0
    %4057 = vmatpush2.msra.mxu0 0.0
    %4058 = vmatprep.subr.mxu0 0.0
    %4059 = vmatpush2.msra.mxu0 0.0
    %4060 = vmatprep.subr.mxu0 0.0
    %4061 = vmatpush2.msra.mxu0 0.0
    %4062 = vmatprep.subr.mxu0 0.0
    %4063 = vmatpush2.msra.mxu0 0.0
    %4064 = vmatprep.subr.mxu0 0.0
    %4065 = vmatpush2.msra.mxu0 0.0
    %4066 = vmatprep.subr.mxu0 0.0
    %4067 = vmatpush2.msra.mxu0 0.0
    %4068 = vmatprep.subr.mxu0 0.0
    %4069 = vmatpush2.msra.mxu0 0.0
    %4070 = vmatprep.subr.mxu0 0.0
    %4071 = vmatpush2.msra.mxu0 0.0
    %4072 = vmatprep.mubr.f32.mxu0 0.0
    %4073 = vmatmul.mubr.f32.gmra.mxu0 %v3999
    %v4074 = vpop.f32.mrf.mxu0
    %v4075 = vadd.f32 0.0, %v4074
    %v4076 = vpop.f32.mrf.mxu0
    %v4077 = vadd.f32 0.0, %v4076
    %4078 = vdwg.mxu0
    %4079 = vmatprep.subr.mxu0 0.0
    %4080 = vmatpush1.msra.mxu0 %v1565
    %4081 = vmatprep.subr.mxu0 0.0
    %4082 = vmatpush1.msra.mxu0 %v1562
    %4083 = vmatprep.subr.mxu0 0.0
    %4084 = vmatpush1.msra.mxu0 %v1559
    %4085 = vmatprep.subr.mxu0 0.0
    %4086 = vmatpush1.msra.mxu0 %v1556
    %4087 = vmatprep.subr.mxu0 0.0
    %4088 = vmatpush1.msra.mxu0 %v1553
    %4089 = vmatprep.subr.mxu0 0.0
    %4090 = vmatpush1.msra.mxu0 %v1550
    %4091 = vmatprep.subr.mxu0 0.0
    %4092 = vmatpush1.msra.mxu0 %v1547
    %4093 = vmatprep.subr.mxu0 0.0
    %4094 = vmatpush1.msra.mxu0 %v1544
    %4095 = vmatprep.subr.mxu0 0.0
    %4096 = vmatpush1.msra.mxu0 %v1541
    %4097 = vmatprep.subr.mxu0 0.0
    %4098 = vmatpush1.msra.mxu0 %v1538
    %4099 = vmatprep.subr.mxu0 0.0
    %4100 = vmatpush1.msra.mxu0 %v1535
    %4101 = vmatprep.subr.mxu0 0.0
    %4102 = vmatpush1.msra.mxu0 %v1532
    %4103 = vmatprep.subr.mxu0 0.0
    %4104 = vmatpush1.msra.mxu0 %v1529
    %4105 = vmatprep.subr.mxu0 0.0
    %4106 = vmatpush1.msra.mxu0 %v1526
    %4107 = vmatprep.subr.mxu0 0.0
    %4108 = vmatpush1.msra.mxu0 %v1523
    %4109 = vmatprep.subr.mxu0 0.0
    %4110 = vmatpush1.msra.mxu0 %v1520
    %4111 = vmatprep.subr.mxu0 0.0
    %4112 = vmatpush2.msra.mxu0 0.0
    %4113 = vmatprep.subr.mxu0 0.0
    %4114 = vmatpush2.msra.mxu0 0.0
    %4115 = vmatprep.subr.mxu0 0.0
    %4116 = vmatpush2.msra.mxu0 0.0
    %4117 = vmatprep.subr.mxu0 0.0
    %4118 = vmatpush2.msra.mxu0 0.0
    %4119 = vmatprep.subr.mxu0 0.0
    %4120 = vmatpush2.msra.mxu0 0.0
    %4121 = vmatprep.subr.mxu0 0.0
    %4122 = vmatpush2.msra.mxu0 0.0
    %4123 = vmatprep.subr.mxu0 0.0
    %4124 = vmatpush2.msra.mxu0 0.0
    %4125 = vmatprep.subr.mxu0 0.0
    %4126 = vmatpush2.msra.mxu0 0.0
    %4127 = vmatprep.subr.mxu0 0.0
    %4128 = vmatpush2.msra.mxu0 0.0
    %4129 = vmatprep.subr.mxu0 0.0
    %4130 = vmatpush2.msra.mxu0 0.0
    %4131 = vmatprep.subr.mxu0 0.0
    %4132 = vmatpush2.msra.mxu0 0.0
    %4133 = vmatprep.subr.mxu0 0.0
    %4134 = vmatpush2.msra.mxu0 0.0
    %4135 = vmatprep.subr.mxu0 0.0
    %4136 = vmatpush2.msra.mxu0 0.0
    %4137 = vmatprep.subr.mxu0 0.0
    %4138 = vmatpush2.msra.mxu0 0.0
    %4139 = vmatprep.subr.mxu0 0.0
    %4140 = vmatpush2.msra.mxu0 0.0
    %4141 = vmatprep.subr.mxu0 0.0
    %4142 = vmatpush2.msra.mxu0 0.0
    %4143 = vmatprep.mubr.f32.mxu0 0.0
    %4144 = vmatmul.mubr.f32.gmra.mxu0 %v3999
    %v4145 = vpop.f32.mrf.mxu0
    %v4146 = vadd.f32 0.0, %v4145
    %v4147 = vpop.f32.mrf.mxu0
    %4148 = vdwg.mxu0
    %v4149 = vadd.f32 %v4007, %v4075
    %v4150 = vxor.u32 %v4149, 2147483648
    %v4151 = vmul.f32 %v4150, 1.442695
    %v4152 = vpow.pop %v4151
    %v4153 = vadd.f32 %v4152, 1.0
    %v4154 = vrcp.pop %v4153
    %v4155 = vmul.f32 1.0, %v4154
    %v4157 = vrot.slane %v4007, 2
    %v4159 = vadd.f32 %v4157, %v4077
    %v4160 = vxor.u32 %v4159, 2147483648
    %v4161 = vmul.f32 %v4160, 1.442695
    %v4162 = vpow.pop %v4161
    %v4163 = vadd.f32 %v4162, 1.0
    %v4164 = vrcp.pop %v4163
    %v4165 = vmul.f32 1.0, %v4164
    %v4166 = vadd.f32 %v4146, %v3108
    %v4167 = vmul.f32 %v4155, %v4166
    %v4168 = vrot.slane %v4007, 4
    %v4170 = vadd.f32 %v4168, %v4167
    %v4171 = vtanh.pop %v4170
    %v4172 = vsub.f32 1.0, %v4165
    %v4173 = vmul.f32 %v4172, %v4171
    %v4174 = vmul.f32 %v4165, %v3999
    %v4175 = vadd.f32 %v4173, %v4174
    %vm4176 = vcmp.eq.s32.totalorder %v87, 6
    %v4177 = vsel %vm4176, 1, 0
    %4178 = vset.pattern.permute.xlu0 0
    %4179 = vperm.xlu0 %4178, %v4177
    %v4180 = vpop.permute.xlu0 %4179
    %vm4181 = vcmp.eq.s32.totalorder %v4180, 1
    %v4182 = vsel %vm4181, %v4175, %v4006
    %v4183 = vld [vmem:[%s2941] sm:$0x3f]
    %4184 = vmatprep.subr.mxu0 %v1564
    %4185 = vmatpush1.msra.mxu0 %v1563
    %4186 = vmatprep.subr.mxu0 %v1561
    %4187 = vmatpush1.msra.mxu0 %v1560
    %4188 = vmatprep.subr.mxu0 %v1558
    %4189 = vmatpush1.msra.mxu0 %v1557
    %4190 = vmatprep.subr.mxu0 %v1555
    %4191 = vmatpush1.msra.mxu0 %v1554
    %4192 = vmatprep.subr.mxu0 %v1552
    %4193 = vmatpush1.msra.mxu0 %v1551
    %4194 = vmatprep.subr.mxu0 %v1549
    %4195 = vmatpush1.msra.mxu0 %v1548
    %4196 = vmatprep.subr.mxu0 %v1546
    %4197 = vmatpush1.msra.mxu0 %v1545
    %4198 = vmatprep.subr.mxu0 %v1543
    %4199 = vmatpush1.msra.mxu0 %v1542
    %4200 = vmatprep.subr.mxu0 %v1540
    %4201 = vmatpush1.msra.mxu0 %v1539
    %4202 = vmatprep.subr.mxu0 %v1537
    %4203 = vmatpush1.msra.mxu0 %v1536
    %4204 = vmatprep.subr.mxu0 %v1534
    %4205 = vmatpush1.msra.mxu0 %v1533
    %4206 = vmatprep.subr.mxu0 %v1531
    %4207 = vmatpush1.msra.mxu0 %v1530
    %4208 = vmatprep.subr.mxu0 %v1528
    %4209 = vmatpush1.msra.mxu0 %v1527
    %4210 = vmatprep.subr.mxu0 %v1525
    %4211 = vmatpush1.msra.mxu0 %v1524
    %4212 = vmatprep.subr.mxu0 %v1522
    %4213 = vmatpush1.msra.mxu0 %v1521
    %4214 = vmatprep.subr.mxu0 %v1519
    %4215 = vmatpush1.msra.mxu0 %v1518
    %4216 = vmatprep.subr.mxu0 0.0
    %4217 = vmatpush2.msra.mxu0 0.0
    %4218 = vmatprep.subr.mxu0 0.0
    %4219 = vmatpush2.msra.mxu0 0.0
    %4220 = vmatprep.subr.mxu0 0.0
    %4221 = vmatpush2.msra.mxu0 0.0
    %4222 = vmatprep.subr.mxu0 0.0
    %4223 = vmatpush2.msra.mxu0 0.0
    %4224 = vmatprep.subr.mxu0 0.0
    %4225 = vmatpush2.msra.mxu0 0.0
    %4226 = vmatprep.subr.mxu0 0.0
    %4227 = vmatpush2.msra.mxu0 0.0
    %4228 = vmatprep.subr.mxu0 0.0
    %4229 = vmatpush2.msra.mxu0 0.0
    %4230 = vmatprep.subr.mxu0 0.0
    %4231 = vmatpush2.msra.mxu0 0.0
    %4232 = vmatprep.subr.mxu0 0.0
    %4233 = vmatpush2.msra.mxu0 0.0
    %4234 = vmatprep.subr.mxu0 0.0
    %4235 = vmatpush2.msra.mxu0 0.0
    %4236 = vmatprep.subr.mxu0 0.0
    %4237 = vmatpush2.msra.mxu0 0.0
    %4238 = vmatprep.subr.mxu0 0.0
    %4239 = vmatpush2.msra.mxu0 0.0
    %4240 = vmatprep.subr.mxu0 0.0
    %4241 = vmatpush2.msra.mxu0 0.0
    %4242 = vmatprep.subr.mxu0 0.0
    %4243 = vmatpush2.msra.mxu0 0.0
    %4244 = vmatprep.subr.mxu0 0.0
    %4245 = vmatpush2.msra.mxu0 0.0
    %4246 = vmatprep.subr.mxu0 0.0
    %4247 = vmatpush2.msra.mxu0 0.0
    %4248 = vmatprep.mubr.f32.mxu0 0.0
    %4249 = vmatmul.mubr.f32.gmra.mxu0 %v4175
    %v4250 = vpop.f32.mrf.mxu0
    %v4251 = vadd.f32 0.0, %v4250
    %v4252 = vpop.f32.mrf.mxu0
    %v4253 = vadd.f32 0.0, %v4252
    %4254 = vdwg.mxu0
    %4255 = vmatprep.subr.mxu0 0.0
    %4256 = vmatpush1.msra.mxu0 %v1565
    %4257 = vmatprep.subr.mxu0 0.0
    %4258 = vmatpush1.msra.mxu0 %v1562
    %4259 = vmatprep.subr.mxu0 0.0
    %4260 = vmatpush1.msra.mxu0 %v1559
    %4261 = vmatprep.subr.mxu0 0.0
    %4262 = vmatpush1.msra.mxu0 %v1556
    %4263 = vmatprep.subr.mxu0 0.0
    %4264 = vmatpush1.msra.mxu0 %v1553
    %4265 = vmatprep.subr.mxu0 0.0
    %4266 = vmatpush1.msra.mxu0 %v1550
    %4267 = vmatprep.subr.mxu0 0.0
    %4268 = vmatpush1.msra.mxu0 %v1547
    %4269 = vmatprep.subr.mxu0 0.0
    %4270 = vmatpush1.msra.mxu0 %v1544
    %4271 = vmatprep.subr.mxu0 0.0
    %4272 = vmatpush1.msra.mxu0 %v1541
    %4273 = vmatprep.subr.mxu0 0.0
    %4274 = vmatpush1.msra.mxu0 %v1538
    %4275 = vmatprep.subr.mxu0 0.0
    %4276 = vmatpush1.msra.mxu0 %v1535
    %4277 = vmatprep.subr.mxu0 0.0
    %4278 = vmatpush1.msra.mxu0 %v1532
    %4279 = vmatprep.subr.mxu0 0.0
    %4280 = vmatpush1.msra.mxu0 %v1529
    %4281 = vmatprep.subr.mxu0 0.0
    %4282 = vmatpush1.msra.mxu0 %v1526
    %4283 = vmatprep.subr.mxu0 0.0
    %4284 = vmatpush1.msra.mxu0 %v1523
    %4285 = vmatprep.subr.mxu0 0.0
    %4286 = vmatpush1.msra.mxu0 %v1520
    %4287 = vmatprep.subr.mxu0 0.0
    %4288 = vmatpush2.msra.mxu0 0.0
    %4289 = vmatprep.subr.mxu0 0.0
    %4290 = vmatpush2.msra.mxu0 0.0
    %4291 = vmatprep.subr.mxu0 0.0
    %4292 = vmatpush2.msra.mxu0 0.0
    %4293 = vmatprep.subr.mxu0 0.0
    %4294 = vmatpush2.msra.mxu0 0.0
    %4295 = vmatprep.subr.mxu0 0.0
    %4296 = vmatpush2.msra.mxu0 0.0
    %4297 = vmatprep.subr.mxu0 0.0
    %4298 = vmatpush2.msra.mxu0 0.0
    %4299 = vmatprep.subr.mxu0 0.0
    %4300 = vmatpush2.msra.mxu0 0.0
    %4301 = vmatprep.subr.mxu0 0.0
    %4302 = vmatpush2.msra.mxu0 0.0
    %4303 = vmatprep.subr.mxu0 0.0
    %4304 = vmatpush2.msra.mxu0 0.0
    %4305 = vmatprep.subr.mxu0 0.0
    %4306 = vmatpush2.msra.mxu0 0.0
    %4307 = vmatprep.subr.mxu0 0.0
    %4308 = vmatpush2.msra.mxu0 0.0
    %4309 = vmatprep.subr.mxu0 0.0
    %4310 = vmatpush2.msra.mxu0 0.0
    %4311 = vmatprep.subr.mxu0 0.0
    %4312 = vmatpush2.msra.mxu0 0.0
    %4313 = vmatprep.subr.mxu0 0.0
    %4314 = vmatpush2.msra.mxu0 0.0
    %4315 = vmatprep.subr.mxu0 0.0
    %4316 = vmatpush2.msra.mxu0 0.0
    %4317 = vmatprep.subr.mxu0 0.0
    %4318 = vmatpush2.msra.mxu0 0.0
    %4319 = vmatprep.mubr.f32.mxu0 0.0
    %4320 = vmatmul.mubr.f32.gmra.mxu0 %v4175
    %v4321 = vpop.f32.mrf.mxu0
    %v4322 = vadd.f32 0.0, %v4321
    %v4323 = vpop.f32.mrf.mxu0
    %4324 = vdwg.mxu0
    %v4325 = vadd.f32 %v4183, %v4251
    %v4326 = vxor.u32 %v4325, 2147483648
    %v4327 = vmul.f32 %v4326, 1.442695
    %v4328 = vpow.pop %v4327
    %v4329 = vadd.f32 %v4328, 1.0
    %v4330 = vrcp.pop %v4329
    %v4331 = vmul.f32 1.0, %v4330
    %v4333 = vrot.slane %v4183, 2
    %v4335 = vadd.f32 %v4333, %v4253
    %v4336 = vxor.u32 %v4335, 2147483648
    %v4337 = vmul.f32 %v4336, 1.442695
    %v4338 = vpow.pop %v4337
    %v4339 = vadd.f32 %v4338, 1.0
    %v4340 = vrcp.pop %v4339
    %v4341 = vmul.f32 1.0, %v4340
    %v4342 = vadd.f32 %v4322, %v3108
    %v4343 = vmul.f32 %v4331, %v4342
    %v4344 = vrot.slane %v4183, 4
    %v4346 = vadd.f32 %v4344, %v4343
    %v4347 = vtanh.pop %v4346
    %v4348 = vsub.f32 1.0, %v4341
    %v4349 = vmul.f32 %v4348, %v4347
    %v4350 = vmul.f32 %v4341, %v4175
    %v4351 = vadd.f32 %v4349, %v4350
    %vm4352 = vcmp.eq.s32.totalorder %v87, 7
    %v4353 = vsel %vm4352, 1, 0
    %4354 = vset.pattern.permute.xlu0 0
    %4355 = vperm.xlu0 %4354, %v4353
    %v4356 = vpop.permute.xlu0 %4355
    %vm4357 = vcmp.eq.s32.totalorder %v4356, 1
    %v4358 = vsel %vm4357, %v4351, %v4182
    %v4359 = vld [vmem:[%s9] sm:$0xff]
    %v4360 = vld [vmem:[%s9 + $0x8] sm:$0xff]
    %v4361 = vld [vmem:[%s9 + $0x10] sm:$0xff]
    %v4362 = vld [vmem:[%s9 + $0x18] sm:$0xff]
    %v4363 = vld [vmem:[%s9 + $0x20] sm:$0xff]
    %v4364 = vld [vmem:[%s9 + $0x28] sm:$0xff]
    %v4365 = vld [vmem:[%s9 + $0x30] sm:$0xff]
    %v4366 = vld [vmem:[%s9 + $0x38] sm:$0xff]
    %v4367 = vld [vmem:[%s9 + $0x40] sm:$0xff]
    %v4368 = vld [vmem:[%s9 + $0x48] sm:$0xff]
    %v4369 = vld [vmem:[%s9 + $0x50] sm:$0xff]
    %v4370 = vld [vmem:[%s9 + $0x58] sm:$0xff]
    %v4371 = vld [vmem:[%s9 + $0x60] sm:$0xff]
    %v4372 = vld [vmem:[%s9 + $0x68] sm:$0xff]
    %v4373 = vld [vmem:[%s9 + $0x70] sm:$0xff]
    %v4374 = vld [vmem:[%s9 + $0x78] sm:$0xff]
    %v4375 = vld [vmem:[%s10] sm:$0x1]
    %v4377 = vlaneseq
    %v4378 = vshrl.u32 %v4377, 7
    %v4379 = vsub.s32 0, %v4378
    %v4380 = vrot.slane %v4375, %v4379
    %4382 = vmatprep.subr.mxu0 0.0
    %4383 = vmatpush1.msra.mxu0 %v4374
    %4384 = vmatprep.subr.mxu0 0.0
    %4385 = vmatpush1.msra.mxu0 %v4373
    %4386 = vmatprep.subr.mxu0 0.0
    %4387 = vmatpush1.msra.mxu0 %v4372
    %4388 = vmatprep.subr.mxu0 0.0
    %4389 = vmatpush1.msra.mxu0 %v4371
    %4390 = vmatprep.subr.mxu0 0.0
    %4391 = vmatpush1.msra.mxu0 %v4370
    %4392 = vmatprep.subr.mxu0 0.0
    %4393 = vmatpush1.msra.mxu0 %v4369
    %4394 = vmatprep.subr.mxu0 0.0
    %4395 = vmatpush1.msra.mxu0 %v4368
    %4396 = vmatprep.subr.mxu0 0.0
    %4397 = vmatpush1.msra.mxu0 %v4367
    %4398 = vmatprep.subr.mxu0 0.0
    %4399 = vmatpush1.msra.mxu0 %v4366
    %4400 = vmatprep.subr.mxu0 0.0
    %4401 = vmatpush1.msra.mxu0 %v4365
    %4402 = vmatprep.subr.mxu0 0.0
    %4403 = vmatpush1.msra.mxu0 %v4364
    %4404 = vmatprep.subr.mxu0 0.0
    %4405 = vmatpush1.msra.mxu0 %v4363
    %4406 = vmatprep.subr.mxu0 0.0
    %4407 = vmatpush1.msra.mxu0 %v4362
    %4408 = vmatprep.subr.mxu0 0.0
    %4409 = vmatpush1.msra.mxu0 %v4361
    %4410 = vmatprep.subr.mxu0 0.0
    %4411 = vmatpush1.msra.mxu0 %v4360
    %4412 = vmatprep.subr.mxu0 0.0
    %4413 = vmatpush1.msra.mxu0 %v4359
    %4414 = vmatprep.subr.mxu0 0.0
    %4415 = vmatpush2.msra.mxu0 0.0
    %4416 = vmatprep.subr.mxu0 0.0
    %4417 = vmatpush2.msra.mxu0 0.0
    %4418 = vmatprep.subr.mxu0 0.0
    %4419 = vmatpush2.msra.mxu0 0.0
    %4420 = vmatprep.subr.mxu0 0.0
    %4421 = vmatpush2.msra.mxu0 0.0
    %4422 = vmatprep.subr.mxu0 0.0
    %4423 = vmatpush2.msra.mxu0 0.0
    %4424 = vmatprep.subr.mxu0 0.0
    %4425 = vmatpush2.msra.mxu0 0.0
    %4426 = vmatprep.subr.mxu0 0.0
    %4427 = vmatpush2.msra.mxu0 0.0
    %4428 = vmatprep.subr.mxu0 0.0
    %4429 = vmatpush2.msra.mxu0 0.0
    %4430 = vmatprep.subr.mxu0 0.0
    %4431 = vmatpush2.msra.mxu0 0.0
    %4432 = vmatprep.subr.mxu0 0.0
    %4433 = vmatpush2.msra.mxu0 0.0
    %4434 = vmatprep.subr.mxu0 0.0
    %4435 = vmatpush2.msra.mxu0 0.0
    %4436 = vmatprep.subr.mxu0 0.0
    %4437 = vmatpush2.msra.mxu0 0.0
    %4438 = vmatprep.subr.mxu0 0.0
    %4439 = vmatpush2.msra.mxu0 0.0
    %4440 = vmatprep.subr.mxu0 0.0
    %4441 = vmatpush2.msra.mxu0 0.0
    %4442 = vmatprep.subr.mxu0 0.0
    %4443 = vmatpush2.msra.mxu0 0.0
    %4444 = vmatprep.subr.mxu0 0.0
    %4445 = vmatpush2.msra.mxu0 0.0
    %4446 = vmatprep.mubr.f32.mxu0 0.0
    %4447 = vmatmul.mubr.f32.gmra.mxu0 %v4358
    %v4448 = vpop.f32.mrf.mxu0
    %v4449 = vadd.f32 %v4380, %v4448
    %v4450 = vpop.f32.mrf.mxu0
    %4451 = vdwg.mxu0
    %v4452 = vtanh.pop %v4449
    %v4453 = vld [vmem:[%s11] sm:$0xff]
    %v4454 = vld [vmem:[%s11 + $0x8] sm:$0xff]
    %v4455 = vld [vmem:[%s11 + $0x10] sm:$0xff]
    %v4456 = vld [vmem:[%s11 + $0x18] sm:$0x3f]
    %v4457 = vld [vmem:[%s12] sm:$0x1]
    %v4459 = vlaneseq
    %v4460 = vshrl.u32 %v4459, 7
    %v4461 = vsub.s32 0, %v4460
    %v4462 = vrot.slane %v4457, %v4461
    %vm4464 = vcmask 244736
    %v4466 = vsel %vm4464, %v4452, 0
    %vm4468 = vcmask 1045504
    %v4470 = vsel %vm4468, %v4456, 0
    %4472 = vmatprep.subr.mxu0 0.0
    %4473 = vmatpush1.msra.mxu0 0.0
    %4474 = vmatprep.subr.mxu0 0.0
    %4475 = vmatpush1.msra.mxu0 0.0
    %4476 = vmatprep.subr.mxu0 0.0
    %4477 = vmatpush1.msra.mxu0 0.0
    %4478 = vmatprep.subr.mxu0 0.0
    %4479 = vmatpush1.msra.mxu0 0.0
    %4480 = vmatprep.subr.mxu0 0.0
    %4481 = vmatpush1.msra.mxu0 0.0
    %4482 = vmatprep.subr.mxu0 0.0
    %4483 = vmatpush1.msra.mxu0 0.0
    %4484 = vmatprep.subr.mxu0 0.0
    %4485 = vmatpush1.msra.mxu0 0.0
    %4486 = vmatprep.subr.mxu0 0.0
    %4487 = vmatpush1.msra.mxu0 0.0
    %4488 = vmatprep.subr.mxu0 0.0
    %4489 = vmatpush1.msra.mxu0 0.0
    %4490 = vmatprep.subr.mxu0 0.0
    %4491 = vmatpush1.msra.mxu0 0.0
    %4492 = vmatprep.subr.mxu0 0.0
    %4493 = vmatpush1.msra.mxu0 0.0
    %4494 = vmatprep.subr.mxu0 0.0
    %4495 = vmatpush1.msra.mxu0 0.0
    %4496 = vmatprep.subr.mxu0 0.0
    %4497 = vmatpush1.msra.mxu0 %v4470
    %4498 = vmatprep.subr.mxu0 0.0
    %4499 = vmatpush1.msra.mxu0 %v4455
    %4500 = vmatprep.subr.mxu0 0.0
    %4501 = vmatpush1.msra.mxu0 %v4454
    %4502 = vmatprep.subr.mxu0 0.0
    %4503 = vmatpush1.msra.mxu0 %v4453
    %4504 = vmatprep.subr.mxu0 0.0
    %4505 = vmatpush2.msra.mxu0 0.0
    %4506 = vmatprep.subr.mxu0 0.0
    %4507 = vmatpush2.msra.mxu0 0.0
    %4508 = vmatprep.subr.mxu0 0.0
    %4509 = vmatpush2.msra.mxu0 0.0
    %4510 = vmatprep.subr.mxu0 0.0
    %4511 = vmatpush2.msra.mxu0 0.0
    %4512 = vmatprep.subr.mxu0 0.0
    %4513 = vmatpush2.msra.mxu0 0.0
    %4514 = vmatprep.subr.mxu0 0.0
    %4515 = vmatpush2.msra.mxu0 0.0
    %4516 = vmatprep.subr.mxu0 0.0
    %4517 = vmatpush2.msra.mxu0 0.0
    %4518 = vmatprep.subr.mxu0 0.0
    %4519 = vmatpush2.msra.mxu0 0.0
    %4520 = vmatprep.subr.mxu0 0.0
    %4521 = vmatpush2.msra.mxu0 0.0
    %4522 = vmatprep.subr.mxu0 0.0
    %4523 = vmatpush2.msra.mxu0 0.0
    %4524 = vmatprep.subr.mxu0 0.0
    %4525 = vmatpush2.msra.mxu0 0.0
    %4526 = vmatprep.subr.mxu0 0.0
    %4527 = vmatpush2.msra.mxu0 0.0
    %4528 = vmatprep.subr.mxu0 0.0
    %4529 = vmatpush2.msra.mxu0 0.0
    %4530 = vmatprep.subr.mxu0 0.0
    %4531 = vmatpush2.msra.mxu0 0.0
    %4532 = vmatprep.subr.mxu0 0.0
    %4533 = vmatpush2.msra.mxu0 0.0
    %4534 = vmatprep.subr.mxu0 0.0
    %4535 = vmatpush2.msra.mxu0 0.0
    %4536 = vmatprep.mubr.f32.mxu0 0.0
    %4537 = vmatmul.mubr.f32.gmra.mxu0 %v4466
    %v4538 = vpop.f32.mrf.mxu0
    %v4539 = vadd.f32 %v4462, %v4538
    %v4540 = vpop.f32.mrf.mxu0
    %4541 = vdwg.mxu0
    %vm4542 = vcmask 91136
    %4543 = vst.msk [vmem:[#allocation10] sm:$0x3] %vm4542, %v4539
    // Predicated region
    $region66: #{tpu_custom_call.1} parent=1 // pred_check
      _
    $region67: #{tpu_custom_call.1} parent=1 // pred_check_branch
      %4545 = sbr.rel (0) target = $region69
    $region68: #{tpu_custom_call.1} parent=1 // pred_region
      %s4547 = ssub.s32 32, 32
      %4548 = vsyncadd [#allocation6], %s4547
      %s4550 = sshll.u32 [#allocation10], 4
      %s4551 = int_to_ptr.vmem [resolvable:$true] %s4550
      %4553 = dma.vmem_to_hbm [thread:$0]  %s4551, 32, %s13, [#allocation6]
    $region69: #{tpu_custom_call.1} parent=1 // pred_fallthru
      _
    // Predicated region
    $region70: #{tpu_custom_call.1} parent=1 // pred_check
      _
    $region71: #{tpu_custom_call.1} parent=1 // pred_check_branch
      %4555 = sbr.rel (0) target = $region73
    $region72: #{tpu_custom_call.1} parent=1 // pred_region
      %4556 = dma.done [#allocation6], 32
    $region73: #{tpu_custom_call.1} parent=1 // pred_fallthru
      _
    %4557 = vsyncpa [#allocation5], 1
    %4558 = vsyncpa [#allocation8], 1
    %4559 = vsyncpa [#allocation6], 1

</llo_original>
